<compile_context>
chip_gen: v7x
topology: tpu7x:2x2x1
jax: 0.10.0
libtpu: 0.0.40
codegen_flags: <defaults>
</compile_context>

<pallas_src>
import math

import jax
import jax.numpy as jnp
from jax import lax
from jax.experimental import pallas as pl
from jax.experimental.pallas import tpu as pltpu

LANE = 128
EPS = 1e-5      # BatchNorm2d default
SLOPE = 0.1     # LeakyReLU negative slope


def _ru(x, m=LANE):
    return (x + m - 1) // m * m


def _pick_tn(n):
    """Output-channel tile: 256-wide only when >= 2 grid steps remain (v7x dual-core)."""
    if n % 256 == 0 and n > 256:
        return 256
    return 128


def _pick_tm(hw):
    """Row tile: largest multiple of 16 (<= 1024) dividing the per-image row count."""
    for t in (1024, 512, 256, 128, 64, 32, 16):
        if hw % t == 0:
            return t
    return hw


def _vmem_limit(*block_bytes):
    """Scoped-VMEM limit: double-buffered operand blocks + slack, clamped to v7x's 64 MiB."""
    need = 2 * sum(block_bytes)
    return int(min(need + (8 << 20), 64 << 20))


# ----------------------------------------------------------------------------- Pallas kernels

def _conv1x1_stats_kernel(a_ref, w_ref, y_ref, ssum_ref, ssq_ref):
    """1x1 conv as GEMM (f32 accumulation) + per-channel partial sum / sum-of-squares."""
    acc = jnp.dot(a_ref[...], w_ref[...], preferred_element_type=jnp.float32)

    @pl.when(pl.program_id(1) == 0)
    def _():
        ssum_ref[...] = jnp.zeros_like(ssum_ref)
        ssq_ref[...] = jnp.zeros_like(ssq_ref)

    # Stats taken while acc is still live — no re-read of the conv output.
    ssum_ref[...] += jnp.sum(acc, axis=0, keepdims=True)
    ssq_ref[...] += jnp.sum(acc * acc, axis=0, keepdims=True)
    y_ref[...] = acc.astype(y_ref.dtype)


def _conv1x1_stats(a, w, tm):
    """a: (M, Kp) bf16, w: (Kp, Np) bf16 -> y (M, Np) bf16, ssum/ssq (1, Np) f32."""
    m, kp = a.shape
    n = w.shape[1]
    tn = _pick_tn(n)
    vmem = _vmem_limit(tm * kp * 2, kp * tn * 2, tm * tn * 2, tn * 4, tn * 4)
    return pl.pallas_call(
        _conv1x1_stats_kernel,
        out_shape=(jax.ShapeDtypeStruct((m, n), jnp.bfloat16),
                   jax.ShapeDtypeStruct((1, n), jnp.float32),
                   jax.ShapeDtypeStruct((1, n), jnp.float32)),
        grid_spec=pltpu.PrefetchScalarGridSpec(
            num_scalar_prefetch=0,
            grid=(n // tn, m // tm),
            in_specs=[
                pl.BlockSpec((tm, kp), lambda j, i: (i, 0)),   # activation row tile
                pl.BlockSpec((kp, tn), lambda j, i: (0, j)),   # weight column tile
            ],
            out_specs=[
                pl.BlockSpec((tm, tn), lambda j, i: (i, j)),   # raw conv output
                pl.BlockSpec((1, tn), lambda j, i: (0, j)),    # sum   (accumulated over i)
                pl.BlockSpec((1, tn), lambda j, i: (0, j)),    # sumsq (accumulated over i)
            ],
        ),
        compiler_params=pltpu.CompilerParams(
            dimension_semantics=("parallel", "arbitrary"),
            vmem_limit_bytes=vmem),
    )(a, w)


def _make_conv3x3_stats_kernel(hh, ww):
    hw = hh * ww

    def kernel(a_ref, w_ref, y_ref, ssum_ref, ssq_ref):
        # Register-accumulate the 3 H-direction taps (static, W-aligned row-slab starts);
        # a single store of the result — no accumulator scratch, no read-modify-write.
        acc = jnp.dot(a_ref[0:hw, :], w_ref[0], preferred_element_type=jnp.float32)
        acc = acc + jnp.dot(a_ref[ww:ww + hw, :], w_ref[1],
                            preferred_element_type=jnp.float32)
        acc = acc + jnp.dot(a_ref[2 * ww:2 * ww + hw, :], w_ref[2],
                            preferred_element_type=jnp.float32)

        @pl.when(pl.program_id(1) == 0)
        def _():
            ssum_ref[...] = jnp.zeros_like(ssum_ref)
            ssq_ref[...] = jnp.zeros_like(ssq_ref)

        ssum_ref[...] += jnp.sum(acc, axis=0, keepdims=True)
        ssq_ref[...] += jnp.sum(acc * acc, axis=0, keepdims=True)
        y_ref[...] = acc.astype(y_ref.dtype)

    return kernel


def _conv3x3_stats(a3, w3, bsz, hh, ww):
    """a3: (B*(H+2)*W, Kp3) bf16 (W-direction im2col), w3: (3, Kp3, Np) bf16."""
    _, kp3 = a3.shape
    rows_img = (hh + 2) * ww
    hw = hh * ww
    n = w3.shape[2]
    tn = _pick_tn(n)
    vmem = _vmem_limit(rows_img * kp3 * 2, 3 * kp3 * tn * 2, hw * tn * 2, tn * 4, tn * 4)
    return pl.pallas_call(
        _make_conv3x3_stats_kernel(hh, ww),
        out_shape=(jax.ShapeDtypeStruct((bsz * hw, n), jnp.bfloat16),
                   jax.ShapeDtypeStruct((1, n), jnp.float32),
                   jax.ShapeDtypeStruct((1, n), jnp.float32)),
        grid_spec=pltpu.PrefetchScalarGridSpec(
            num_scalar_prefetch=0,
            grid=(n // tn, bsz),
            in_specs=[
                pl.BlockSpec((rows_img, kp3), lambda j, b: (b, 0)),  # one image's padded rows
                pl.BlockSpec((3, kp3, tn), lambda j, b: (0, 0, j)),  # 3 H-tap weight slabs
            ],
            out_specs=[
                pl.BlockSpec((hw, tn), lambda j, b: (b, j)),
                pl.BlockSpec((1, tn), lambda j, b: (0, j)),
                pl.BlockSpec((1, tn), lambda j, b: (0, j)),
            ],
        ),
        compiler_params=pltpu.CompilerParams(
            dimension_semantics=("parallel", "arbitrary"),
            vmem_limit_bytes=vmem),
    )(a3, w3)


def _make_bn_act_kernel(with_res):
    def kernel(*refs):
        if with_res:
            y_ref, scale_ref, shift_ref, res_ref, o_ref = refs
        else:
            y_ref, scale_ref, shift_ref, o_ref = refs
        # Folded BN: z = y*scale + shift ; LeakyReLU(0.1) as a single maximum.
        z = y_ref[...].astype(jnp.float32) * scale_ref[...] + shift_ref[...]
        z = jnp.maximum(z, SLOPE * z)
        if with_res:
            z = z + res_ref[...].astype(jnp.float32)
        o_ref[...] = z.astype(o_ref.dtype)
    return kernel


def _bn_act(y, scale, shift, res, tm):
    """y: (M, Np) bf16, scale/shift: (1, Np) f32, res: (M, Np) bf16 or None -> (M, Np) bf16."""
    m, n = y.shape
    tn = _pick_tn(n)
    with_res = res is not None
    in_specs = [pl.BlockSpec((tm, tn), lambda j, i: (i, j)),
                pl.BlockSpec((1, tn), lambda j, i: (0, j)),
                pl.BlockSpec((1, tn), lambda j, i: (0, j))]
    args = [y, scale, shift]
    if with_res:
        in_specs.append(pl.BlockSpec((tm, tn), lambda j, i: (i, j)))
        args.append(res)
    blocks = [tm * tn * 2, tn * 4, tn * 4, tm * tn * 2]
    if with_res:
        blocks.append(tm * tn * 2)
    return pl.pallas_call(
        _make_bn_act_kernel(with_res),
        out_shape=jax.ShapeDtypeStruct((m, n), jnp.bfloat16),
        grid_spec=pltpu.PrefetchScalarGridSpec(
            num_scalar_prefetch=0,
            grid=(n // tn, m // tm),
            in_specs=in_specs,
            out_specs=pl.BlockSpec((tm, tn), lambda j, i: (i, j)),
        ),
        compiler_params=pltpu.CompilerParams(
            dimension_semantics=("parallel", "parallel"),
            vmem_limit_bytes=_vmem_limit(*blocks)),
    )(*args)


def _bn_scale_shift(ssum, ssq, gamma, beta, m_rows):
    """Tiny per-channel fold (O(N) XLA work). Padded channels (gamma=beta=0) map to exactly 0."""
    mean = ssum / m_rows
    var = jnp.maximum(ssq / m_rows - mean * mean, 0.0)   # f32 sums; clamp guards cancellation
    scale = gamma * lax.rsqrt(var + EPS)
    shift = beta - mean * scale
    return scale, shift


# ----------------------------------------------------------------------------- forward wrapper

def residual_block_forward(params, x_nchw, use_residual=True):
    """ResidualBlock.forward: repeat [CNNBlock(c->c/2, 1x1), CNNBlock(c/2->c, 3x3, pad=1)],
    with `x = x + repeat(x)` when use_residual else `x = repeat(x)`."""
    bsz, c, hh, ww = x_nchw.shape
    assert c % 2 == 0
    hw = hh * ww
    m = bsz * hw
    assert hw % 16 == 0 and ((hh + 2) * ww) % 16 == 0, "spatial dims must pack to (16,128) tiles"
    cp = _ru(c)
    ch = c // 2
    chp = _ru(ch)
    tm = _pick_tm(hw)
    fm = float(m)

    # NCHW -> NHWC, channel-pad to a lane multiple, cast to bf16; stays padded across repeats.
    x = jnp.transpose(x_nchw, (0, 2, 3, 1)).astype(jnp.float32)
    xf = jnp.pad(x, ((0, 0), (0, 0), (0, 0), (0, cp - c)))
    xf = xf.reshape(m, cp).astype(jnp.bfloat16)

    for (p1, p2) in params:
        # ---- CNNBlock 1: 1x1 conv -> BN(batch stats) -> LeakyReLU ---------------------------
        w1 = jnp.pad(p1['w'].reshape(c, ch),
                     ((0, cp - c), (0, chp - ch))).astype(jnp.bfloat16)
        g1 = jnp.pad(p1['gamma'], (0, chp - ch)).reshape(1, chp).astype(jnp.float32)
        b1 = jnp.pad(p1['beta'], (0, chp - ch)).reshape(1, chp).astype(jnp.float32)

        y1, s1, q1 = _conv1x1_stats(xf, w1, tm)
        sc1, sh1 = _bn_scale_shift(s1, q1, g1, b1, fm)
        h = _bn_act(y1, sc1, sh1, None, tm)                       # (M, chp) bf16

        # ---- CNNBlock 2: 3x3 conv (pad=1) -> BN -> LeakyReLU (+ residual) -------------------
        # W-direction im2col only (~3x); the 3 H-direction taps are folded inside the kernel.
        h4 = h.reshape(bsz, hh, ww, chp)[..., :ch]
        hp = jnp.pad(h4, ((0, 0), (1, 1), (1, 1), (0, 0)))        # spatial pad
        colw = jnp.concatenate([hp[:, :, j:j + ww, :] for j in range(3)], axis=-1)
        k3 = 3 * ch
        kp3 = _ru(k3)
        a3 = colw.reshape(bsz * (hh + 2) * ww, k3)
        a3 = jnp.pad(a3, ((0, 0), (0, kp3 - k3))).astype(jnp.bfloat16)

        w3 = jnp.pad(p2['w'].reshape(3, k3, c),
                     ((0, 0), (0, kp3 - k3), (0, cp - c))).astype(jnp.bfloat16)
        g3 = jnp.pad(p2['gamma'], (0, cp - c)).reshape(1, cp).astype(jnp.float32)
        b3 = jnp.pad(p2['beta'], (0, cp - c)).reshape(1, cp).astype(jnp.float32)

        y3, s3, q3 = _conv3x3_stats(a3, w3, bsz, hh, ww)
        sc3, sh3 = _bn_scale_shift(s3, q3, g3, b3, fm)
        xf = _bn_act(y3, sc3, sh3, xf if use_residual else None, tm)

    out = xf.reshape(bsz, hh, ww, cp)[..., :c]
    return jnp.transpose(out, (0, 3, 1, 2)).astype(jnp.float32)


# ----------------------------------------------------------------------------- pure-JAX reference

def _bn_leaky_ref(y, gamma, beta):
    mean = jnp.mean(y, axis=(0, 1, 2), keepdims=True)
    var = jnp.mean(jnp.square(y - mean), axis=(0, 1, 2), keepdims=True)
    z = gamma * (y - mean) / jnp.sqrt(var + EPS) + beta
    return jnp.where(z > 0, z, SLOPE * z)


def residual_block_ref(params, x_nchw, use_residual=True):
    x = jnp.transpose(x_nchw, (0, 2, 3, 1)).astype(jnp.float32)
    dn = ('NHWC', 'HWIO', 'NHWC')
    for (p1, p2) in params:
        h = lax.conv_general_dilated(x, p1['w'], (1, 1), 'VALID', dimension_numbers=dn)
        h = _bn_leaky_ref(h, p1['gamma'], p1['beta'])
        y = lax.conv_general_dilated(h, p2['w'], (1, 1), ((1, 1), (1, 1)), dimension_numbers=dn)
        y = _bn_leaky_ref(y, p2['gamma'], p2['beta'])
        x = x + y if use_residual else y
    return jnp.transpose(x, (0, 3, 1, 2))


# ----------------------------------------------------------------------------- parameter init

def build_residual_block_params(in_size, num_repeats, key):
    ch = in_size // 2
    params = []
    for _ in range(num_repeats):
        k1, k2, k3, k4, k5, k6, key = jax.random.split(key, 7)
        w1 = jax.random.normal(k1, (1, 1, in_size, ch), jnp.float32) / math.sqrt(in_size)
        w2 = jax.random.normal(k2, (3, 3, ch, in_size), jnp.float32) / math.sqrt(9 * ch)
        p1 = dict(w=w1,
                  gamma=1.0 + 0.1 * jax.random.normal(k3, (ch,), jnp.float32),
                  beta=0.1 * jax.random.normal(k4, (ch,), jnp.float32))
        p2 = dict(w=w2,
                  gamma=1.0 + 0.1 * jax.random.normal(k5, (in_size,), jnp.float32),
                  beta=0.1 * jax.random.normal(k6, (in_size,), jnp.float32))
        params.append((p1, p2))
    return params


# ----------------------------------------------------------------------------- main

if __name__ == "__main__":
    key = jax.random.PRNGKey(0)
    bsz, cin, hh, ww = 2, 64, 16, 16
    num_repeats = 2

    pkey, xkey = jax.random.split(key)
    params = build_residual_block_params(cin, num_repeats, pkey)
    x = jax.random.normal(xkey, (bsz, cin, hh, ww), jnp.float32)

    fwd_res = jax.jit(lambda p, xx: residual_block_forward(p, xx, use_residual=True))
    fwd_nores = jax.jit(lambda p, xx: residual_block_forward(p, xx, use_residual=False))

    out_res = jax.block_until_ready(fwd_res(params, x))
    out_nores = jax.block_until_ready(fwd_nores(params, x))

    assert out_res.shape == (bsz, cin, hh, ww), out_res.shape
    assert out_nores.shape == (bsz, cin, hh, ww), out_nores.shape
    assert bool(jnp.all(jnp.isfinite(out_res))) and bool(jnp.all(jnp.isfinite(out_nores)))

    ref_res = residual_block_ref(params, x, use_residual=True)
    ref_nores = residual_block_ref(params, x, use_residual=False)
    err_res = float(jnp.max(jnp.abs(out_res - ref_res)))
    err_nores = float(jnp.max(jnp.abs(out_nores - ref_nores)))
    # bf16 matmul operands + bf16 conv-output round trip before normalization -> loose tolerance.
    assert err_res < 0.3 and err_nores < 0.3, (err_res, err_nores)

    print("KERNEL_OK")
</pallas_src>

<mosaic_0001>
module attributes {stable_mosaic.version = 11 : i64} {
  func.func @_conv1x1_stats_kernel(%arg0: i32, %arg1: i32, %arg2: memref<256x128xbf16, #tpu.memory_space<vmem>>, %arg3: memref<128x128xbf16, #tpu.memory_space<vmem>>, %arg4: memref<256x128xbf16, #tpu.memory_space<vmem>>, %arg5: memref<1x128xf32, #tpu.memory_space<vmem>>, %arg6: memref<1x128xf32, #tpu.memory_space<vmem>>) attributes {dimension_semantics = [#tpu.dimension_semantics<parallel>, #tpu.dimension_semantics<arbitrary>], iteration_bounds = array<i64: 1, 2>, scalar_prefetch = 0 : i64, scratch_operands = 0 : i64, tpu.core_type = #tpu.core_type<tc>, window_params = [{transform_indices = @transform_0, window_bounds = array<i64: 256, 128>}, {transform_indices = @transform_1, window_bounds = array<i64: 128, 128>}, {transform_indices = @transform_2, window_bounds = array<i64: 256, 128>}, {transform_indices = @transform_3, window_bounds = array<i64: 1, 128>}, {transform_indices = @transform_4, window_bounds = array<i64: 1, 128>}]} {
    %c0 = arith.constant 0 : index
    %c0_0 = arith.constant 0 : index
    %0 = vector.load %arg2[%c0, %c0_0] : memref<256x128xbf16, #tpu.memory_space<vmem>>, vector<256x128xbf16>
    %c0_1 = arith.constant 0 : index
    %c0_2 = arith.constant 0 : index
    %1 = vector.load %arg3[%c0_1, %c0_2] : memref<128x128xbf16, #tpu.memory_space<vmem>>, vector<128x128xbf16>
    %cst = arith.constant dense<0.000000e+00> : vector<256x128xf32>
    %2 = tpu.matmul %0, %1, %cst {dimension_numbers = #tpu.dot_dimension_numbers<[1], [0], [0], [1], [0, 0, 1, 1], [], []>} : vector<256x128xbf16>, vector<128x128xbf16>, vector<256x128xf32> -> vector<256x128xf32>
    %c0_i32 = arith.constant 0 : i32
    %3 = arith.cmpi eq, %arg1, %c0_i32 : i32
    %4 = arith.extui %3 : i1 to i32
    %c0_i32_3 = arith.constant 0 : i32
    %5 = arith.cmpi ne, %4, %c0_i32_3 : i32
    scf.if %5 {
      %cst_16 = arith.constant 0.000000e+00 : f32
      %19 = vector.broadcast %cst_16 : f32 to vector<1x128xf32>
      %c0_17 = arith.constant 0 : index
      %c0_18 = arith.constant 0 : index
      %20 = vector.load %arg5[%c0_17, %c0_18] : memref<1x128xf32, #tpu.memory_space<vmem>>, vector<1x128xf32>
      tpu.vector_store %arg5[%c0_17, %c0_18], %19 {strides = array<i32>} : memref<1x128xf32, #tpu.memory_space<vmem>>, vector<1x128xf32>,
      %cst_19 = arith.constant 0.000000e+00 : f32
      %21 = vector.broadcast %cst_19 : f32 to vector<1x128xf32>
      %c0_20 = arith.constant 0 : index
      %c0_21 = arith.constant 0 : index
      %22 = vector.load %arg6[%c0_20, %c0_21] : memref<1x128xf32, #tpu.memory_space<vmem>>, vector<1x128xf32>
      tpu.vector_store %arg6[%c0_20, %c0_21], %21 {strides = array<i32>} : memref<1x128xf32, #tpu.memory_space<vmem>>, vector<1x128xf32>,
    } else {
    }
    %c0_4 = arith.constant 0 : index
    %c0_5 = arith.constant 0 : index
    %6 = vector.load %arg5[%c0_4, %c0_5] : memref<1x128xf32, #tpu.memory_space<vmem>>, vector<1x128xf32>
    %cst_6 = arith.constant dense<0.000000e+00> : vector<128xf32>
    %7 = vector.multi_reduction <add>, %2, %cst_6 [0] : vector<256x128xf32> to vector<128xf32>
    %8 = vector.shape_cast %7 : vector<128xf32> to vector<1x128xf32>
    %9 = arith.addf %6, %8 : vector<1x128xf32>
    %c0_7 = arith.constant 0 : index
    %c0_8 = arith.constant 0 : index
    %10 = vector.load %arg5[%c0_7, %c0_8] : memref<1x128xf32, #tpu.memory_space<vmem>>, vector<1x128xf32>
    tpu.vector_store %arg5[%c0_7, %c0_8], %9 {strides = array<i32>} : memref<1x128xf32, #tpu.memory_space<vmem>>, vector<1x128xf32>,
    %c0_9 = arith.constant 0 : index
    %c0_10 = arith.constant 0 : index
    %11 = vector.load %arg6[%c0_9, %c0_10] : memref<1x128xf32, #tpu.memory_space<vmem>>, vector<1x128xf32>
    %12 = arith.mulf %2, %2 : vector<256x128xf32>
    %cst_11 = arith.constant dense<0.000000e+00> : vector<128xf32>
    %13 = vector.multi_reduction <add>, %12, %cst_11 [0] : vector<256x128xf32> to vector<128xf32>
    %14 = vector.shape_cast %13 : vector<128xf32> to vector<1x128xf32>
    %15 = arith.addf %11, %14 : vector<1x128xf32>
    %c0_12 = arith.constant 0 : index
    %c0_13 = arith.constant 0 : index
    %16 = vector.load %arg6[%c0_12, %c0_13] : memref<1x128xf32, #tpu.memory_space<vmem>>, vector<1x128xf32>
    tpu.vector_store %arg6[%c0_12, %c0_13], %15 {strides = array<i32>} : memref<1x128xf32, #tpu.memory_space<vmem>>, vector<1x128xf32>,
    %17 = arith.truncf %2 : vector<256x128xf32> to vector<256x128xbf16>
    %c0_14 = arith.constant 0 : index
    %c0_15 = arith.constant 0 : index
    %18 = vector.load %arg4[%c0_14, %c0_15] : memref<256x128xbf16, #tpu.memory_space<vmem>>, vector<256x128xbf16>
    tpu.vector_store %arg4[%c0_14, %c0_15], %17 {strides = array<i32>} : memref<256x128xbf16, #tpu.memory_space<vmem>>, vector<256x128xbf16>,
    return
  }
  func.func @transform_0(%arg0: i32, %arg1: i32) -> (i32, i32) {
    %c0_i32 = arith.constant 0 : i32
    %c0_i32_0 = arith.constant 0 : i32
    return %arg1, %c0_i32 : i32, i32
  }
  func.func @transform_1(%arg0: i32, %arg1: i32) -> (i32, i32) {
    %c0_i32 = arith.constant 0 : i32
    %c0_i32_0 = arith.constant 0 : i32
    return %c0_i32, %arg0 : i32, i32
  }
  func.func @transform_2(%arg0: i32, %arg1: i32) -> (i32, i32) {
    %c0_i32 = arith.constant 0 : i32
    return %arg1, %arg0 : i32, i32
  }
  func.func @transform_3(%arg0: i32, %arg1: i32) -> (i32, i32) {
    %c0_i32 = arith.constant 0 : i32
    %c0_i32_0 = arith.constant 0 : i32
    return %c0_i32, %arg0 : i32, i32
  }
  func.func @transform_4(%arg0: i32, %arg1: i32) -> (i32, i32) {
    %c0_i32 = arith.constant 0 : i32
    %c0_i32_0 = arith.constant 0 : i32
    return %c0_i32, %arg0 : i32, i32
  }
}

module attributes {stable_mosaic.version = 11 : i64} {
  func.func @kernel(%arg0: i32, %arg1: i32, %arg2: memref<256x128xbf16, #tpu.memory_space<vmem>>, %arg3: memref<1x128xf32, #tpu.memory_space<vmem>>, %arg4: memref<1x128xf32, #tpu.memory_space<vmem>>, %arg5: memref<256x128xbf16, #tpu.memory_space<vmem>>) attributes {dimension_semantics = [#tpu.dimension_semantics<parallel>, #tpu.dimension_semantics<parallel>], iteration_bounds = array<i64: 1, 2>, scalar_prefetch = 0 : i64, scratch_operands = 0 : i64, tpu.core_type = #tpu.core_type<tc>, window_params = [{transform_indices = @transform_0, window_bounds = array<i64: 256, 128>}, {transform_indices = @transform_1, window_bounds = array<i64: 1, 128>}, {transform_indices = @transform_2, window_bounds = array<i64: 1, 128>}, {transform_indices = @transform_3, window_bounds = array<i64: 256, 128>}]} {
    %c0 = arith.constant 0 : index
    %c0_0 = arith.constant 0 : index
    %0 = vector.load %arg2[%c0, %c0_0] : memref<256x128xbf16, #tpu.memory_space<vmem>>, vector<256x128xbf16>
    %1 = arith.extf %0 : vector<256x128xbf16> to vector<256x128xf32>
    %c0_1 = arith.constant 0 : index
    %c0_2 = arith.constant 0 : index
    %2 = vector.load %arg3[%c0_1, %c0_2] : memref<1x128xf32, #tpu.memory_space<vmem>>, vector<1x128xf32>
    %3 = vector.broadcast %2 : vector<1x128xf32> to vector<256x128xf32>
    %4 = arith.mulf %1, %3 : vector<256x128xf32>
    %c0_3 = arith.constant 0 : index
    %c0_4 = arith.constant 0 : index
    %5 = vector.load %arg4[%c0_3, %c0_4] : memref<1x128xf32, #tpu.memory_space<vmem>>, vector<1x128xf32>
    %6 = vector.broadcast %5 : vector<1x128xf32> to vector<256x128xf32>
    %7 = arith.addf %4, %6 : vector<256x128xf32>
    %cst = arith.constant 1.000000e-01 : f32
    %8 = vector.broadcast %cst : f32 to vector<256x128xf32>
    %9 = arith.mulf %8, %7 : vector<256x128xf32>
    %10 = arith.maximumf %7, %9 : vector<256x128xf32>
    %11 = arith.truncf %10 : vector<256x128xf32> to vector<256x128xbf16>
    %c0_5 = arith.constant 0 : index
    %c0_6 = arith.constant 0 : index
    %12 = vector.load %arg5[%c0_5, %c0_6] : memref<256x128xbf16, #tpu.memory_space<vmem>>, vector<256x128xbf16>
    tpu.vector_store %arg5[%c0_5, %c0_6], %11 {strides = array<i32>} : memref<256x128xbf16, #tpu.memory_space<vmem>>, vector<256x128xbf16>,
    return
  }
  func.func @transform_0(%arg0: i32, %arg1: i32) -> (i32, i32) {
    %c0_i32 = arith.constant 0 : i32
    return %arg1, %arg0 : i32, i32
  }
  func.func @transform_1(%arg0: i32, %arg1: i32) -> (i32, i32) {
    %c0_i32 = arith.constant 0 : i32
    %c0_i32_0 = arith.constant 0 : i32
    return %c0_i32, %arg0 : i32, i32
  }
  func.func @transform_2(%arg0: i32, %arg1: i32) -> (i32, i32) {
    %c0_i32 = arith.constant 0 : i32
    %c0_i32_0 = arith.constant 0 : i32
    return %c0_i32, %arg0 : i32, i32
  }
  func.func @transform_3(%arg0: i32, %arg1: i32) -> (i32, i32) {
    %c0_i32 = arith.constant 0 : i32
    return %arg1, %arg0 : i32, i32
  }
}

module attributes {stable_mosaic.version = 11 : i64} {
  func.func @kernel(%arg0: i32, %arg1: i32, %arg2: memref<256x128xbf16, #tpu.memory_space<vmem>>, %arg3: memref<1x128xf32, #tpu.memory_space<vmem>>, %arg4: memref<1x128xf32, #tpu.memory_space<vmem>>, %arg5: memref<256x128xbf16, #tpu.memory_space<vmem>>, %arg6: memref<256x128xbf16, #tpu.memory_space<vmem>>) attributes {dimension_semantics = [#tpu.dimension_semantics<parallel>, #tpu.dimension_semantics<parallel>], iteration_bounds = array<i64: 1, 2>, scalar_prefetch = 0 : i64, scratch_operands = 0 : i64, tpu.core_type = #tpu.core_type<tc>, window_params = [{transform_indices = @transform_0, window_bounds = array<i64: 256, 128>}, {transform_indices = @transform_1, window_bounds = array<i64: 1, 128>}, {transform_indices = @transform_2, window_bounds = array<i64: 1, 128>}, {transform_indices = @transform_3, window_bounds = array<i64: 256, 128>}, {transform_indices = @transform_4, window_bounds = array<i64: 256, 128>}]} {
    %c0 = arith.constant 0 : index
    %c0_0 = arith.constant 0 : index
    %0 = vector.load %arg2[%c0, %c0_0] : memref<256x128xbf16, #tpu.memory_space<vmem>>, vector<256x128xbf16>
    %1 = arith.extf %0 : vector<256x128xbf16> to vector<256x128xf32>
    %c0_1 = arith.constant 0 : index
    %c0_2 = arith.constant 0 : index
    %2 = vector.load %arg3[%c0_1, %c0_2] : memref<1x128xf32, #tpu.memory_space<vmem>>, vector<1x128xf32>
    %3 = vector.broadcast %2 : vector<1x128xf32> to vector<256x128xf32>
    %4 = arith.mulf %1, %3 : vector<256x128xf32>
    %c0_3 = arith.constant 0 : index
    %c0_4 = arith.constant 0 : index
    %5 = vector.load %arg4[%c0_3, %c0_4] : memref<1x128xf32, #tpu.memory_space<vmem>>, vector<1x128xf32>
    %6 = vector.broadcast %5 : vector<1x128xf32> to vector<256x128xf32>
    %7 = arith.addf %4, %6 : vector<256x128xf32>
    %cst = arith.constant 1.000000e-01 : f32
    %8 = vector.broadcast %cst : f32 to vector<256x128xf32>
    %9 = arith.mulf %8, %7 : vector<256x128xf32>
    %10 = arith.maximumf %7, %9 : vector<256x128xf32>
    %c0_5 = arith.constant 0 : index
    %c0_6 = arith.constant 0 : index
    %11 = vector.load %arg5[%c0_5, %c0_6] : memref<256x128xbf16, #tpu.memory_space<vmem>>, vector<256x128xbf16>
    %12 = arith.extf %11 : vector<256x128xbf16> to vector<256x128xf32>
    %13 = arith.addf %10, %12 : vector<256x128xf32>
    %14 = arith.truncf %13 : vector<256x128xf32> to vector<256x128xbf16>
    %c0_7 = arith.constant 0 : index
    %c0_8 = arith.constant 0 : index
    %15 = vector.load %arg6[%c0_7, %c0_8] : memref<256x128xbf16, #tpu.memory_space<vmem>>, vector<256x128xbf16>
    tpu.vector_store %arg6[%c0_7, %c0_8], %14 {strides = array<i32>} : memref<256x128xbf16, #tpu.memory_space<vmem>>, vector<256x128xbf16>,
    return
  }
  func.func @transform_0(%arg0: i32, %arg1: i32) -> (i32, i32) {
    %c0_i32 = arith.constant 0 : i32
    return %arg1, %arg0 : i32, i32
  }
  func.func @transform_1(%arg0: i32, %arg1: i32) -> (i32, i32) {
    %c0_i32 = arith.constant 0 : i32
    %c0_i32_0 = arith.constant 0 : i32
    return %c0_i32, %arg0 : i32, i32
  }
  func.func @transform_2(%arg0: i32, %arg1: i32) -> (i32, i32) {
    %c0_i32 = arith.constant 0 : i32
    %c0_i32_0 = arith.constant 0 : i32
    return %c0_i32, %arg0 : i32, i32
  }
  func.func @transform_3(%arg0: i32, %arg1: i32) -> (i32, i32) {
    %c0_i32 = arith.constant 0 : i32
    return %arg1, %arg0 : i32, i32
  }
  func.func @transform_4(%arg0: i32, %arg1: i32) -> (i32, i32) {
    %c0_i32 = arith.constant 0 : i32
    return %arg1, %arg0 : i32, i32
  }
}

module attributes {stable_mosaic.version = 11 : i64} {
  func.func @kernel(%arg0: i32, %arg1: i32, %arg2: memref<288x128xbf16, #tpu.memory_space<vmem>>, %arg3: memref<3x128x128xbf16, #tpu.memory_space<vmem>>, %arg4: memref<256x128xbf16, #tpu.memory_space<vmem>>, %arg5: memref<1x128xf32, #tpu.memory_space<vmem>>, %arg6: memref<1x128xf32, #tpu.memory_space<vmem>>) attributes {dimension_semantics = [#tpu.dimension_semantics<parallel>, #tpu.dimension_semantics<arbitrary>], iteration_bounds = array<i64: 1, 2>, scalar_prefetch = 0 : i64, scratch_operands = 0 : i64, tpu.core_type = #tpu.core_type<tc>, window_params = [{transform_indices = @transform_0, window_bounds = array<i64: 288, 128>}, {transform_indices = @transform_1, window_bounds = array<i64: 3, 128, 128>}, {transform_indices = @transform_2, window_bounds = array<i64: 256, 128>}, {transform_indices = @transform_3, window_bounds = array<i64: 1, 128>}, {transform_indices = @transform_4, window_bounds = array<i64: 1, 128>}]} {
    %c0 = arith.constant 0 : index
    %c0_0 = arith.constant 0 : index
    %0 = vector.load %arg2[%c0, %c0_0] : memref<288x128xbf16, #tpu.memory_space<vmem>>, vector<256x128xbf16>
    %c0_1 = arith.constant 0 : index
    %c0_2 = arith.constant 0 : index
    %c0_3 = arith.constant 0 : index
    %1 = vector.load %arg3[%c0_1, %c0_2, %c0_3] : memref<3x128x128xbf16, #tpu.memory_space<vmem>>, vector<1x128x128xbf16>
    %2 = vector.shape_cast %1 : vector<1x128x128xbf16> to vector<128x128xbf16>
    %cst = arith.constant dense<0.000000e+00> : vector<256x128xf32>
    %3 = tpu.matmul %0, %2, %cst {dimension_numbers = #tpu.dot_dimension_numbers<[1], [0], [0], [1], [0, 0, 1, 1], [], []>} : vector<256x128xbf16>, vector<128x128xbf16>, vector<256x128xf32> -> vector<256x128xf32>
    %c16 = arith.constant 16 : index
    %c0_4 = arith.constant 0 : index
    %4 = vector.load %arg2[%c16, %c0_4] : memref<288x128xbf16, #tpu.memory_space<vmem>>, vector<256x128xbf16>
    %c1 = arith.constant 1 : index
    %c0_5 = arith.constant 0 : index
    %c0_6 = arith.constant 0 : index
    %5 = vector.load %arg3[%c1, %c0_5, %c0_6] : memref<3x128x128xbf16, #tpu.memory_space<vmem>>, vector<1x128x128xbf16>
    %6 = vector.shape_cast %5 : vector<1x128x128xbf16> to vector<128x128xbf16>
    %cst_7 = arith.constant dense<0.000000e+00> : vector<256x128xf32>
    %7 = tpu.matmul %4, %6, %cst_7 {dimension_numbers = #tpu.dot_dimension_numbers<[1], [0], [0], [1], [0, 0, 1, 1], [], []>} : vector<256x128xbf16>, vector<128x128xbf16>, vector<256x128xf32> -> vector<256x128xf32>
    %8 = arith.addf %3, %7 : vector<256x128xf32>
    %c32 = arith.constant 32 : index
    %c0_8 = arith.constant 0 : index
    %9 = vector.load %arg2[%c32, %c0_8] : memref<288x128xbf16, #tpu.memory_space<vmem>>, vector<256x128xbf16>
    %c2 = arith.constant 2 : index
    %c0_9 = arith.constant 0 : index
    %c0_10 = arith.constant 0 : index
    %10 = vector.load %arg3[%c2, %c0_9, %c0_10] : memref<3x128x128xbf16, #tpu.memory_space<vmem>>, vector<1x128x128xbf16>
    %11 = vector.shape_cast %10 : vector<1x128x128xbf16> to vector<128x128xbf16>
    %cst_11 = arith.constant dense<0.000000e+00> : vector<256x128xf32>
    %12 = tpu.matmul %9, %11, %cst_11 {dimension_numbers = #tpu.dot_dimension_numbers<[1], [0], [0], [1], [0, 0, 1, 1], [], []>} : vector<256x128xbf16>, vector<128x128xbf16>, vector<256x128xf32> -> vector<256x128xf32>
    %13 = arith.addf %8, %12 : vector<256x128xf32>
    %c0_i32 = arith.constant 0 : i32
    %14 = arith.cmpi eq, %arg1, %c0_i32 : i32
    %15 = arith.extui %14 : i1 to i32
    %c0_i32_12 = arith.constant 0 : i32
    %16 = arith.cmpi ne, %15, %c0_i32_12 : i32
    scf.if %16 {
      %cst_25 = arith.constant 0.000000e+00 : f32
      %30 = vector.broadcast %cst_25 : f32 to vector<1x128xf32>
      %c0_26 = arith.constant 0 : index
      %c0_27 = arith.constant 0 : index
      %31 = vector.load %arg5[%c0_26, %c0_27] : memref<1x128xf32, #tpu.memory_space<vmem>>, vector<1x128xf32>
      tpu.vector_store %arg5[%c0_26, %c0_27], %30 {strides = array<i32>} : memref<1x128xf32, #tpu.memory_space<vmem>>, vector<1x128xf32>,
      %cst_28 = arith.constant 0.000000e+00 : f32
      %32 = vector.broadcast %cst_28 : f32 to vector<1x128xf32>
      %c0_29 = arith.constant 0 : index
      %c0_30 = arith.constant 0 : index
      %33 = vector.load %arg6[%c0_29, %c0_30] : memref<1x128xf32, #tpu.memory_space<vmem>>, vector<1x128xf32>
      tpu.vector_store %arg6[%c0_29, %c0_30], %32 {strides = array<i32>} : memref<1x128xf32, #tpu.memory_space<vmem>>, vector<1x128xf32>,
    } else {
    }
    %c0_13 = arith.constant 0 : index
    %c0_14 = arith.constant 0 : index
    %17 = vector.load %arg5[%c0_13, %c0_14] : memref<1x128xf32, #tpu.memory_space<vmem>>, vector<1x128xf32>
    %cst_15 = arith.constant dense<0.000000e+00> : vector<128xf32>
    %18 = vector.multi_reduction <add>, %13, %cst_15 [0] : vector<256x128xf32> to vector<128xf32>
    %19 = vector.shape_cast %18 : vector<128xf32> to vector<1x128xf32>
    %20 = arith.addf %17, %19 : vector<1x128xf32>
    %c0_16 = arith.constant 0 : index
    %c0_17 = arith.constant 0 : index
    %21 = vector.load %arg5[%c0_16, %c0_17] : memref<1x128xf32, #tpu.memory_space<vmem>>, vector<1x128xf32>
    tpu.vector_store %arg5[%c0_16, %c0_17], %20 {strides = array<i32>} : memref<1x128xf32, #tpu.memory_space<vmem>>, vector<1x128xf32>,
    %c0_18 = arith.constant 0 : index
    %c0_19 = arith.constant 0 : index
    %22 = vector.load %arg6[%c0_18, %c0_19] : memref<1x128xf32, #tpu.memory_space<vmem>>, vector<1x128xf32>
    %23 = arith.mulf %13, %13 : vector<256x128xf32>
    %cst_20 = arith.constant dense<0.000000e+00> : vector<128xf32>
    %24 = vector.multi_reduction <add>, %23, %cst_20 [0] : vector<256x128xf32> to vector<128xf32>
    %25 = vector.shape_cast %24 : vector<128xf32> to vector<1x128xf32>
    %26 = arith.addf %22, %25 : vector<1x128xf32>
    %c0_21 = arith.constant 0 : index
    %c0_22 = arith.constant 0 : index
    %27 = vector.load %arg6[%c0_21, %c0_22] : memref<1x128xf32, #tpu.memory_space<vmem>>, vector<1x128xf32>
    tpu.vector_store %arg6[%c0_21, %c0_22], %26 {strides = array<i32>} : memref<1x128xf32, #tpu.memory_space<vmem>>, vector<1x128xf32>,
    %28 = arith.truncf %13 : vector<256x128xf32> to vector<256x128xbf16>
    %c0_23 = arith.constant 0 : index
    %c0_24 = arith.constant 0 : index
    %29 = vector.load %arg4[%c0_23, %c0_24] : memref<256x128xbf16, #tpu.memory_space<vmem>>, vector<256x128xbf16>
    tpu.vector_store %arg4[%c0_23, %c0_24], %28 {strides = array<i32>} : memref<256x128xbf16, #tpu.memory_space<vmem>>, vector<256x128xbf16>,
    return
  }
  func.func @transform_0(%arg0: i32, %arg1: i32) -> (i32, i32) {
    %c0_i32 = arith.constant 0 : i32
    %c0_i32_0 = arith.constant 0 : i32
    return %arg1, %c0_i32 : i32, i32
  }
  func.func @transform_1(%arg0: i32, %arg1: i32) -> (i32, i32, i32) {
    %c0_i32 = arith.constant 0 : i32
    %c0_i32_0 = arith.constant 0 : i32
    %c0_i32_1 = arith.constant 0 : i32
    return %c0_i32, %c0_i32_0, %arg0 : i32, i32, i32
  }
  func.func @transform_2(%arg0: i32, %arg1: i32) -> (i32, i32) {
    %c0_i32 = arith.constant 0 : i32
    return %arg1, %arg0 : i32, i32
  }
  func.func @transform_3(%arg0: i32, %arg1: i32) -> (i32, i32) {
    %c0_i32 = arith.constant 0 : i32
    %c0_i32_0 = arith.constant 0 : i32
    return %c0_i32, %arg0 : i32, i32
  }
  func.func @transform_4(%arg0: i32, %arg1: i32) -> (i32, i32) {
    %c0_i32 = arith.constant 0 : i32
    %c0_i32_0 = arith.constant 0 : i32
    return %c0_i32, %arg0 : i32, i32
  }
}

</mosaic_0001>

<llo_original>
// kernel: _lambda_.8
$region0: #{_lambda_.8}
  #allocation0 [shape = 'u32[]', space=smem, size = 0x4, offset = 0x4, fixed_abs, tag = 'smem constant byte address 0x4 - core index']
  #allocation1 [shape = 'u32[144,128]{1,0:T(1,128)}', space=vmem, size = 0x12000, scoped, tag = 'internal scratch']
  %s0 = inlined_call_operand.vmem [shape: bf16[512,128], index: 0, kind: input, shape index: {}]
  %s1 = inlined_call_operand.vmem [shape: bf16[128,128], index: 1, kind: input, shape index: {}]
  %s2 = inlined_call_operand.vmem [shape: bf16[512,128], index: 2, kind: output, shape index: {0}]
  %s3 = inlined_call_operand.vmem [shape: f32[1,128], index: 3, kind: output, shape index: {1}]
  %s4 = inlined_call_operand.vmem [shape: f32[1,128], index: 4, kind: output, shape index: {2}]
  %5 = xla_tuple %s2, %s3, %s4
  %s6 = sld [smem:[#allocation0]]
  $region61: #{_lambda_.8} parent=0
    _
  %s8 = ssub.s32 1, %s6
  %s9 = scalar_select 0, %s8, %s6
  loop: start=0, step=1, limit=4
  $region2: #{_lambda_.8} parent=0 // loop_pre_header
    _
  $region3: #{_lambda_.8} parent=0 // loop_header
    %s11 = sphi 0, %s15
    %p12 = scmp.ge.s32.totalorder %s11, 4
    %s18 = sphi 0, %s30
    %s19 = sphi 0, %s26
    %s20 = sphi 0, %s18
    %s21 = sphi 0, %s19
    %s22 = sphi 0, %s20
    %s23 = sphi 0, %s21
    %s33 = sphi 0, %s35
    %s36 = sphi 0, %s33
    %s37 = sphi 0, %s36
    %s53 = sphi 0, %s37
    %s59 = sphi 0, %s61
    %s62 = sphi 0, %s59
    %s63 = sphi 0, %s62
    %s79 = sphi 0, %s63
    %s87 = sphi 0, %s89
    %s90 = sphi 0, %s87
    %s91 = sphi 0, %s90
    %s107 = sphi 0, %s91
    %s113 = sphi 0, %s115
    %s116 = sphi 0, %s113
    %s117 = sphi 0, %s116
    %s133 = sphi 0, %s117
    %s139 = sphi 0, %s141
    %s142 = sphi 0, %s139
    %s143 = sphi 0, %s142
    %s159 = sphi 0, %s143
  $region4: #{_lambda_.8} parent=0 // loop_header_branch
    %14 = sbr.rel (%p12) target = $region8
  $region5: #{_lambda_.8} parent=0 // loop_body
    %s16 = ssub.s32 %s11, 1
    %s17 = ssub.s32 %s11, 2
    %s24 = sadd.s32 1, %s19
    %p25 = scmp.ge.s32.totalorder %s24, 2
    %s26 = scalar_select %p25, 0, %s24
    %s27 = sadd.s32 1, %s18
    %s28 = scalar_select %p25, %s27, %s18
    %p29 = scmp.ge.s32.totalorder %s28, 1
    %s30 = scalar_select %p29, 0, %s28
    %s31 = ssub.s32 %s19, %s26
    %p32 = scmp.eq.s32.totalorder %s31, 0
    %s34 = sadd.s32 %s33, 1
    %s35 = scalar_select %p32, %s33, %s34
    %p38 = pneg %p32
    %p39 = scmp.eq.s32.totalorder %s11, 1
    %p40 = por %p38, %p39
    %p41 = scmp.ne.s32.totalorder %s33, %s36
    %p42 = scmp.eq.s32.totalorder %s11, 0
    %p43 = por %p41, %p42
    %p44 = scmp.ne.s32.totalorder %s33, %s36
    %p45 = scmp.eq.s32.totalorder %s16, 1
    %p46 = por %p44, %p45
    %p47 = scmp.ne.s32.totalorder %s36, %s37
    %p48 = scmp.eq.s32.totalorder %s16, 0
    %p49 = por %p47, %p48
    %p50 = scmp.ne.s32.totalorder %s36, %s37
    %p51 = scmp.eq.s32.totalorder %s17, 1
    %p52 = por %p50, %p51
    %p54 = scmp.ne.s32.totalorder %s37, %s53
    %p55 = scmp.eq.s32.totalorder %s17, 0
    %p56 = por %p54, %p55
    %s57 = ssub.s32 %s18, %s30
    %p58 = scmp.eq.s32.totalorder %s57, 0
    %s60 = sadd.s32 %s59, 1
    %s61 = scalar_select %p58, %s59, %s60
    %p64 = pneg %p58
    %p65 = scmp.eq.s32.totalorder %s11, 1
    %p66 = por %p64, %p65
    %p67 = scmp.ne.s32.totalorder %s59, %s62
    %p68 = scmp.eq.s32.totalorder %s11, 0
    %p69 = por %p67, %p68
    %p70 = scmp.ne.s32.totalorder %s59, %s62
    %p71 = scmp.eq.s32.totalorder %s16, 1
    %p72 = por %p70, %p71
    %p73 = scmp.ne.s32.totalorder %s62, %s63
    %p74 = scmp.eq.s32.totalorder %s16, 0
    %p75 = por %p73, %p74
    %p76 = scmp.ne.s32.totalorder %s62, %s63
    %p77 = scmp.eq.s32.totalorder %s17, 1
    %p78 = por %p76, %p77
    %p80 = scmp.ne.s32.totalorder %s63, %s79
    %p81 = scmp.eq.s32.totalorder %s17, 0
    %p82 = por %p80, %p81
    %s83 = ssub.s32 %s19, %s26
    %s84 = ssub.s32 %s18, %s30
    %s85 = sor.u32 %s83, %s84
    %p86 = scmp.eq.s32.totalorder %s85, 0
    %s88 = sadd.s32 %s87, 1
    %s89 = scalar_select %p86, %s87, %s88
    %p92 = pneg %p86
    %p93 = scmp.eq.s32.totalorder %s11, 1
    %p94 = por %p92, %p93
    %p95 = scmp.ne.s32.totalorder %s87, %s90
    %p96 = scmp.eq.s32.totalorder %s11, 0
    %p97 = por %p95, %p96
    %p98 = scmp.ne.s32.totalorder %s87, %s90
    %p99 = scmp.eq.s32.totalorder %s16, 1
    %p100 = por %p98, %p99
    %p101 = scmp.ne.s32.totalorder %s90, %s91
    %p102 = scmp.eq.s32.totalorder %s16, 0
    %p103 = por %p101, %p102
    %p104 = scmp.ne.s32.totalorder %s90, %s91
    %p105 = scmp.eq.s32.totalorder %s17, 1
    %p106 = por %p104, %p105
    %p108 = scmp.ne.s32.totalorder %s91, %s107
    %p109 = scmp.eq.s32.totalorder %s17, 0
    %p110 = por %p108, %p109
    %s111 = ssub.s32 %s18, %s30
    %p112 = scmp.eq.s32.totalorder %s111, 0
    %s114 = sadd.s32 %s113, 1
    %s115 = scalar_select %p112, %s113, %s114
    %p118 = pneg %p112
    %p119 = scmp.eq.s32.totalorder %s11, 1
    %p120 = por %p118, %p119
    %p121 = scmp.ne.s32.totalorder %s113, %s116
    %p122 = scmp.eq.s32.totalorder %s11, 0
    %p123 = por %p121, %p122
    %p124 = scmp.ne.s32.totalorder %s113, %s116
    %p125 = scmp.eq.s32.totalorder %s16, 1
    %p126 = por %p124, %p125
    %p127 = scmp.ne.s32.totalorder %s116, %s117
    %p128 = scmp.eq.s32.totalorder %s16, 0
    %p129 = por %p127, %p128
    %p130 = scmp.ne.s32.totalorder %s116, %s117
    %p131 = scmp.eq.s32.totalorder %s17, 1
    %p132 = por %p130, %p131
    %p134 = scmp.ne.s32.totalorder %s117, %s133
    %p135 = scmp.eq.s32.totalorder %s17, 0
    %p136 = por %p134, %p135
    %s137 = ssub.s32 %s18, %s30
    %p138 = scmp.eq.s32.totalorder %s137, 0
    %s140 = sadd.s32 %s139, 1
    %s141 = scalar_select %p138, %s139, %s140
    %p144 = pneg %p138
    %p145 = scmp.eq.s32.totalorder %s11, 1
    %p146 = por %p144, %p145
    %p147 = scmp.ne.s32.totalorder %s139, %s142
    %p148 = scmp.eq.s32.totalorder %s11, 0
    %p149 = por %p147, %p148
    %p150 = scmp.ne.s32.totalorder %s139, %s142
    %p151 = scmp.eq.s32.totalorder %s16, 1
    %p152 = por %p150, %p151
    %p153 = scmp.ne.s32.totalorder %s142, %s143
    %p154 = scmp.eq.s32.totalorder %s16, 0
    %p155 = por %p153, %p154
    %p156 = scmp.ne.s32.totalorder %s142, %s143
    %p157 = scmp.eq.s32.totalorder %s17, 1
    %p158 = por %p156, %p157
    %p160 = scmp.ne.s32.totalorder %s143, %s159
    %p161 = scmp.eq.s32.totalorder %s17, 0
    %p162 = por %p160, %p161
    %p163 = scmp.le.s32.totalorder 1, %s11
    %p164 = scmp.lt.s32.totalorder %s11, 3
    %p165 = pnand %p163, %p164
    %p166 = pneg %p165
    // Predicated region
    $region9: #{_lambda_.8} parent=5 // pred_check
      _
    $region10: #{_lambda_.8} parent=5 // pred_check_branch
      %168 = sbr.rel (%p165) target = $region12
    $region11: #{_lambda_.8} parent=5 // pred_region
      %s169 = ssub.s32 %s11, 1
      // Predicated region
      $region13: #{_lambda_.8} parent=11 // pred_check
        %p170 = pneg %p75
      $region14: #{_lambda_.8} parent=11 // pred_check_branch
        %172 = sbr.rel (%p170) target = $region16
      $region15: #{_lambda_.8} parent=11 // pred_region
        %p173 = scmp.lt.s32.totalorder %s20, 0
        %s174 = scalar_select %p173, %s20, 0
        %s175 = smul.addr %s174, 4
        %s176 = scalar_lea.vmem %s1, %s175
      $region16: #{_lambda_.8} parent=11 // pred_fallthru
        _
    $region12: #{_lambda_.8} parent=5 // pred_fallthru
      _
    %p177 = scmp.lt.s32.totalorder %s11, 2
    // Predicated region
    $region17: #{_lambda_.8} parent=5 // pred_check
      %p178 = pneg %p177
    $region18: #{_lambda_.8} parent=5 // pred_check_branch
      %180 = sbr.rel (%p178) target = $region20
    $region19: #{_lambda_.8} parent=5 // pred_region
      // Predicated region
      $region21: #{_lambda_.8} parent=19 // pred_check
        %p181 = pneg %p43
      $region22: #{_lambda_.8} parent=19 // pred_check_branch
        %183 = sbr.rel (%p181) target = $region24
      $region23: #{_lambda_.8} parent=19 // pred_region
        %s184 = smul.u32 32, %s19
        %p185 = scmp.lt.s32.totalorder %s184, 63
        %s186 = scalar_select %p185, %s184, 63
        %s187 = smul.addr %s186, 4
        %s188 = scalar_lea.vmem %s0, %s187
        %s189 = smul.u32 32, %s19
      $region24: #{_lambda_.8} parent=19 // pred_fallthru
        _
    $region20: #{_lambda_.8} parent=5 // pred_fallthru
      _
    %p190 = scmp.le.s32.totalorder 1, %s11
    %p191 = scmp.lt.s32.totalorder %s11, 3
    %p192 = pnand %p190, %p191
    %p193 = pneg %p192
    // Predicated region
    $region25: #{_lambda_.8} parent=5 // pred_check
      _
    $region26: #{_lambda_.8} parent=5 // pred_check_branch
      %195 = sbr.rel (%p192) target = $region28
    $region27: #{_lambda_.8} parent=5 // pred_region
      %s196 = ssub.s32 %s11, 1
      %s197 = smul.u32 32, %s21
      %p198 = scmp.lt.s32.totalorder %s197, 63
      %s199 = scalar_select %p198, %s197, 63
      %s200 = smul.addr %s199, 4
      %s201 = scalar_lea.vmem %s0, %s200
      %p202 = pneg %p49
      %p203 = pneg %p46
      %p204 = scmp.lt.s32.totalorder %s20, 0
      %s205 = scalar_select %p204, %s20, 0
      %s206 = smul.addr %s205, 4
      %s207 = scalar_lea.vmem %s1, %s206
      %p208 = pneg %p75
      %p209 = pneg %p72
      %p210 = pneg %p103
      %p211 = pneg %p100
      %s212 = smul.u32 32, %s21
      %p213 = scmp.lt.s32.totalorder %s212, 63
      %s214 = scalar_select %p213, %s212, 63
      %p215 = scmp.lt.s32.totalorder %s20, 0
      %s216 = scalar_select %p215, %s20, 0
      %s217 = sadd.s32 %s216, %s214
      %s218 = smul.addr %s217, 4
      %s219 = scalar_lea.vmem %s2, %s218
      %p220 = pneg %p129
      %p221 = pneg %p126
      %p222 = scmp.lt.s32.totalorder %s20, 0
      %s223 = scalar_select %p222, %s20, 0
      %s224 = scalar_lea.vmem %s3, %s223
      %p225 = pneg %p155
      %p226 = pneg %p152
      %p227 = scmp.lt.s32.totalorder %s20, 0
      %s228 = scalar_select %p227, %s20, 0
      %s229 = scalar_lea.vmem %s4, %s228
      %s230 = smul.u32 32, %s21
      %p231 = scmp.lt.s32.totalorder %s230, 63
      %s232 = scalar_select %p231, %s230, 63
      %s233 = smul.addr %s232, 4
      %s234 = scalar_lea.vmem %s0, %s233
      %s235 = smul.u32 32, %s21
      %p236 = scmp.lt.s32.totalorder %s20, 0
      %s237 = scalar_select %p236, %s20, 0
      %s238 = smul.addr %s237, 4
      %s239 = scalar_lea.vmem %s1, %s238
      %s240 = smul.u32 32, %s21
      %p241 = scmp.lt.s32.totalorder %s240, 63
      %s242 = scalar_select %p241, %s240, 63
      %p243 = scmp.lt.s32.totalorder %s20, 0
      %s244 = scalar_select %p243, %s20, 0
      %s245 = sadd.s32 %s244, %s242
      %s246 = smul.addr %s245, 4
      %s247 = scalar_lea.vmem %s2, %s246
      %s248 = smul.u32 32, %s21
      %p249 = scmp.lt.s32.totalorder %s20, 0
      %s250 = scalar_select %p249, %s20, 0
      %s251 = scalar_lea.vmem %s3, %s250
      %p252 = scmp.lt.s32.totalorder %s20, 0
      %s253 = scalar_select %p252, %s20, 0
      %s254 = scalar_lea.vmem %s4, %s253
      %v256 = vld [vmem:[%s234] sm:$0xf]
      %v257 = vld [vmem:[%s234 + $0x4] sm:$0xf]
      %v258 = vld [vmem:[%s234 + $0x8] sm:$0xf]
      %v259 = vld [vmem:[%s234 + $0xc] sm:$0xf]
      %v260 = vld [vmem:[%s234 + $0x10] sm:$0xf]
      %v261 = vld [vmem:[%s234 + $0x14] sm:$0xf]
      %v262 = vld [vmem:[%s234 + $0x18] sm:$0xf]
      %v263 = vld [vmem:[%s234 + $0x1c] sm:$0xf]
      %v264 = vld [vmem:[%s234 + $0x20] sm:$0xf]
      %v265 = vld [vmem:[%s234 + $0x24] sm:$0xf]
      %v266 = vld [vmem:[%s234 + $0x28] sm:$0xf]
      %v267 = vld [vmem:[%s234 + $0x2c] sm:$0xf]
      %v268 = vld [vmem:[%s234 + $0x30] sm:$0xf]
      %v269 = vld [vmem:[%s234 + $0x34] sm:$0xf]
      %v270 = vld [vmem:[%s234 + $0x38] sm:$0xf]
      %v271 = vld [vmem:[%s234 + $0x3c] sm:$0xf]
      %v272 = vld [vmem:[%s234 + $0x40] sm:$0xf]
      %v273 = vld [vmem:[%s234 + $0x44] sm:$0xf]
      %v274 = vld [vmem:[%s234 + $0x48] sm:$0xf]
      %v275 = vld [vmem:[%s234 + $0x4c] sm:$0xf]
      %v276 = vld [vmem:[%s234 + $0x50] sm:$0xf]
      %v277 = vld [vmem:[%s234 + $0x54] sm:$0xf]
      %v278 = vld [vmem:[%s234 + $0x58] sm:$0xf]
      %v279 = vld [vmem:[%s234 + $0x5c] sm:$0xf]
      %v280 = vld [vmem:[%s234 + $0x60] sm:$0xf]
      %v281 = vld [vmem:[%s234 + $0x64] sm:$0xf]
      %v282 = vld [vmem:[%s234 + $0x68] sm:$0xf]
      %v283 = vld [vmem:[%s234 + $0x6c] sm:$0xf]
      %v284 = vld [vmem:[%s234 + $0x70] sm:$0xf]
      %v285 = vld [vmem:[%s234 + $0x74] sm:$0xf]
      %v286 = vld [vmem:[%s234 + $0x78] sm:$0xf]
      %v287 = vld [vmem:[%s234 + $0x7c] sm:$0xf]
      %v288 = vld [vmem:[%s239] sm:$0xf]
      %v289 = vld [vmem:[%s239 + $0x4] sm:$0xf]
      %v290 = vld [vmem:[%s239 + $0x8] sm:$0xf]
      %v291 = vld [vmem:[%s239 + $0xc] sm:$0xf]
      %v292 = vld [vmem:[%s239 + $0x10] sm:$0xf]
      %v293 = vld [vmem:[%s239 + $0x14] sm:$0xf]
      %v294 = vld [vmem:[%s239 + $0x18] sm:$0xf]
      %v295 = vld [vmem:[%s239 + $0x1c] sm:$0xf]
      %v296 = vld [vmem:[%s239 + $0x20] sm:$0xf]
      %v297 = vld [vmem:[%s239 + $0x24] sm:$0xf]
      %v298 = vld [vmem:[%s239 + $0x28] sm:$0xf]
      %v299 = vld [vmem:[%s239 + $0x2c] sm:$0xf]
      %v300 = vld [vmem:[%s239 + $0x30] sm:$0xf]
      %v301 = vld [vmem:[%s239 + $0x34] sm:$0xf]
      %v302 = vld [vmem:[%s239 + $0x38] sm:$0xf]
      %v303 = vld [vmem:[%s239 + $0x3c] sm:$0xf]
      %v336 = vunpack.c.l.b16 %v256
      %v337 = vunpack.c.l.b16 %v257
      %v338 = vunpack.c.l.b16 %v258
      %v339 = vunpack.c.l.b16 %v259
      %v340 = vunpack.c.l.b16 %v260
      %v341 = vunpack.c.l.b16 %v261
      %v342 = vunpack.c.l.b16 %v262
      %v343 = vunpack.c.l.b16 %v263
      %v344 = vunpack.c.l.b16 %v264
      %v345 = vunpack.c.l.b16 %v265
      %v346 = vunpack.c.l.b16 %v266
      %v347 = vunpack.c.l.b16 %v267
      %v348 = vunpack.c.l.b16 %v268
      %v349 = vunpack.c.l.b16 %v269
      %v350 = vunpack.c.l.b16 %v270
      %v351 = vunpack.c.l.b16 %v271
      %v352 = vunpack.c.l.b16 %v272
      %v353 = vunpack.c.l.b16 %v273
      %v354 = vunpack.c.l.b16 %v274
      %v355 = vunpack.c.l.b16 %v275
      %v356 = vunpack.c.l.b16 %v276
      %v357 = vunpack.c.l.b16 %v277
      %v358 = vunpack.c.l.b16 %v278
      %v359 = vunpack.c.l.b16 %v279
      %v360 = vunpack.c.l.b16 %v280
      %v361 = vunpack.c.l.b16 %v281
      %v362 = vunpack.c.l.b16 %v282
      %v363 = vunpack.c.l.b16 %v283
      %v364 = vunpack.c.l.b16 %v284
      %v365 = vunpack.c.l.b16 %v285
      %v366 = vunpack.c.l.b16 %v286
      %v367 = vunpack.c.l.b16 %v287
      %v368 = vpack.c.b16 %v337, %v336
      %v369 = vpack.c.b16 %v339, %v338
      %v370 = vpack.c.b16 %v341, %v340
      %v371 = vpack.c.b16 %v343, %v342
      %v372 = vpack.c.b16 %v345, %v344
      %v373 = vpack.c.b16 %v347, %v346
      %v374 = vpack.c.b16 %v349, %v348
      %v375 = vpack.c.b16 %v351, %v350
      %v376 = vpack.c.b16 %v353, %v352
      %v377 = vpack.c.b16 %v355, %v354
      %v378 = vpack.c.b16 %v357, %v356
      %v379 = vpack.c.b16 %v359, %v358
      %v380 = vpack.c.b16 %v361, %v360
      %v381 = vpack.c.b16 %v363, %v362
      %v382 = vpack.c.b16 %v365, %v364
      %v383 = vpack.c.b16 %v367, %v366
      %v416 = vunpack.c.l.b16 %v288
      %v417 = vunpack.c.l.b16 %v289
      %v418 = vunpack.c.l.b16 %v290
      %v419 = vunpack.c.l.b16 %v291
      %v420 = vunpack.c.l.b16 %v292
      %v421 = vunpack.c.l.b16 %v293
      %v422 = vunpack.c.l.b16 %v294
      %v423 = vunpack.c.l.b16 %v295
      %v424 = vunpack.c.l.b16 %v296
      %v425 = vunpack.c.l.b16 %v297
      %v426 = vunpack.c.l.b16 %v298
      %v427 = vunpack.c.l.b16 %v299
      %v428 = vunpack.c.l.b16 %v300
      %v429 = vunpack.c.l.b16 %v301
      %v430 = vunpack.c.l.b16 %v302
      %v431 = vunpack.c.l.b16 %v303
      %v432 = vpack.c.b16 %v417, %v416
      %v433 = vpack.c.b16 %v419, %v418
      %v434 = vpack.c.b16 %v421, %v420
      %v435 = vpack.c.b16 %v423, %v422
      %v436 = vpack.c.b16 %v425, %v424
      %v437 = vpack.c.b16 %v427, %v426
      %v438 = vpack.c.b16 %v429, %v428
      %v439 = vpack.c.b16 %v431, %v430
      %448 = vmatprep.subr.bf16.mxu0 0
      %449 = vmatpush1.bf16.msra.mxu0 %v432
      %450 = vmatprep.subr.bf16.mxu0 0
      %451 = vmatpush1.bf16.msra.mxu0 %v433
      %452 = vmatprep.subr.bf16.mxu0 0
      %453 = vmatpush1.bf16.msra.mxu0 %v434
      %454 = vmatprep.subr.bf16.mxu0 0
      %455 = vmatpush1.bf16.msra.mxu0 %v435
      %456 = vmatprep.subr.bf16.mxu0 0
      %457 = vmatpush1.bf16.msra.mxu0 %v436
      %458 = vmatprep.subr.bf16.mxu0 0
      %459 = vmatpush1.bf16.msra.mxu0 %v437
      %460 = vmatprep.subr.bf16.mxu0 0
      %461 = vmatpush1.bf16.msra.mxu0 %v438
      %462 = vmatprep.subr.bf16.mxu0 0
      %463 = vmatpush1.bf16.msra.mxu0 %v439
      %464 = vmatprep.subr.bf16.mxu0 0
      %465 = vmatpush1.bf16.msra.mxu0 0
      %466 = vmatprep.subr.bf16.mxu0 0
      %467 = vmatpush1.bf16.msra.mxu0 0
      %468 = vmatprep.subr.bf16.mxu0 0
      %469 = vmatpush1.bf16.msra.mxu0 0
      %470 = vmatprep.subr.bf16.mxu0 0
      %471 = vmatpush1.bf16.msra.mxu0 0
      %472 = vmatprep.subr.bf16.mxu0 0
      %473 = vmatpush1.bf16.msra.mxu0 0
      %474 = vmatprep.subr.bf16.mxu0 0
      %475 = vmatpush1.bf16.msra.mxu0 0
      %476 = vmatprep.subr.bf16.mxu0 0
      %477 = vmatpush1.bf16.msra.mxu0 0
      %478 = vmatprep.subr.bf16.mxu0 0
      %479 = vmatpush1.bf16.msra.mxu0 0
      %480 = vmatprep.mubr.bf16.mxu0 0
      %481 = vmatmul.mubr.bf16.gmra.mrb[0].mxu0 %v368
      %v482 = vpop.f32.mrb[0].mxu0
      %v483 = vadd.f32 0.0, %v482
      %v484 = vpop.f32.mrb[0].mxu0
      %v485 = vpop.f32.mrb[0].mxu0
      %v486 = vadd.f32 0.0, %v485
      %v487 = vpop.f32.mrb[0].mxu0
      %488 = vmatprep.mubr.bf16.mxu0 0
      %489 = vmatmul.mubr.bf16.gmra.mrb[0].mxu0 %v369
      %v490 = vpop.f32.mrb[0].mxu0
      %v491 = vadd.f32 0.0, %v490
      %v492 = vpop.f32.mrb[0].mxu0
      %v493 = vpop.f32.mrb[0].mxu0
      %v494 = vadd.f32 0.0, %v493
      %v495 = vpop.f32.mrb[0].mxu0
      %496 = vmatprep.mubr.bf16.mxu0 0
      %497 = vmatmul.mubr.bf16.gmra.mrb[0].mxu0 %v370
      %v498 = vpop.f32.mrb[0].mxu0
      %v499 = vadd.f32 0.0, %v498
      %v500 = vpop.f32.mrb[0].mxu0
      %v501 = vpop.f32.mrb[0].mxu0
      %v502 = vadd.f32 0.0, %v501
      %v503 = vpop.f32.mrb[0].mxu0
      %504 = vmatprep.mubr.bf16.mxu0 0
      %505 = vmatmul.mubr.bf16.gmra.mrb[0].mxu0 %v371
      %v506 = vpop.f32.mrb[0].mxu0
      %v507 = vadd.f32 0.0, %v506
      %v508 = vpop.f32.mrb[0].mxu0
      %v509 = vpop.f32.mrb[0].mxu0
      %v510 = vadd.f32 0.0, %v509
      %v511 = vpop.f32.mrb[0].mxu0
      %512 = vmatprep.mubr.bf16.mxu0 0
      %513 = vmatmul.mubr.bf16.gmra.mrb[0].mxu0 %v372
      %v514 = vpop.f32.mrb[0].mxu0
      %v515 = vadd.f32 0.0, %v514
      %v516 = vpop.f32.mrb[0].mxu0
      %v517 = vpop.f32.mrb[0].mxu0
      %v518 = vadd.f32 0.0, %v517
      %v519 = vpop.f32.mrb[0].mxu0
      %520 = vmatprep.mubr.bf16.mxu0 0
      %521 = vmatmul.mubr.bf16.gmra.mrb[0].mxu0 %v373
      %v522 = vpop.f32.mrb[0].mxu0
      %v523 = vadd.f32 0.0, %v522
      %v524 = vpop.f32.mrb[0].mxu0
      %v525 = vpop.f32.mrb[0].mxu0
      %v526 = vadd.f32 0.0, %v525
      %v527 = vpop.f32.mrb[0].mxu0
      %528 = vmatprep.mubr.bf16.mxu0 0
      %529 = vmatmul.mubr.bf16.gmra.mrb[0].mxu0 %v374
      %v530 = vpop.f32.mrb[0].mxu0
      %v531 = vadd.f32 0.0, %v530
      %v532 = vpop.f32.mrb[0].mxu0
      %v533 = vpop.f32.mrb[0].mxu0
      %v534 = vadd.f32 0.0, %v533
      %v535 = vpop.f32.mrb[0].mxu0
      %536 = vmatprep.mubr.bf16.mxu0 0
      %537 = vmatmul.mubr.bf16.gmra.mrb[0].mxu0 %v375
      %v538 = vpop.f32.mrb[0].mxu0
      %v539 = vadd.f32 0.0, %v538
      %v540 = vpop.f32.mrb[0].mxu0
      %v541 = vpop.f32.mrb[0].mxu0
      %v542 = vadd.f32 0.0, %v541
      %v543 = vpop.f32.mrb[0].mxu0
      %544 = vmatprep.mubr.bf16.mxu0 0
      %545 = vmatmul.mubr.bf16.gmra.mrb[0].mxu0 %v376
      %v546 = vpop.f32.mrb[0].mxu0
      %v547 = vadd.f32 0.0, %v546
      %v548 = vpop.f32.mrb[0].mxu0
      %v549 = vpop.f32.mrb[0].mxu0
      %v550 = vadd.f32 0.0, %v549
      %v551 = vpop.f32.mrb[0].mxu0
      %552 = vmatprep.mubr.bf16.mxu0 0
      %553 = vmatmul.mubr.bf16.gmra.mrb[0].mxu0 %v377
      %v554 = vpop.f32.mrb[0].mxu0
      %v555 = vadd.f32 0.0, %v554
      %v556 = vpop.f32.mrb[0].mxu0
      %v557 = vpop.f32.mrb[0].mxu0
      %v558 = vadd.f32 0.0, %v557
      %v559 = vpop.f32.mrb[0].mxu0
      %560 = vmatprep.mubr.bf16.mxu0 0
      %561 = vmatmul.mubr.bf16.gmra.mrb[0].mxu0 %v378
      %v562 = vpop.f32.mrb[0].mxu0
      %v563 = vadd.f32 0.0, %v562
      %v564 = vpop.f32.mrb[0].mxu0
      %v565 = vpop.f32.mrb[0].mxu0
      %v566 = vadd.f32 0.0, %v565
      %v567 = vpop.f32.mrb[0].mxu0
      %568 = vmatprep.mubr.bf16.mxu0 0
      %569 = vmatmul.mubr.bf16.gmra.mrb[0].mxu0 %v379
      %v570 = vpop.f32.mrb[0].mxu0
      %v571 = vadd.f32 0.0, %v570
      %v572 = vpop.f32.mrb[0].mxu0
      %v573 = vpop.f32.mrb[0].mxu0
      %v574 = vadd.f32 0.0, %v573
      %v575 = vpop.f32.mrb[0].mxu0
      %576 = vmatprep.mubr.bf16.mxu0 0
      %577 = vmatmul.mubr.bf16.gmra.mrb[0].mxu0 %v380
      %v578 = vpop.f32.mrb[0].mxu0
      %v579 = vadd.f32 0.0, %v578
      %v580 = vpop.f32.mrb[0].mxu0
      %v581 = vpop.f32.mrb[0].mxu0
      %v582 = vadd.f32 0.0, %v581
      %v583 = vpop.f32.mrb[0].mxu0
      %584 = vmatprep.mubr.bf16.mxu0 0
      %585 = vmatmul.mubr.bf16.gmra.mrb[0].mxu0 %v381
      %v586 = vpop.f32.mrb[0].mxu0
      %v587 = vadd.f32 0.0, %v586
      %v588 = vpop.f32.mrb[0].mxu0
      %v589 = vpop.f32.mrb[0].mxu0
      %v590 = vadd.f32 0.0, %v589
      %v591 = vpop.f32.mrb[0].mxu0
      %592 = vmatprep.mubr.bf16.mxu0 0
      %593 = vmatmul.mubr.bf16.gmra.mrb[0].mxu0 %v382
      %v594 = vpop.f32.mrb[0].mxu0
      %v595 = vadd.f32 0.0, %v594
      %v596 = vpop.f32.mrb[0].mxu0
      %v597 = vpop.f32.mrb[0].mxu0
      %v598 = vadd.f32 0.0, %v597
      %v599 = vpop.f32.mrb[0].mxu0
      %600 = vmatprep.mubr.bf16.mxu0 0
      %601 = vmatmul.mubr.bf16.gmra.mrb[0].mxu0 %v383
      %v602 = vpop.f32.mrb[0].mxu0
      %v603 = vadd.f32 0.0, %v602
      %v604 = vpop.f32.mrb[0].mxu0
      %v605 = vpop.f32.mrb[0].mxu0
      %v606 = vadd.f32 0.0, %v605
      %v607 = vpop.f32.mrb[0].mxu0
      %608 = vdwg.mxu0
      %p609 = scmp.eq.s32.totalorder %s21, 0
      // Predicated region
      $region29: #{_lambda_.8} parent=27 // pred_check
        %p610 = pneg %p609
      $region30: #{_lambda_.8} parent=27 // pred_check_branch
        %612 = sbr.rel (%p610) target = $region32
      $region31: #{_lambda_.8} parent=27 // pred_region
        %613 = vst [vmem:[%s251] sm:$0x1] 0.0
        %614 = vst [vmem:[%s254] sm:$0x1] 0.0
      $region32: #{_lambda_.8} parent=27 // pred_fallthru
        _
      %v615 = vld [vmem:[%s251] sm:$0x1]
      %v616 = vadd.f32 %v483, %v486
      %v617 = vadd.f32 %v616, %v491
      %v618 = vadd.f32 %v617, %v494
      %v619 = vadd.f32 %v618, %v499
      %v620 = vadd.f32 %v619, %v502
      %v621 = vadd.f32 %v620, %v507
      %v622 = vadd.f32 %v621, %v510
      %v623 = vadd.f32 %v622, %v515
      %v624 = vadd.f32 %v623, %v518
      %v625 = vadd.f32 %v624, %v523
      %v626 = vadd.f32 %v625, %v526
      %v627 = vadd.f32 %v626, %v531
      %v628 = vadd.f32 %v627, %v534
      %v629 = vadd.f32 %v628, %v539
      %v630 = vadd.f32 %v629, %v542
      %v631 = vadd.f32 %v630, %v547
      %v632 = vadd.f32 %v631, %v550
      %v633 = vadd.f32 %v632, %v555
      %v634 = vadd.f32 %v633, %v558
      %v635 = vadd.f32 %v634, %v563
      %v636 = vadd.f32 %v635, %v566
      %v637 = vadd.f32 %v636, %v571
      %v638 = vadd.f32 %v637, %v574
      %v639 = vadd.f32 %v638, %v579
      %v640 = vadd.f32 %v639, %v582
      %v641 = vadd.f32 %v640, %v587
      %v642 = vadd.f32 %v641, %v590
      %v643 = vadd.f32 %v642, %v595
      %v644 = vadd.f32 %v643, %v598
      %v645 = vadd.f32 %v644, %v603
      %v646 = vadd.f32 %v645, %v606
      %v647 = vrot.slane %v646, 4
      %v648 = vadd.f32 %v646, %v647
      %v649 = vrot.slane %v648, 2
      %v650 = vadd.f32 %v648, %v649
      %v651 = vrot.slane %v650, 1
      %v652 = vadd.f32 %v650, %v651
      %v653 = vadd.f32 %v615, %v652
      %654 = vst [vmem:[%s251] sm:$0x1] %v653
      %v655 = vld [vmem:[%s254] sm:$0x1]
      %v656 = vmul.f32 %v483, %v483
      %v657 = vmul.f32 %v486, %v486
      %v658 = vmul.f32 %v491, %v491
      %v659 = vmul.f32 %v494, %v494
      %v660 = vmul.f32 %v499, %v499
      %v661 = vmul.f32 %v502, %v502
      %v662 = vmul.f32 %v507, %v507
      %v663 = vmul.f32 %v510, %v510
      %v664 = vmul.f32 %v515, %v515
      %v665 = vmul.f32 %v518, %v518
      %v666 = vmul.f32 %v523, %v523
      %v667 = vmul.f32 %v526, %v526
      %v668 = vmul.f32 %v531, %v531
      %v669 = vmul.f32 %v534, %v534
      %v670 = vmul.f32 %v539, %v539
      %v671 = vmul.f32 %v542, %v542
      %v672 = vmul.f32 %v547, %v547
      %v673 = vmul.f32 %v550, %v550
      %v674 = vmul.f32 %v555, %v555
      %v675 = vmul.f32 %v558, %v558
      %v676 = vmul.f32 %v563, %v563
      %v677 = vmul.f32 %v566, %v566
      %v678 = vmul.f32 %v571, %v571
      %v679 = vmul.f32 %v574, %v574
      %v680 = vmul.f32 %v579, %v579
      %v681 = vmul.f32 %v582, %v582
      %v682 = vmul.f32 %v587, %v587
      %v683 = vmul.f32 %v590, %v590
      %v684 = vmul.f32 %v595, %v595
      %v685 = vmul.f32 %v598, %v598
      %v686 = vmul.f32 %v603, %v603
      %v687 = vmul.f32 %v606, %v606
      %v688 = vadd.f32 %v656, %v657
      %v689 = vadd.f32 %v688, %v658
      %v690 = vadd.f32 %v689, %v659
      %v691 = vadd.f32 %v690, %v660
      %v692 = vadd.f32 %v691, %v661
      %v693 = vadd.f32 %v692, %v662
      %v694 = vadd.f32 %v693, %v663
      %v695 = vadd.f32 %v694, %v664
      %v696 = vadd.f32 %v695, %v665
      %v697 = vadd.f32 %v696, %v666
      %v698 = vadd.f32 %v697, %v667
      %v699 = vadd.f32 %v698, %v668
      %v700 = vadd.f32 %v699, %v669
      %v701 = vadd.f32 %v700, %v670
      %v702 = vadd.f32 %v701, %v671
      %v703 = vadd.f32 %v702, %v672
      %v704 = vadd.f32 %v703, %v673
      %v705 = vadd.f32 %v704, %v674
      %v706 = vadd.f32 %v705, %v675
      %v707 = vadd.f32 %v706, %v676
      %v708 = vadd.f32 %v707, %v677
      %v709 = vadd.f32 %v708, %v678
      %v710 = vadd.f32 %v709, %v679
      %v711 = vadd.f32 %v710, %v680
      %v712 = vadd.f32 %v711, %v681
      %v713 = vadd.f32 %v712, %v682
      %v714 = vadd.f32 %v713, %v683
      %v715 = vadd.f32 %v714, %v684
      %v716 = vadd.f32 %v715, %v685
      %v717 = vadd.f32 %v716, %v686
      %v718 = vadd.f32 %v717, %v687
      %v719 = vrot.slane %v718, 4
      %v720 = vadd.f32 %v718, %v719
      %v721 = vrot.slane %v720, 2
      %v722 = vadd.f32 %v720, %v721
      %v723 = vrot.slane %v722, 1
      %v724 = vadd.f32 %v722, %v723
      %v725 = vadd.f32 %v655, %v724
      %726 = vst [vmem:[%s254] sm:$0x1] %v725
      %v727 = vpack.c.bf16 %v486, %v483
      %v728 = vpack.c.bf16 %v494, %v491
      %v729 = vpack.c.bf16 %v502, %v499
      %v730 = vpack.c.bf16 %v510, %v507
      %v731 = vpack.c.bf16 %v518, %v515
      %v732 = vpack.c.bf16 %v526, %v523
      %v733 = vpack.c.bf16 %v534, %v531
      %v734 = vpack.c.bf16 %v542, %v539
      %v735 = vpack.c.bf16 %v550, %v547
      %v736 = vpack.c.bf16 %v558, %v555
      %v737 = vpack.c.bf16 %v566, %v563
      %v738 = vpack.c.bf16 %v574, %v571
      %v739 = vpack.c.bf16 %v582, %v579
      %v740 = vpack.c.bf16 %v590, %v587
      %v741 = vpack.c.bf16 %v598, %v595
      %v742 = vpack.c.bf16 %v606, %v603
      %v759 = vunpack.c.l.b16 %v727
      %v760 = vunpack.c.h.b16 %v727
      %v761 = vunpack.c.l.b16 %v728
      %v762 = vunpack.c.h.b16 %v728
      %v763 = vunpack.c.l.b16 %v729
      %v764 = vunpack.c.h.b16 %v729
      %v765 = vunpack.c.l.b16 %v730
      %v766 = vunpack.c.h.b16 %v730
      %v767 = vunpack.c.l.b16 %v731
      %v768 = vunpack.c.h.b16 %v731
      %v769 = vunpack.c.l.b16 %v732
      %v770 = vunpack.c.h.b16 %v732
      %v771 = vunpack.c.l.b16 %v733
      %v772 = vunpack.c.h.b16 %v733
      %v773 = vunpack.c.l.b16 %v734
      %v774 = vunpack.c.h.b16 %v734
      %v775 = vunpack.c.l.b16 %v735
      %v776 = vunpack.c.h.b16 %v735
      %v777 = vunpack.c.l.b16 %v736
      %v778 = vunpack.c.h.b16 %v736
      %v779 = vunpack.c.l.b16 %v737
      %v780 = vunpack.c.h.b16 %v737
      %v781 = vunpack.c.l.b16 %v738
      %v782 = vunpack.c.h.b16 %v738
      %v783 = vunpack.c.l.b16 %v739
      %v784 = vunpack.c.h.b16 %v739
      %v785 = vunpack.c.l.b16 %v740
      %v786 = vunpack.c.h.b16 %v740
      %v787 = vunpack.c.l.b16 %v741
      %v788 = vunpack.c.h.b16 %v741
      %v789 = vunpack.c.l.b16 %v742
      %v790 = vunpack.c.h.b16 %v742
      %v791 = vpack.c.b16 %v759, %v759
      %v792 = vpack.c.b16 %v760, %v760
      %v793 = vpack.c.b16 %v761, %v761
      %v794 = vpack.c.b16 %v762, %v762
      %v795 = vpack.c.b16 %v763, %v763
      %v796 = vpack.c.b16 %v764, %v764
      %v797 = vpack.c.b16 %v765, %v765
      %v798 = vpack.c.b16 %v766, %v766
      %v799 = vpack.c.b16 %v767, %v767
      %v800 = vpack.c.b16 %v768, %v768
      %v801 = vpack.c.b16 %v769, %v769
      %v802 = vpack.c.b16 %v770, %v770
      %v803 = vpack.c.b16 %v771, %v771
      %v804 = vpack.c.b16 %v772, %v772
      %v805 = vpack.c.b16 %v773, %v773
      %v806 = vpack.c.b16 %v774, %v774
      %v807 = vpack.c.b16 %v775, %v775
      %v808 = vpack.c.b16 %v776, %v776
      %v809 = vpack.c.b16 %v777, %v777
      %v810 = vpack.c.b16 %v778, %v778
      %v811 = vpack.c.b16 %v779, %v779
      %v812 = vpack.c.b16 %v780, %v780
      %v813 = vpack.c.b16 %v781, %v781
      %v814 = vpack.c.b16 %v782, %v782
      %v815 = vpack.c.b16 %v783, %v783
      %v816 = vpack.c.b16 %v784, %v784
      %v817 = vpack.c.b16 %v785, %v785
      %v818 = vpack.c.b16 %v786, %v786
      %v819 = vpack.c.b16 %v787, %v787
      %v820 = vpack.c.b16 %v788, %v788
      %v821 = vpack.c.b16 %v789, %v789
      %v822 = vpack.c.b16 %v790, %v790
      %855 = vst [vmem:[%s247] sm:$0xf] %v791
      %856 = vst [vmem:[%s247 + $0x4] sm:$0xf] %v792
      %857 = vst [vmem:[%s247 + $0x8] sm:$0xf] %v793
      %858 = vst [vmem:[%s247 + $0xc] sm:$0xf] %v794
      %859 = vst [vmem:[%s247 + $0x10] sm:$0xf] %v795
      %860 = vst [vmem:[%s247 + $0x14] sm:$0xf] %v796
      %861 = vst [vmem:[%s247 + $0x18] sm:$0xf] %v797
      %862 = vst [vmem:[%s247 + $0x1c] sm:$0xf] %v798
      %863 = vst [vmem:[%s247 + $0x20] sm:$0xf] %v799
      %864 = vst [vmem:[%s247 + $0x24] sm:$0xf] %v800
      %865 = vst [vmem:[%s247 + $0x28] sm:$0xf] %v801
      %866 = vst [vmem:[%s247 + $0x2c] sm:$0xf] %v802
      %867 = vst [vmem:[%s247 + $0x30] sm:$0xf] %v803
      %868 = vst [vmem:[%s247 + $0x34] sm:$0xf] %v804
      %869 = vst [vmem:[%s247 + $0x38] sm:$0xf] %v805
      %870 = vst [vmem:[%s247 + $0x3c] sm:$0xf] %v806
      %871 = vst [vmem:[%s247 + $0x40] sm:$0xf] %v807
      %872 = vst [vmem:[%s247 + $0x44] sm:$0xf] %v808
      %873 = vst [vmem:[%s247 + $0x48] sm:$0xf] %v809
      %874 = vst [vmem:[%s247 + $0x4c] sm:$0xf] %v810
      %875 = vst [vmem:[%s247 + $0x50] sm:$0xf] %v811
      %876 = vst [vmem:[%s247 + $0x54] sm:$0xf] %v812
      %877 = vst [vmem:[%s247 + $0x58] sm:$0xf] %v813
      %878 = vst [vmem:[%s247 + $0x5c] sm:$0xf] %v814
      %879 = vst [vmem:[%s247 + $0x60] sm:$0xf] %v815
      %880 = vst [vmem:[%s247 + $0x64] sm:$0xf] %v816
      %881 = vst [vmem:[%s247 + $0x68] sm:$0xf] %v817
      %882 = vst [vmem:[%s247 + $0x6c] sm:$0xf] %v818
      %883 = vst [vmem:[%s247 + $0x70] sm:$0xf] %v819
      %884 = vst [vmem:[%s247 + $0x74] sm:$0xf] %v820
      %885 = vst [vmem:[%s247 + $0x78] sm:$0xf] %v821
      %886 = vst [vmem:[%s247 + $0x7c] sm:$0xf] %v822
      %s887 = smul.u32 32, %s21
      %p888 = scmp.lt.s32.totalorder %s887, 63
      %s889 = scalar_select %p888, %s887, 63
      %p890 = scmp.lt.s32.totalorder %s20, 0
      %s891 = scalar_select %p890, %s20, 0
      %s892 = sadd.s32 %s891, %s889
      %s893 = smul.addr %s892, 4
      %s894 = scalar_lea.vmem %s2, %s893
      %p895 = scmp.lt.s32.totalorder %s20, 0
      %s896 = scalar_select %p895, %s20, 0
      %s897 = scalar_lea.vmem %s3, %s896
      %p898 = scmp.lt.s32.totalorder %s20, 0
      %s899 = scalar_select %p898, %s20, 0
      %s900 = scalar_lea.vmem %s4, %s899
      // Predicated region
      $region33: #{_lambda_.8} parent=27 // pred_check
        %p901 = pneg %p100
      $region34: #{_lambda_.8} parent=27 // pred_check_branch
        %903 = sbr.rel (%p901) target = $region36
      $region35: #{_lambda_.8} parent=27 // pred_region
        %s904 = smul.u32 32, %s21
      $region36: #{_lambda_.8} parent=27 // pred_fallthru
        _
      // Predicated region
      $region37: #{_lambda_.8} parent=27 // pred_check
        %p905 = pneg %p126
      $region38: #{_lambda_.8} parent=27 // pred_check_branch
        %907 = sbr.rel (%p905) target = $region40
      $region39: #{_lambda_.8} parent=27 // pred_region
        _
      $region40: #{_lambda_.8} parent=27 // pred_fallthru
        _
      // Predicated region
      $region41: #{_lambda_.8} parent=27 // pred_check
        %p908 = pneg %p152
      $region42: #{_lambda_.8} parent=27 // pred_check_branch
        %910 = sbr.rel (%p908) target = $region44
      $region43: #{_lambda_.8} parent=27 // pred_region
        _
      $region44: #{_lambda_.8} parent=27 // pred_fallthru
        _
      // Predicated region
      $region45: #{_lambda_.8} parent=27 // pred_check
        %p911 = pneg %p126
      $region46: #{_lambda_.8} parent=27 // pred_check_branch
        %913 = sbr.rel (%p911) target = $region48
      $region47: #{_lambda_.8} parent=27 // pred_region
        %p914 = scmp.lt.s32.totalorder %s20, 0
        %s915 = scalar_select %p914, %s20, 0
        %s916 = scalar_lea.vmem %s3, %s915
      $region48: #{_lambda_.8} parent=27 // pred_fallthru
        _
      // Predicated region
      $region49: #{_lambda_.8} parent=27 // pred_check
        %p917 = pneg %p152
      $region50: #{_lambda_.8} parent=27 // pred_check_branch
        %919 = sbr.rel (%p917) target = $region52
      $region51: #{_lambda_.8} parent=27 // pred_region
        %p920 = scmp.lt.s32.totalorder %s20, 0
        %s921 = scalar_select %p920, %s20, 0
        %s922 = scalar_lea.vmem %s4, %s921
      $region52: #{_lambda_.8} parent=27 // pred_fallthru
        _
    $region28: #{_lambda_.8} parent=5 // pred_fallthru
      _
    %p923 = scmp.le.s32.totalorder 2, %s11
    // Predicated region
    $region53: #{_lambda_.8} parent=5 // pred_check
      %p924 = pneg %p923
    $region54: #{_lambda_.8} parent=5 // pred_check_branch
      %926 = sbr.rel (%p924) target = $region56
    $region55: #{_lambda_.8} parent=5 // pred_region
      %s927 = ssub.s32 %s11, 2
      // Predicated region
      $region57: #{_lambda_.8} parent=55 // pred_check
        %p928 = pneg %p106
      $region58: #{_lambda_.8} parent=55 // pred_check_branch
        %930 = sbr.rel (%p928) target = $region60
      $region59: #{_lambda_.8} parent=55 // pred_region
        %s931 = smul.u32 32, %s23
        %p932 = scmp.lt.s32.totalorder %s931, 63
        %s933 = scalar_select %p932, %s931, 63
        %p934 = scmp.lt.s32.totalorder %s22, 0
        %s935 = scalar_select %p934, %s22, 0
        %s936 = sadd.s32 %s935, %s933
        %s937 = smul.addr %s936, 4
        %s938 = scalar_lea.vmem %s2, %s937
      $region60: #{_lambda_.8} parent=55 // pred_fallthru
        _
    $region56: #{_lambda_.8} parent=5 // pred_fallthru
      _
  $region6: #{_lambda_.8} parent=0 // loop_footer
    %s15 = sadd.s32 1, %s11
  $region7: #{_lambda_.8} parent=0 // loop_footer_branch
    %10 = sbr.rel target = $region3
  $region8: #{_lambda_.8} parent=0 // loop_exit
    _

// kernel: _lambda_.9
$region0: #{_lambda_.9}
  #allocation0 [shape = 'u32[]', space=smem, size = 0x4, offset = 0x4, fixed_abs, tag = 'smem constant byte address 0x4 - core index']
  #allocation1 [shape = 'u32[144,128]{1,0:T(1,128)}', space=vmem, size = 0x12000, scoped, tag = 'internal scratch']
  %s0 = inlined_call_operand.vmem [shape: bf16[512,128], index: 0, kind: input, shape index: {}]
  %s1 = inlined_call_operand.vmem [shape: f32[1,128], index: 1, kind: input, shape index: {}]
  %s2 = inlined_call_operand.vmem [shape: f32[1,128], index: 2, kind: input, shape index: {}]
  %s3 = inlined_call_operand.vmem [shape: bf16[512,128], index: 3, kind: output, shape index: {}]
  %s4 = sld [smem:[#allocation0]]
  $region45: #{_lambda_.9} parent=0
    _
  %s6 = ssub.s32 1, %s4
  %s7 = scalar_select 0, %s6, %s4
  loop: start=0, step=1, limit=4
  $region2: #{_lambda_.9} parent=0 // loop_pre_header
    _
  $region3: #{_lambda_.9} parent=0 // loop_header
    %s9 = sphi 0, %s13
    %p10 = scmp.ge.s32.totalorder %s9, 4
    %s16 = sphi 0, %s28
    %s17 = sphi 0, %s24
    %s18 = sphi 0, %s16
    %s19 = sphi 0, %s17
    %s20 = sphi 0, %s18
    %s21 = sphi 0, %s19
    %s33 = sphi 0, %s35
    %s36 = sphi 0, %s33
    %s37 = sphi 0, %s36
    %s53 = sphi 0, %s37
    %s59 = sphi 0, %s61
    %s62 = sphi 0, %s59
    %s63 = sphi 0, %s62
    %s79 = sphi 0, %s63
    %s85 = sphi 0, %s87
    %s88 = sphi 0, %s85
    %s89 = sphi 0, %s88
    %s105 = sphi 0, %s89
    %s113 = sphi 0, %s115
    %s116 = sphi 0, %s113
    %s117 = sphi 0, %s116
    %s133 = sphi 0, %s117
  $region4: #{_lambda_.9} parent=0 // loop_header_branch
    %12 = sbr.rel (%p10) target = $region8
  $region5: #{_lambda_.9} parent=0 // loop_body
    %s14 = ssub.s32 %s9, 1
    %s15 = ssub.s32 %s9, 2
    %s22 = sadd.s32 1, %s17
    %p23 = scmp.ge.s32.totalorder %s22, 2
    %s24 = scalar_select %p23, 0, %s22
    %s25 = sadd.s32 1, %s16
    %s26 = scalar_select %p23, %s25, %s16
    %p27 = scmp.ge.s32.totalorder %s26, 1
    %s28 = scalar_select %p27, 0, %s26
    %s29 = ssub.s32 %s17, %s24
    %s30 = ssub.s32 %s16, %s28
    %s31 = sor.u32 %s29, %s30
    %p32 = scmp.eq.s32.totalorder %s31, 0
    %s34 = sadd.s32 %s33, 1
    %s35 = scalar_select %p32, %s33, %s34
    %p38 = pneg %p32
    %p39 = scmp.eq.s32.totalorder %s9, 1
    %p40 = por %p38, %p39
    %p41 = scmp.ne.s32.totalorder %s33, %s36
    %p42 = scmp.eq.s32.totalorder %s9, 0
    %p43 = por %p41, %p42
    %p44 = scmp.ne.s32.totalorder %s33, %s36
    %p45 = scmp.eq.s32.totalorder %s14, 1
    %p46 = por %p44, %p45
    %p47 = scmp.ne.s32.totalorder %s36, %s37
    %p48 = scmp.eq.s32.totalorder %s14, 0
    %p49 = por %p47, %p48
    %p50 = scmp.ne.s32.totalorder %s36, %s37
    %p51 = scmp.eq.s32.totalorder %s15, 1
    %p52 = por %p50, %p51
    %p54 = scmp.ne.s32.totalorder %s37, %s53
    %p55 = scmp.eq.s32.totalorder %s15, 0
    %p56 = por %p54, %p55
    %s57 = ssub.s32 %s16, %s28
    %p58 = scmp.eq.s32.totalorder %s57, 0
    %s60 = sadd.s32 %s59, 1
    %s61 = scalar_select %p58, %s59, %s60
    %p64 = pneg %p58
    %p65 = scmp.eq.s32.totalorder %s9, 1
    %p66 = por %p64, %p65
    %p67 = scmp.ne.s32.totalorder %s59, %s62
    %p68 = scmp.eq.s32.totalorder %s9, 0
    %p69 = por %p67, %p68
    %p70 = scmp.ne.s32.totalorder %s59, %s62
    %p71 = scmp.eq.s32.totalorder %s14, 1
    %p72 = por %p70, %p71
    %p73 = scmp.ne.s32.totalorder %s62, %s63
    %p74 = scmp.eq.s32.totalorder %s14, 0
    %p75 = por %p73, %p74
    %p76 = scmp.ne.s32.totalorder %s62, %s63
    %p77 = scmp.eq.s32.totalorder %s15, 1
    %p78 = por %p76, %p77
    %p80 = scmp.ne.s32.totalorder %s63, %s79
    %p81 = scmp.eq.s32.totalorder %s15, 0
    %p82 = por %p80, %p81
    %s83 = ssub.s32 %s16, %s28
    %p84 = scmp.eq.s32.totalorder %s83, 0
    %s86 = sadd.s32 %s85, 1
    %s87 = scalar_select %p84, %s85, %s86
    %p90 = pneg %p84
    %p91 = scmp.eq.s32.totalorder %s9, 1
    %p92 = por %p90, %p91
    %p93 = scmp.ne.s32.totalorder %s85, %s88
    %p94 = scmp.eq.s32.totalorder %s9, 0
    %p95 = por %p93, %p94
    %p96 = scmp.ne.s32.totalorder %s85, %s88
    %p97 = scmp.eq.s32.totalorder %s14, 1
    %p98 = por %p96, %p97
    %p99 = scmp.ne.s32.totalorder %s88, %s89
    %p100 = scmp.eq.s32.totalorder %s14, 0
    %p101 = por %p99, %p100
    %p102 = scmp.ne.s32.totalorder %s88, %s89
    %p103 = scmp.eq.s32.totalorder %s15, 1
    %p104 = por %p102, %p103
    %p106 = scmp.ne.s32.totalorder %s89, %s105
    %p107 = scmp.eq.s32.totalorder %s15, 0
    %p108 = por %p106, %p107
    %s109 = ssub.s32 %s17, %s24
    %s110 = ssub.s32 %s16, %s28
    %s111 = sor.u32 %s109, %s110
    %p112 = scmp.eq.s32.totalorder %s111, 0
    %s114 = sadd.s32 %s113, 1
    %s115 = scalar_select %p112, %s113, %s114
    %p118 = pneg %p112
    %p119 = scmp.eq.s32.totalorder %s9, 1
    %p120 = por %p118, %p119
    %p121 = scmp.ne.s32.totalorder %s113, %s116
    %p122 = scmp.eq.s32.totalorder %s9, 0
    %p123 = por %p121, %p122
    %p124 = scmp.ne.s32.totalorder %s113, %s116
    %p125 = scmp.eq.s32.totalorder %s14, 1
    %p126 = por %p124, %p125
    %p127 = scmp.ne.s32.totalorder %s116, %s117
    %p128 = scmp.eq.s32.totalorder %s14, 0
    %p129 = por %p127, %p128
    %p130 = scmp.ne.s32.totalorder %s116, %s117
    %p131 = scmp.eq.s32.totalorder %s15, 1
    %p132 = por %p130, %p131
    %p134 = scmp.ne.s32.totalorder %s117, %s133
    %p135 = scmp.eq.s32.totalorder %s15, 0
    %p136 = por %p134, %p135
    %p137 = scmp.le.s32.totalorder 1, %s9
    %p138 = scmp.lt.s32.totalorder %s9, 3
    %p139 = pnand %p137, %p138
    %p140 = pneg %p139
    // Predicated region
    $region9: #{_lambda_.9} parent=5 // pred_check
      _
    $region10: #{_lambda_.9} parent=5 // pred_check_branch
      %142 = sbr.rel (%p139) target = $region12
    $region11: #{_lambda_.9} parent=5 // pred_region
      %s143 = ssub.s32 %s9, 1
      // Predicated region
      $region13: #{_lambda_.9} parent=11 // pred_check
        %p144 = pneg %p75
      $region14: #{_lambda_.9} parent=11 // pred_check_branch
        %146 = sbr.rel (%p144) target = $region16
      $region15: #{_lambda_.9} parent=11 // pred_region
        %p147 = scmp.lt.s32.totalorder %s18, 0
        %s148 = scalar_select %p147, %s18, 0
        %s149 = scalar_lea.vmem %s1, %s148
      $region16: #{_lambda_.9} parent=11 // pred_fallthru
        _
      // Predicated region
      $region17: #{_lambda_.9} parent=11 // pred_check
        %p150 = pneg %p101
      $region18: #{_lambda_.9} parent=11 // pred_check_branch
        %152 = sbr.rel (%p150) target = $region20
      $region19: #{_lambda_.9} parent=11 // pred_region
        %p153 = scmp.lt.s32.totalorder %s18, 0
        %s154 = scalar_select %p153, %s18, 0
        %s155 = scalar_lea.vmem %s2, %s154
      $region20: #{_lambda_.9} parent=11 // pred_fallthru
        _
    $region12: #{_lambda_.9} parent=5 // pred_fallthru
      _
    %p156 = scmp.lt.s32.totalorder %s9, 2
    // Predicated region
    $region21: #{_lambda_.9} parent=5 // pred_check
      %p157 = pneg %p156
    $region22: #{_lambda_.9} parent=5 // pred_check_branch
      %159 = sbr.rel (%p157) target = $region24
    $region23: #{_lambda_.9} parent=5 // pred_region
      // Predicated region
      $region25: #{_lambda_.9} parent=23 // pred_check
        %p160 = pneg %p43
      $region26: #{_lambda_.9} parent=23 // pred_check_branch
        %162 = sbr.rel (%p160) target = $region28
      $region27: #{_lambda_.9} parent=23 // pred_region
        %s163 = smul.u32 32, %s17
        %p164 = scmp.lt.s32.totalorder %s163, 63
        %s165 = scalar_select %p164, %s163, 63
        %p166 = scmp.lt.s32.totalorder %s16, 0
        %s167 = scalar_select %p166, %s16, 0
        %s168 = sadd.s32 %s167, %s165
        %s169 = smul.addr %s168, 4
        %s170 = scalar_lea.vmem %s0, %s169
        %s171 = smul.u32 32, %s17
      $region28: #{_lambda_.9} parent=23 // pred_fallthru
        _
    $region24: #{_lambda_.9} parent=5 // pred_fallthru
      _
    %p172 = scmp.le.s32.totalorder 1, %s9
    %p173 = scmp.lt.s32.totalorder %s9, 3
    %p174 = pnand %p172, %p173
    %p175 = pneg %p174
    // Predicated region
    $region29: #{_lambda_.9} parent=5 // pred_check
      _
    $region30: #{_lambda_.9} parent=5 // pred_check_branch
      %177 = sbr.rel (%p174) target = $region32
    $region31: #{_lambda_.9} parent=5 // pred_region
      %s178 = ssub.s32 %s9, 1
      %s179 = smul.u32 32, %s19
      %p180 = scmp.lt.s32.totalorder %s179, 63
      %s181 = scalar_select %p180, %s179, 63
      %p182 = scmp.lt.s32.totalorder %s18, 0
      %s183 = scalar_select %p182, %s18, 0
      %s184 = sadd.s32 %s183, %s181
      %s185 = smul.addr %s184, 4
      %s186 = scalar_lea.vmem %s0, %s185
      %p187 = pneg %p49
      %p188 = pneg %p46
      %p189 = scmp.lt.s32.totalorder %s18, 0
      %s190 = scalar_select %p189, %s18, 0
      %s191 = scalar_lea.vmem %s1, %s190
      %p192 = pneg %p75
      %p193 = pneg %p72
      %p194 = scmp.lt.s32.totalorder %s18, 0
      %s195 = scalar_select %p194, %s18, 0
      %s196 = scalar_lea.vmem %s2, %s195
      %p197 = pneg %p101
      %p198 = pneg %p98
      %p199 = pneg %p129
      %p200 = pneg %p126
      %s201 = smul.u32 32, %s19
      %p202 = scmp.lt.s32.totalorder %s201, 63
      %s203 = scalar_select %p202, %s201, 63
      %p204 = scmp.lt.s32.totalorder %s18, 0
      %s205 = scalar_select %p204, %s18, 0
      %s206 = sadd.s32 %s205, %s203
      %s207 = smul.addr %s206, 4
      %s208 = scalar_lea.vmem %s3, %s207
      %s209 = smul.u32 32, %s19
      %p210 = scmp.lt.s32.totalorder %s209, 63
      %s211 = scalar_select %p210, %s209, 63
      %p212 = scmp.lt.s32.totalorder %s18, 0
      %s213 = scalar_select %p212, %s18, 0
      %s214 = sadd.s32 %s213, %s211
      %s215 = smul.addr %s214, 4
      %s216 = scalar_lea.vmem %s0, %s215
      %s217 = smul.u32 32, %s19
      %p218 = scmp.lt.s32.totalorder %s18, 0
      %s219 = scalar_select %p218, %s18, 0
      %s220 = scalar_lea.vmem %s1, %s219
      %p221 = scmp.lt.s32.totalorder %s18, 0
      %s222 = scalar_select %p221, %s18, 0
      %s223 = scalar_lea.vmem %s2, %s222
      %s224 = smul.u32 32, %s19
      %p225 = scmp.lt.s32.totalorder %s224, 63
      %s226 = scalar_select %p225, %s224, 63
      %p227 = scmp.lt.s32.totalorder %s18, 0
      %s228 = scalar_select %p227, %s18, 0
      %s229 = sadd.s32 %s228, %s226
      %s230 = smul.addr %s229, 4
      %s231 = scalar_lea.vmem %s3, %s230
      %s232 = smul.u32 32, %s19
      %v233 = vld [vmem:[%s216] sm:$0xf]
      %v234 = vld [vmem:[%s216 + $0x4] sm:$0xf]
      %v235 = vld [vmem:[%s216 + $0x8] sm:$0xf]
      %v236 = vld [vmem:[%s216 + $0xc] sm:$0xf]
      %v237 = vld [vmem:[%s216 + $0x10] sm:$0xf]
      %v238 = vld [vmem:[%s216 + $0x14] sm:$0xf]
      %v239 = vld [vmem:[%s216 + $0x18] sm:$0xf]
      %v240 = vld [vmem:[%s216 + $0x1c] sm:$0xf]
      %v241 = vld [vmem:[%s216 + $0x20] sm:$0xf]
      %v242 = vld [vmem:[%s216 + $0x24] sm:$0xf]
      %v243 = vld [vmem:[%s216 + $0x28] sm:$0xf]
      %v244 = vld [vmem:[%s216 + $0x2c] sm:$0xf]
      %v245 = vld [vmem:[%s216 + $0x30] sm:$0xf]
      %v246 = vld [vmem:[%s216 + $0x34] sm:$0xf]
      %v247 = vld [vmem:[%s216 + $0x38] sm:$0xf]
      %v248 = vld [vmem:[%s216 + $0x3c] sm:$0xf]
      %v249 = vld [vmem:[%s216 + $0x40] sm:$0xf]
      %v250 = vld [vmem:[%s216 + $0x44] sm:$0xf]
      %v251 = vld [vmem:[%s216 + $0x48] sm:$0xf]
      %v252 = vld [vmem:[%s216 + $0x4c] sm:$0xf]
      %v253 = vld [vmem:[%s216 + $0x50] sm:$0xf]
      %v254 = vld [vmem:[%s216 + $0x54] sm:$0xf]
      %v255 = vld [vmem:[%s216 + $0x58] sm:$0xf]
      %v256 = vld [vmem:[%s216 + $0x5c] sm:$0xf]
      %v257 = vld [vmem:[%s216 + $0x60] sm:$0xf]
      %v258 = vld [vmem:[%s216 + $0x64] sm:$0xf]
      %v259 = vld [vmem:[%s216 + $0x68] sm:$0xf]
      %v260 = vld [vmem:[%s216 + $0x6c] sm:$0xf]
      %v261 = vld [vmem:[%s216 + $0x70] sm:$0xf]
      %v262 = vld [vmem:[%s216 + $0x74] sm:$0xf]
      %v263 = vld [vmem:[%s216 + $0x78] sm:$0xf]
      %v264 = vld [vmem:[%s216 + $0x7c] sm:$0xf]
      %v265 = vunpack.c.l.bf16 %v233
      %v266 = vunpack.c.l.bf16 %v234
      %v267 = vunpack.c.l.bf16 %v235
      %v268 = vunpack.c.l.bf16 %v236
      %v269 = vunpack.c.l.bf16 %v237
      %v270 = vunpack.c.l.bf16 %v238
      %v271 = vunpack.c.l.bf16 %v239
      %v272 = vunpack.c.l.bf16 %v240
      %v273 = vunpack.c.l.bf16 %v241
      %v274 = vunpack.c.l.bf16 %v242
      %v275 = vunpack.c.l.bf16 %v243
      %v276 = vunpack.c.l.bf16 %v244
      %v277 = vunpack.c.l.bf16 %v245
      %v278 = vunpack.c.l.bf16 %v246
      %v279 = vunpack.c.l.bf16 %v247
      %v280 = vunpack.c.l.bf16 %v248
      %v281 = vunpack.c.l.bf16 %v249
      %v282 = vunpack.c.l.bf16 %v250
      %v283 = vunpack.c.l.bf16 %v251
      %v284 = vunpack.c.l.bf16 %v252
      %v285 = vunpack.c.l.bf16 %v253
      %v286 = vunpack.c.l.bf16 %v254
      %v287 = vunpack.c.l.bf16 %v255
      %v288 = vunpack.c.l.bf16 %v256
      %v289 = vunpack.c.l.bf16 %v257
      %v290 = vunpack.c.l.bf16 %v258
      %v291 = vunpack.c.l.bf16 %v259
      %v292 = vunpack.c.l.bf16 %v260
      %v293 = vunpack.c.l.bf16 %v261
      %v294 = vunpack.c.l.bf16 %v262
      %v295 = vunpack.c.l.bf16 %v263
      %v296 = vunpack.c.l.bf16 %v264
      %v297 = vld [vmem:[%s220] sm:$0x1]
      %v299 = vlaneseq
      %v300 = vshrl.u32 %v299, 7
      %v301 = vsub.s32 0, %v300
      %v302 = vrot.slane %v297, %v301
      %v304 = vmul.f32 %v265, %v302
      %v305 = vmul.f32 %v266, %v302
      %v306 = vmul.f32 %v267, %v302
      %v307 = vmul.f32 %v268, %v302
      %v308 = vmul.f32 %v269, %v302
      %v309 = vmul.f32 %v270, %v302
      %v310 = vmul.f32 %v271, %v302
      %v311 = vmul.f32 %v272, %v302
      %v312 = vmul.f32 %v273, %v302
      %v313 = vmul.f32 %v274, %v302
      %v314 = vmul.f32 %v275, %v302
      %v315 = vmul.f32 %v276, %v302
      %v316 = vmul.f32 %v277, %v302
      %v317 = vmul.f32 %v278, %v302
      %v318 = vmul.f32 %v279, %v302
      %v319 = vmul.f32 %v280, %v302
      %v320 = vmul.f32 %v281, %v302
      %v321 = vmul.f32 %v282, %v302
      %v322 = vmul.f32 %v283, %v302
      %v323 = vmul.f32 %v284, %v302
      %v324 = vmul.f32 %v285, %v302
      %v325 = vmul.f32 %v286, %v302
      %v326 = vmul.f32 %v287, %v302
      %v327 = vmul.f32 %v288, %v302
      %v328 = vmul.f32 %v289, %v302
      %v329 = vmul.f32 %v290, %v302
      %v330 = vmul.f32 %v291, %v302
      %v331 = vmul.f32 %v292, %v302
      %v332 = vmul.f32 %v293, %v302
      %v333 = vmul.f32 %v294, %v302
      %v334 = vmul.f32 %v295, %v302
      %v335 = vmul.f32 %v296, %v302
      %v336 = vld [vmem:[%s223] sm:$0x1]
      %v338 = vlaneseq
      %v339 = vshrl.u32 %v338, 7
      %v340 = vsub.s32 0, %v339
      %v341 = vrot.slane %v336, %v340
      %v343 = vadd.f32 %v304, %v341
      %v344 = vadd.f32 %v305, %v341
      %v345 = vadd.f32 %v306, %v341
      %v346 = vadd.f32 %v307, %v341
      %v347 = vadd.f32 %v308, %v341
      %v348 = vadd.f32 %v309, %v341
      %v349 = vadd.f32 %v310, %v341
      %v350 = vadd.f32 %v311, %v341
      %v351 = vadd.f32 %v312, %v341
      %v352 = vadd.f32 %v313, %v341
      %v353 = vadd.f32 %v314, %v341
      %v354 = vadd.f32 %v315, %v341
      %v355 = vadd.f32 %v316, %v341
      %v356 = vadd.f32 %v317, %v341
      %v357 = vadd.f32 %v318, %v341
      %v358 = vadd.f32 %v319, %v341
      %v359 = vadd.f32 %v320, %v341
      %v360 = vadd.f32 %v321, %v341
      %v361 = vadd.f32 %v322, %v341
      %v362 = vadd.f32 %v323, %v341
      %v363 = vadd.f32 %v324, %v341
      %v364 = vadd.f32 %v325, %v341
      %v365 = vadd.f32 %v326, %v341
      %v366 = vadd.f32 %v327, %v341
      %v367 = vadd.f32 %v328, %v341
      %v368 = vadd.f32 %v329, %v341
      %v369 = vadd.f32 %v330, %v341
      %v370 = vadd.f32 %v331, %v341
      %v371 = vadd.f32 %v332, %v341
      %v372 = vadd.f32 %v333, %v341
      %v373 = vadd.f32 %v334, %v341
      %v374 = vadd.f32 %v335, %v341
      %v375 = vmul.f32 %v343, 0.1
      %v376 = vmul.f32 %v344, 0.1
      %v377 = vmul.f32 %v345, 0.1
      %v378 = vmul.f32 %v346, 0.1
      %v379 = vmul.f32 %v347, 0.1
      %v380 = vmul.f32 %v348, 0.1
      %v381 = vmul.f32 %v349, 0.1
      %v382 = vmul.f32 %v350, 0.1
      %v383 = vmul.f32 %v351, 0.1
      %v384 = vmul.f32 %v352, 0.1
      %v385 = vmul.f32 %v353, 0.1
      %v386 = vmul.f32 %v354, 0.1
      %v387 = vmul.f32 %v355, 0.1
      %v388 = vmul.f32 %v356, 0.1
      %v389 = vmul.f32 %v357, 0.1
      %v390 = vmul.f32 %v358, 0.1
      %v391 = vmul.f32 %v359, 0.1
      %v392 = vmul.f32 %v360, 0.1
      %v393 = vmul.f32 %v361, 0.1
      %v394 = vmul.f32 %v362, 0.1
      %v395 = vmul.f32 %v363, 0.1
      %v396 = vmul.f32 %v364, 0.1
      %v397 = vmul.f32 %v365, 0.1
      %v398 = vmul.f32 %v366, 0.1
      %v399 = vmul.f32 %v367, 0.1
      %v400 = vmul.f32 %v368, 0.1
      %v401 = vmul.f32 %v369, 0.1
      %v402 = vmul.f32 %v370, 0.1
      %v403 = vmul.f32 %v371, 0.1
      %v404 = vmul.f32 %v372, 0.1
      %v405 = vmul.f32 %v373, 0.1
      %v406 = vmul.f32 %v374, 0.1
      %v407 = vmax.f32 %v343, %v375
      %v408 = vmax.f32 %v344, %v376
      %v409 = vmax.f32 %v345, %v377
      %v410 = vmax.f32 %v346, %v378
      %v411 = vmax.f32 %v347, %v379
      %v412 = vmax.f32 %v348, %v380
      %v413 = vmax.f32 %v349, %v381
      %v414 = vmax.f32 %v350, %v382
      %v415 = vmax.f32 %v351, %v383
      %v416 = vmax.f32 %v352, %v384
      %v417 = vmax.f32 %v353, %v385
      %v418 = vmax.f32 %v354, %v386
      %v419 = vmax.f32 %v355, %v387
      %v420 = vmax.f32 %v356, %v388
      %v421 = vmax.f32 %v357, %v389
      %v422 = vmax.f32 %v358, %v390
      %v423 = vmax.f32 %v359, %v391
      %v424 = vmax.f32 %v360, %v392
      %v425 = vmax.f32 %v361, %v393
      %v426 = vmax.f32 %v362, %v394
      %v427 = vmax.f32 %v363, %v395
      %v428 = vmax.f32 %v364, %v396
      %v429 = vmax.f32 %v365, %v397
      %v430 = vmax.f32 %v366, %v398
      %v431 = vmax.f32 %v367, %v399
      %v432 = vmax.f32 %v368, %v400
      %v433 = vmax.f32 %v369, %v401
      %v434 = vmax.f32 %v370, %v402
      %v435 = vmax.f32 %v371, %v403
      %v436 = vmax.f32 %v372, %v404
      %v437 = vmax.f32 %v373, %v405
      %v438 = vmax.f32 %v374, %v406
      %v439 = vpack.c.bf16 %v408, %v407
      %v440 = vpack.c.bf16 %v410, %v409
      %v441 = vpack.c.bf16 %v412, %v411
      %v442 = vpack.c.bf16 %v414, %v413
      %v443 = vpack.c.bf16 %v416, %v415
      %v444 = vpack.c.bf16 %v418, %v417
      %v445 = vpack.c.bf16 %v420, %v419
      %v446 = vpack.c.bf16 %v422, %v421
      %v447 = vpack.c.bf16 %v424, %v423
      %v448 = vpack.c.bf16 %v426, %v425
      %v449 = vpack.c.bf16 %v428, %v427
      %v450 = vpack.c.bf16 %v430, %v429
      %v451 = vpack.c.bf16 %v432, %v431
      %v452 = vpack.c.bf16 %v434, %v433
      %v453 = vpack.c.bf16 %v436, %v435
      %v454 = vpack.c.bf16 %v438, %v437
      %v471 = vunpack.c.l.b16 %v439
      %v472 = vunpack.c.h.b16 %v439
      %v473 = vunpack.c.l.b16 %v440
      %v474 = vunpack.c.h.b16 %v440
      %v475 = vunpack.c.l.b16 %v441
      %v476 = vunpack.c.h.b16 %v441
      %v477 = vunpack.c.l.b16 %v442
      %v478 = vunpack.c.h.b16 %v442
      %v479 = vunpack.c.l.b16 %v443
      %v480 = vunpack.c.h.b16 %v443
      %v481 = vunpack.c.l.b16 %v444
      %v482 = vunpack.c.h.b16 %v444
      %v483 = vunpack.c.l.b16 %v445
      %v484 = vunpack.c.h.b16 %v445
      %v485 = vunpack.c.l.b16 %v446
      %v486 = vunpack.c.h.b16 %v446
      %v487 = vunpack.c.l.b16 %v447
      %v488 = vunpack.c.h.b16 %v447
      %v489 = vunpack.c.l.b16 %v448
      %v490 = vunpack.c.h.b16 %v448
      %v491 = vunpack.c.l.b16 %v449
      %v492 = vunpack.c.h.b16 %v449
      %v493 = vunpack.c.l.b16 %v450
      %v494 = vunpack.c.h.b16 %v450
      %v495 = vunpack.c.l.b16 %v451
      %v496 = vunpack.c.h.b16 %v451
      %v497 = vunpack.c.l.b16 %v452
      %v498 = vunpack.c.h.b16 %v452
      %v499 = vunpack.c.l.b16 %v453
      %v500 = vunpack.c.h.b16 %v453
      %v501 = vunpack.c.l.b16 %v454
      %v502 = vunpack.c.h.b16 %v454
      %v503 = vpack.c.b16 %v471, %v471
      %v504 = vpack.c.b16 %v472, %v472
      %v505 = vpack.c.b16 %v473, %v473
      %v506 = vpack.c.b16 %v474, %v474
      %v507 = vpack.c.b16 %v475, %v475
      %v508 = vpack.c.b16 %v476, %v476
      %v509 = vpack.c.b16 %v477, %v477
      %v510 = vpack.c.b16 %v478, %v478
      %v511 = vpack.c.b16 %v479, %v479
      %v512 = vpack.c.b16 %v480, %v480
      %v513 = vpack.c.b16 %v481, %v481
      %v514 = vpack.c.b16 %v482, %v482
      %v515 = vpack.c.b16 %v483, %v483
      %v516 = vpack.c.b16 %v484, %v484
      %v517 = vpack.c.b16 %v485, %v485
      %v518 = vpack.c.b16 %v486, %v486
      %v519 = vpack.c.b16 %v487, %v487
      %v520 = vpack.c.b16 %v488, %v488
      %v521 = vpack.c.b16 %v489, %v489
      %v522 = vpack.c.b16 %v490, %v490
      %v523 = vpack.c.b16 %v491, %v491
      %v524 = vpack.c.b16 %v492, %v492
      %v525 = vpack.c.b16 %v493, %v493
      %v526 = vpack.c.b16 %v494, %v494
      %v527 = vpack.c.b16 %v495, %v495
      %v528 = vpack.c.b16 %v496, %v496
      %v529 = vpack.c.b16 %v497, %v497
      %v530 = vpack.c.b16 %v498, %v498
      %v531 = vpack.c.b16 %v499, %v499
      %v532 = vpack.c.b16 %v500, %v500
      %v533 = vpack.c.b16 %v501, %v501
      %v534 = vpack.c.b16 %v502, %v502
      %567 = vst [vmem:[%s231] sm:$0xf] %v503
      %568 = vst [vmem:[%s231 + $0x4] sm:$0xf] %v504
      %569 = vst [vmem:[%s231 + $0x8] sm:$0xf] %v505
      %570 = vst [vmem:[%s231 + $0xc] sm:$0xf] %v506
      %571 = vst [vmem:[%s231 + $0x10] sm:$0xf] %v507
      %572 = vst [vmem:[%s231 + $0x14] sm:$0xf] %v508
      %573 = vst [vmem:[%s231 + $0x18] sm:$0xf] %v509
      %574 = vst [vmem:[%s231 + $0x1c] sm:$0xf] %v510
      %575 = vst [vmem:[%s231 + $0x20] sm:$0xf] %v511
      %576 = vst [vmem:[%s231 + $0x24] sm:$0xf] %v512
      %577 = vst [vmem:[%s231 + $0x28] sm:$0xf] %v513
      %578 = vst [vmem:[%s231 + $0x2c] sm:$0xf] %v514
      %579 = vst [vmem:[%s231 + $0x30] sm:$0xf] %v515
      %580 = vst [vmem:[%s231 + $0x34] sm:$0xf] %v516
      %581 = vst [vmem:[%s231 + $0x38] sm:$0xf] %v517
      %582 = vst [vmem:[%s231 + $0x3c] sm:$0xf] %v518
      %583 = vst [vmem:[%s231 + $0x40] sm:$0xf] %v519
      %584 = vst [vmem:[%s231 + $0x44] sm:$0xf] %v520
      %585 = vst [vmem:[%s231 + $0x48] sm:$0xf] %v521
      %586 = vst [vmem:[%s231 + $0x4c] sm:$0xf] %v522
      %587 = vst [vmem:[%s231 + $0x50] sm:$0xf] %v523
      %588 = vst [vmem:[%s231 + $0x54] sm:$0xf] %v524
      %589 = vst [vmem:[%s231 + $0x58] sm:$0xf] %v525
      %590 = vst [vmem:[%s231 + $0x5c] sm:$0xf] %v526
      %591 = vst [vmem:[%s231 + $0x60] sm:$0xf] %v527
      %592 = vst [vmem:[%s231 + $0x64] sm:$0xf] %v528
      %593 = vst [vmem:[%s231 + $0x68] sm:$0xf] %v529
      %594 = vst [vmem:[%s231 + $0x6c] sm:$0xf] %v530
      %595 = vst [vmem:[%s231 + $0x70] sm:$0xf] %v531
      %596 = vst [vmem:[%s231 + $0x74] sm:$0xf] %v532
      %597 = vst [vmem:[%s231 + $0x78] sm:$0xf] %v533
      %598 = vst [vmem:[%s231 + $0x7c] sm:$0xf] %v534
      %s599 = smul.u32 32, %s19
      %p600 = scmp.lt.s32.totalorder %s599, 63
      %s601 = scalar_select %p600, %s599, 63
      %p602 = scmp.lt.s32.totalorder %s18, 0
      %s603 = scalar_select %p602, %s18, 0
      %s604 = sadd.s32 %s603, %s601
      %s605 = smul.addr %s604, 4
      %s606 = scalar_lea.vmem %s3, %s605
      // Predicated region
      $region33: #{_lambda_.9} parent=31 // pred_check
        %p607 = pneg %p126
      $region34: #{_lambda_.9} parent=31 // pred_check_branch
        %609 = sbr.rel (%p607) target = $region36
      $region35: #{_lambda_.9} parent=31 // pred_region
        %s610 = smul.u32 32, %s19
      $region36: #{_lambda_.9} parent=31 // pred_fallthru
        _
    $region32: #{_lambda_.9} parent=5 // pred_fallthru
      _
    %p611 = scmp.le.s32.totalorder 2, %s9
    // Predicated region
    $region37: #{_lambda_.9} parent=5 // pred_check
      %p612 = pneg %p611
    $region38: #{_lambda_.9} parent=5 // pred_check_branch
      %614 = sbr.rel (%p612) target = $region40
    $region39: #{_lambda_.9} parent=5 // pred_region
      %s615 = ssub.s32 %s9, 2
      // Predicated region
      $region41: #{_lambda_.9} parent=39 // pred_check
        %p616 = pneg %p132
      $region42: #{_lambda_.9} parent=39 // pred_check_branch
        %618 = sbr.rel (%p616) target = $region44
      $region43: #{_lambda_.9} parent=39 // pred_region
        %s619 = smul.u32 32, %s21
        %p620 = scmp.lt.s32.totalorder %s619, 63
        %s621 = scalar_select %p620, %s619, 63
        %p622 = scmp.lt.s32.totalorder %s20, 0
        %s623 = scalar_select %p622, %s20, 0
        %s624 = sadd.s32 %s623, %s621
        %s625 = smul.addr %s624, 4
        %s626 = scalar_lea.vmem %s3, %s625
      $region44: #{_lambda_.9} parent=39 // pred_fallthru
        _
    $region40: #{_lambda_.9} parent=5 // pred_fallthru
      _
  $region6: #{_lambda_.9} parent=0 // loop_footer
    %s13 = sadd.s32 1, %s9
  $region7: #{_lambda_.9} parent=0 // loop_footer_branch
    %8 = sbr.rel target = $region3
  $region8: #{_lambda_.9} parent=0 // loop_exit
    _

// kernel: _lambda_.11
$region0: #{_lambda_.11}
  #allocation0 [shape = 'u32[]', space=smem, size = 0x4, offset = 0x4, fixed_abs, tag = 'smem constant byte address 0x4 - core index']
  #allocation1 [shape = 'u32[144,128]{1,0:T(1,128)}', space=vmem, size = 0x12000, scoped, tag = 'internal scratch']
  %s0 = inlined_call_operand.vmem [shape: bf16[512,128], index: 0, kind: input, shape index: {}]
  %s1 = inlined_call_operand.vmem [shape: f32[1,128], index: 1, kind: input, shape index: {}]
  %s2 = inlined_call_operand.vmem [shape: f32[1,128], index: 2, kind: input, shape index: {}]
  %s3 = inlined_call_operand.vmem [shape: bf16[512,128], index: 3, kind: input, shape index: {}]
  %s4 = inlined_call_operand.vmem [shape: bf16[512,128], index: 4, kind: output, shape index: {}]
  %s5 = sld [smem:[#allocation0]]
  $region49: #{_lambda_.11} parent=0
    _
  %s7 = ssub.s32 1, %s5
  %s8 = scalar_select 0, %s7, %s5
  loop: start=0, step=1, limit=4
  $region2: #{_lambda_.11} parent=0 // loop_pre_header
    _
  $region3: #{_lambda_.11} parent=0 // loop_header
    %s10 = sphi 0, %s14
    %p11 = scmp.ge.s32.totalorder %s10, 4
    %s17 = sphi 0, %s29
    %s18 = sphi 0, %s25
    %s19 = sphi 0, %s17
    %s20 = sphi 0, %s18
    %s21 = sphi 0, %s19
    %s22 = sphi 0, %s20
    %s34 = sphi 0, %s36
    %s37 = sphi 0, %s34
    %s38 = sphi 0, %s37
    %s54 = sphi 0, %s38
    %s60 = sphi 0, %s62
    %s63 = sphi 0, %s60
    %s64 = sphi 0, %s63
    %s80 = sphi 0, %s64
    %s86 = sphi 0, %s88
    %s89 = sphi 0, %s86
    %s90 = sphi 0, %s89
    %s106 = sphi 0, %s90
    %s114 = sphi 0, %s116
    %s117 = sphi 0, %s114
    %s118 = sphi 0, %s117
    %s134 = sphi 0, %s118
    %s142 = sphi 0, %s144
    %s145 = sphi 0, %s142
    %s146 = sphi 0, %s145
    %s162 = sphi 0, %s146
  $region4: #{_lambda_.11} parent=0 // loop_header_branch
    %13 = sbr.rel (%p11) target = $region8
  $region5: #{_lambda_.11} parent=0 // loop_body
    %s15 = ssub.s32 %s10, 1
    %s16 = ssub.s32 %s10, 2
    %s23 = sadd.s32 1, %s18
    %p24 = scmp.ge.s32.totalorder %s23, 2
    %s25 = scalar_select %p24, 0, %s23
    %s26 = sadd.s32 1, %s17
    %s27 = scalar_select %p24, %s26, %s17
    %p28 = scmp.ge.s32.totalorder %s27, 1
    %s29 = scalar_select %p28, 0, %s27
    %s30 = ssub.s32 %s18, %s25
    %s31 = ssub.s32 %s17, %s29
    %s32 = sor.u32 %s30, %s31
    %p33 = scmp.eq.s32.totalorder %s32, 0
    %s35 = sadd.s32 %s34, 1
    %s36 = scalar_select %p33, %s34, %s35
    %p39 = pneg %p33
    %p40 = scmp.eq.s32.totalorder %s10, 1
    %p41 = por %p39, %p40
    %p42 = scmp.ne.s32.totalorder %s34, %s37
    %p43 = scmp.eq.s32.totalorder %s10, 0
    %p44 = por %p42, %p43
    %p45 = scmp.ne.s32.totalorder %s34, %s37
    %p46 = scmp.eq.s32.totalorder %s15, 1
    %p47 = por %p45, %p46
    %p48 = scmp.ne.s32.totalorder %s37, %s38
    %p49 = scmp.eq.s32.totalorder %s15, 0
    %p50 = por %p48, %p49
    %p51 = scmp.ne.s32.totalorder %s37, %s38
    %p52 = scmp.eq.s32.totalorder %s16, 1
    %p53 = por %p51, %p52
    %p55 = scmp.ne.s32.totalorder %s38, %s54
    %p56 = scmp.eq.s32.totalorder %s16, 0
    %p57 = por %p55, %p56
    %s58 = ssub.s32 %s17, %s29
    %p59 = scmp.eq.s32.totalorder %s58, 0
    %s61 = sadd.s32 %s60, 1
    %s62 = scalar_select %p59, %s60, %s61
    %p65 = pneg %p59
    %p66 = scmp.eq.s32.totalorder %s10, 1
    %p67 = por %p65, %p66
    %p68 = scmp.ne.s32.totalorder %s60, %s63
    %p69 = scmp.eq.s32.totalorder %s10, 0
    %p70 = por %p68, %p69
    %p71 = scmp.ne.s32.totalorder %s60, %s63
    %p72 = scmp.eq.s32.totalorder %s15, 1
    %p73 = por %p71, %p72
    %p74 = scmp.ne.s32.totalorder %s63, %s64
    %p75 = scmp.eq.s32.totalorder %s15, 0
    %p76 = por %p74, %p75
    %p77 = scmp.ne.s32.totalorder %s63, %s64
    %p78 = scmp.eq.s32.totalorder %s16, 1
    %p79 = por %p77, %p78
    %p81 = scmp.ne.s32.totalorder %s64, %s80
    %p82 = scmp.eq.s32.totalorder %s16, 0
    %p83 = por %p81, %p82
    %s84 = ssub.s32 %s17, %s29
    %p85 = scmp.eq.s32.totalorder %s84, 0
    %s87 = sadd.s32 %s86, 1
    %s88 = scalar_select %p85, %s86, %s87
    %p91 = pneg %p85
    %p92 = scmp.eq.s32.totalorder %s10, 1
    %p93 = por %p91, %p92
    %p94 = scmp.ne.s32.totalorder %s86, %s89
    %p95 = scmp.eq.s32.totalorder %s10, 0
    %p96 = por %p94, %p95
    %p97 = scmp.ne.s32.totalorder %s86, %s89
    %p98 = scmp.eq.s32.totalorder %s15, 1
    %p99 = por %p97, %p98
    %p100 = scmp.ne.s32.totalorder %s89, %s90
    %p101 = scmp.eq.s32.totalorder %s15, 0
    %p102 = por %p100, %p101
    %p103 = scmp.ne.s32.totalorder %s89, %s90
    %p104 = scmp.eq.s32.totalorder %s16, 1
    %p105 = por %p103, %p104
    %p107 = scmp.ne.s32.totalorder %s90, %s106
    %p108 = scmp.eq.s32.totalorder %s16, 0
    %p109 = por %p107, %p108
    %s110 = ssub.s32 %s18, %s25
    %s111 = ssub.s32 %s17, %s29
    %s112 = sor.u32 %s110, %s111
    %p113 = scmp.eq.s32.totalorder %s112, 0
    %s115 = sadd.s32 %s114, 1
    %s116 = scalar_select %p113, %s114, %s115
    %p119 = pneg %p113
    %p120 = scmp.eq.s32.totalorder %s10, 1
    %p121 = por %p119, %p120
    %p122 = scmp.ne.s32.totalorder %s114, %s117
    %p123 = scmp.eq.s32.totalorder %s10, 0
    %p124 = por %p122, %p123
    %p125 = scmp.ne.s32.totalorder %s114, %s117
    %p126 = scmp.eq.s32.totalorder %s15, 1
    %p127 = por %p125, %p126
    %p128 = scmp.ne.s32.totalorder %s117, %s118
    %p129 = scmp.eq.s32.totalorder %s15, 0
    %p130 = por %p128, %p129
    %p131 = scmp.ne.s32.totalorder %s117, %s118
    %p132 = scmp.eq.s32.totalorder %s16, 1
    %p133 = por %p131, %p132
    %p135 = scmp.ne.s32.totalorder %s118, %s134
    %p136 = scmp.eq.s32.totalorder %s16, 0
    %p137 = por %p135, %p136
    %s138 = ssub.s32 %s18, %s25
    %s139 = ssub.s32 %s17, %s29
    %s140 = sor.u32 %s138, %s139
    %p141 = scmp.eq.s32.totalorder %s140, 0
    %s143 = sadd.s32 %s142, 1
    %s144 = scalar_select %p141, %s142, %s143
    %p147 = pneg %p141
    %p148 = scmp.eq.s32.totalorder %s10, 1
    %p149 = por %p147, %p148
    %p150 = scmp.ne.s32.totalorder %s142, %s145
    %p151 = scmp.eq.s32.totalorder %s10, 0
    %p152 = por %p150, %p151
    %p153 = scmp.ne.s32.totalorder %s142, %s145
    %p154 = scmp.eq.s32.totalorder %s15, 1
    %p155 = por %p153, %p154
    %p156 = scmp.ne.s32.totalorder %s145, %s146
    %p157 = scmp.eq.s32.totalorder %s15, 0
    %p158 = por %p156, %p157
    %p159 = scmp.ne.s32.totalorder %s145, %s146
    %p160 = scmp.eq.s32.totalorder %s16, 1
    %p161 = por %p159, %p160
    %p163 = scmp.ne.s32.totalorder %s146, %s162
    %p164 = scmp.eq.s32.totalorder %s16, 0
    %p165 = por %p163, %p164
    %p166 = scmp.le.s32.totalorder 1, %s10
    %p167 = scmp.lt.s32.totalorder %s10, 3
    %p168 = pnand %p166, %p167
    %p169 = pneg %p168
    // Predicated region
    $region9: #{_lambda_.11} parent=5 // pred_check
      _
    $region10: #{_lambda_.11} parent=5 // pred_check_branch
      %171 = sbr.rel (%p168) target = $region12
    $region11: #{_lambda_.11} parent=5 // pred_region
      %s172 = ssub.s32 %s10, 1
      // Predicated region
      $region13: #{_lambda_.11} parent=11 // pred_check
        %p173 = pneg %p76
      $region14: #{_lambda_.11} parent=11 // pred_check_branch
        %175 = sbr.rel (%p173) target = $region16
      $region15: #{_lambda_.11} parent=11 // pred_region
        %p176 = scmp.lt.s32.totalorder %s19, 0
        %s177 = scalar_select %p176, %s19, 0
        %s178 = scalar_lea.vmem %s1, %s177
      $region16: #{_lambda_.11} parent=11 // pred_fallthru
        _
      // Predicated region
      $region17: #{_lambda_.11} parent=11 // pred_check
        %p179 = pneg %p102
      $region18: #{_lambda_.11} parent=11 // pred_check_branch
        %181 = sbr.rel (%p179) target = $region20
      $region19: #{_lambda_.11} parent=11 // pred_region
        %p182 = scmp.lt.s32.totalorder %s19, 0
        %s183 = scalar_select %p182, %s19, 0
        %s184 = scalar_lea.vmem %s2, %s183
      $region20: #{_lambda_.11} parent=11 // pred_fallthru
        _
    $region12: #{_lambda_.11} parent=5 // pred_fallthru
      _
    %p185 = scmp.lt.s32.totalorder %s10, 2
    // Predicated region
    $region21: #{_lambda_.11} parent=5 // pred_check
      %p186 = pneg %p185
    $region22: #{_lambda_.11} parent=5 // pred_check_branch
      %188 = sbr.rel (%p186) target = $region24
    $region23: #{_lambda_.11} parent=5 // pred_region
      // Predicated region
      $region25: #{_lambda_.11} parent=23 // pred_check
        %p189 = pneg %p44
      $region26: #{_lambda_.11} parent=23 // pred_check_branch
        %191 = sbr.rel (%p189) target = $region28
      $region27: #{_lambda_.11} parent=23 // pred_region
        %s192 = smul.u32 32, %s18
        %p193 = scmp.lt.s32.totalorder %s192, 63
        %s194 = scalar_select %p193, %s192, 63
        %p195 = scmp.lt.s32.totalorder %s17, 0
        %s196 = scalar_select %p195, %s17, 0
        %s197 = sadd.s32 %s196, %s194
        %s198 = smul.addr %s197, 4
        %s199 = scalar_lea.vmem %s0, %s198
        %s200 = smul.u32 32, %s18
      $region28: #{_lambda_.11} parent=23 // pred_fallthru
        _
      // Predicated region
      $region29: #{_lambda_.11} parent=23 // pred_check
        %p201 = pneg %p124
      $region30: #{_lambda_.11} parent=23 // pred_check_branch
        %203 = sbr.rel (%p201) target = $region32
      $region31: #{_lambda_.11} parent=23 // pred_region
        %s204 = smul.u32 32, %s18
        %p205 = scmp.lt.s32.totalorder %s204, 63
        %s206 = scalar_select %p205, %s204, 63
        %p207 = scmp.lt.s32.totalorder %s17, 0
        %s208 = scalar_select %p207, %s17, 0
        %s209 = sadd.s32 %s208, %s206
        %s210 = smul.addr %s209, 4
        %s211 = scalar_lea.vmem %s3, %s210
        %s212 = smul.u32 32, %s18
      $region32: #{_lambda_.11} parent=23 // pred_fallthru
        _
    $region24: #{_lambda_.11} parent=5 // pred_fallthru
      _
    %p213 = scmp.le.s32.totalorder 1, %s10
    %p214 = scmp.lt.s32.totalorder %s10, 3
    %p215 = pnand %p213, %p214
    %p216 = pneg %p215
    // Predicated region
    $region33: #{_lambda_.11} parent=5 // pred_check
      _
    $region34: #{_lambda_.11} parent=5 // pred_check_branch
      %218 = sbr.rel (%p215) target = $region36
    $region35: #{_lambda_.11} parent=5 // pred_region
      %s219 = ssub.s32 %s10, 1
      %s220 = smul.u32 32, %s20
      %p221 = scmp.lt.s32.totalorder %s220, 63
      %s222 = scalar_select %p221, %s220, 63
      %p223 = scmp.lt.s32.totalorder %s19, 0
      %s224 = scalar_select %p223, %s19, 0
      %s225 = sadd.s32 %s224, %s222
      %s226 = smul.addr %s225, 4
      %s227 = scalar_lea.vmem %s0, %s226
      %p228 = pneg %p50
      %p229 = pneg %p47
      %p230 = scmp.lt.s32.totalorder %s19, 0
      %s231 = scalar_select %p230, %s19, 0
      %s232 = scalar_lea.vmem %s1, %s231
      %p233 = pneg %p76
      %p234 = pneg %p73
      %p235 = scmp.lt.s32.totalorder %s19, 0
      %s236 = scalar_select %p235, %s19, 0
      %s237 = scalar_lea.vmem %s2, %s236
      %p238 = pneg %p102
      %p239 = pneg %p99
      %s240 = smul.u32 32, %s20
      %p241 = scmp.lt.s32.totalorder %s240, 63
      %s242 = scalar_select %p241, %s240, 63
      %p243 = scmp.lt.s32.totalorder %s19, 0
      %s244 = scalar_select %p243, %s19, 0
      %s245 = sadd.s32 %s244, %s242
      %s246 = smul.addr %s245, 4
      %s247 = scalar_lea.vmem %s3, %s246
      %p248 = pneg %p130
      %p249 = pneg %p127
      %p250 = pneg %p158
      %p251 = pneg %p155
      %s252 = smul.u32 32, %s20
      %p253 = scmp.lt.s32.totalorder %s252, 63
      %s254 = scalar_select %p253, %s252, 63
      %p255 = scmp.lt.s32.totalorder %s19, 0
      %s256 = scalar_select %p255, %s19, 0
      %s257 = sadd.s32 %s256, %s254
      %s258 = smul.addr %s257, 4
      %s259 = scalar_lea.vmem %s4, %s258
      %s260 = smul.u32 32, %s20
      %p261 = scmp.lt.s32.totalorder %s260, 63
      %s262 = scalar_select %p261, %s260, 63
      %p263 = scmp.lt.s32.totalorder %s19, 0
      %s264 = scalar_select %p263, %s19, 0
      %s265 = sadd.s32 %s264, %s262
      %s266 = smul.addr %s265, 4
      %s267 = scalar_lea.vmem %s0, %s266
      %s268 = smul.u32 32, %s20
      %p269 = scmp.lt.s32.totalorder %s19, 0
      %s270 = scalar_select %p269, %s19, 0
      %s271 = scalar_lea.vmem %s1, %s270
      %p272 = scmp.lt.s32.totalorder %s19, 0
      %s273 = scalar_select %p272, %s19, 0
      %s274 = scalar_lea.vmem %s2, %s273
      %s275 = smul.u32 32, %s20
      %p276 = scmp.lt.s32.totalorder %s275, 63
      %s277 = scalar_select %p276, %s275, 63
      %p278 = scmp.lt.s32.totalorder %s19, 0
      %s279 = scalar_select %p278, %s19, 0
      %s280 = sadd.s32 %s279, %s277
      %s281 = smul.addr %s280, 4
      %s282 = scalar_lea.vmem %s3, %s281
      %s283 = smul.u32 32, %s20
      %s284 = smul.u32 32, %s20
      %p285 = scmp.lt.s32.totalorder %s284, 63
      %s286 = scalar_select %p285, %s284, 63
      %p287 = scmp.lt.s32.totalorder %s19, 0
      %s288 = scalar_select %p287, %s19, 0
      %s289 = sadd.s32 %s288, %s286
      %s290 = smul.addr %s289, 4
      %s291 = scalar_lea.vmem %s4, %s290
      %s292 = smul.u32 32, %s20
      %v293 = vld [vmem:[%s267] sm:$0xf]
      %v294 = vld [vmem:[%s267 + $0x4] sm:$0xf]
      %v295 = vld [vmem:[%s267 + $0x8] sm:$0xf]
      %v296 = vld [vmem:[%s267 + $0xc] sm:$0xf]
      %v297 = vld [vmem:[%s267 + $0x10] sm:$0xf]
      %v298 = vld [vmem:[%s267 + $0x14] sm:$0xf]
      %v299 = vld [vmem:[%s267 + $0x18] sm:$0xf]
      %v300 = vld [vmem:[%s267 + $0x1c] sm:$0xf]
      %v301 = vld [vmem:[%s267 + $0x20] sm:$0xf]
      %v302 = vld [vmem:[%s267 + $0x24] sm:$0xf]
      %v303 = vld [vmem:[%s267 + $0x28] sm:$0xf]
      %v304 = vld [vmem:[%s267 + $0x2c] sm:$0xf]
      %v305 = vld [vmem:[%s267 + $0x30] sm:$0xf]
      %v306 = vld [vmem:[%s267 + $0x34] sm:$0xf]
      %v307 = vld [vmem:[%s267 + $0x38] sm:$0xf]
      %v308 = vld [vmem:[%s267 + $0x3c] sm:$0xf]
      %v309 = vld [vmem:[%s267 + $0x40] sm:$0xf]
      %v310 = vld [vmem:[%s267 + $0x44] sm:$0xf]
      %v311 = vld [vmem:[%s267 + $0x48] sm:$0xf]
      %v312 = vld [vmem:[%s267 + $0x4c] sm:$0xf]
      %v313 = vld [vmem:[%s267 + $0x50] sm:$0xf]
      %v314 = vld [vmem:[%s267 + $0x54] sm:$0xf]
      %v315 = vld [vmem:[%s267 + $0x58] sm:$0xf]
      %v316 = vld [vmem:[%s267 + $0x5c] sm:$0xf]
      %v317 = vld [vmem:[%s267 + $0x60] sm:$0xf]
      %v318 = vld [vmem:[%s267 + $0x64] sm:$0xf]
      %v319 = vld [vmem:[%s267 + $0x68] sm:$0xf]
      %v320 = vld [vmem:[%s267 + $0x6c] sm:$0xf]
      %v321 = vld [vmem:[%s267 + $0x70] sm:$0xf]
      %v322 = vld [vmem:[%s267 + $0x74] sm:$0xf]
      %v323 = vld [vmem:[%s267 + $0x78] sm:$0xf]
      %v324 = vld [vmem:[%s267 + $0x7c] sm:$0xf]
      %v325 = vunpack.c.l.bf16 %v293
      %v326 = vunpack.c.l.bf16 %v294
      %v327 = vunpack.c.l.bf16 %v295
      %v328 = vunpack.c.l.bf16 %v296
      %v329 = vunpack.c.l.bf16 %v297
      %v330 = vunpack.c.l.bf16 %v298
      %v331 = vunpack.c.l.bf16 %v299
      %v332 = vunpack.c.l.bf16 %v300
      %v333 = vunpack.c.l.bf16 %v301
      %v334 = vunpack.c.l.bf16 %v302
      %v335 = vunpack.c.l.bf16 %v303
      %v336 = vunpack.c.l.bf16 %v304
      %v337 = vunpack.c.l.bf16 %v305
      %v338 = vunpack.c.l.bf16 %v306
      %v339 = vunpack.c.l.bf16 %v307
      %v340 = vunpack.c.l.bf16 %v308
      %v341 = vunpack.c.l.bf16 %v309
      %v342 = vunpack.c.l.bf16 %v310
      %v343 = vunpack.c.l.bf16 %v311
      %v344 = vunpack.c.l.bf16 %v312
      %v345 = vunpack.c.l.bf16 %v313
      %v346 = vunpack.c.l.bf16 %v314
      %v347 = vunpack.c.l.bf16 %v315
      %v348 = vunpack.c.l.bf16 %v316
      %v349 = vunpack.c.l.bf16 %v317
      %v350 = vunpack.c.l.bf16 %v318
      %v351 = vunpack.c.l.bf16 %v319
      %v352 = vunpack.c.l.bf16 %v320
      %v353 = vunpack.c.l.bf16 %v321
      %v354 = vunpack.c.l.bf16 %v322
      %v355 = vunpack.c.l.bf16 %v323
      %v356 = vunpack.c.l.bf16 %v324
      %v357 = vld [vmem:[%s271] sm:$0x1]
      %v359 = vlaneseq
      %v360 = vshrl.u32 %v359, 7
      %v361 = vsub.s32 0, %v360
      %v362 = vrot.slane %v357, %v361
      %v364 = vmul.f32 %v325, %v362
      %v365 = vmul.f32 %v326, %v362
      %v366 = vmul.f32 %v327, %v362
      %v367 = vmul.f32 %v328, %v362
      %v368 = vmul.f32 %v329, %v362
      %v369 = vmul.f32 %v330, %v362
      %v370 = vmul.f32 %v331, %v362
      %v371 = vmul.f32 %v332, %v362
      %v372 = vmul.f32 %v333, %v362
      %v373 = vmul.f32 %v334, %v362
      %v374 = vmul.f32 %v335, %v362
      %v375 = vmul.f32 %v336, %v362
      %v376 = vmul.f32 %v337, %v362
      %v377 = vmul.f32 %v338, %v362
      %v378 = vmul.f32 %v339, %v362
      %v379 = vmul.f32 %v340, %v362
      %v380 = vmul.f32 %v341, %v362
      %v381 = vmul.f32 %v342, %v362
      %v382 = vmul.f32 %v343, %v362
      %v383 = vmul.f32 %v344, %v362
      %v384 = vmul.f32 %v345, %v362
      %v385 = vmul.f32 %v346, %v362
      %v386 = vmul.f32 %v347, %v362
      %v387 = vmul.f32 %v348, %v362
      %v388 = vmul.f32 %v349, %v362
      %v389 = vmul.f32 %v350, %v362
      %v390 = vmul.f32 %v351, %v362
      %v391 = vmul.f32 %v352, %v362
      %v392 = vmul.f32 %v353, %v362
      %v393 = vmul.f32 %v354, %v362
      %v394 = vmul.f32 %v355, %v362
      %v395 = vmul.f32 %v356, %v362
      %v396 = vld [vmem:[%s274] sm:$0x1]
      %v398 = vlaneseq
      %v399 = vshrl.u32 %v398, 7
      %v400 = vsub.s32 0, %v399
      %v401 = vrot.slane %v396, %v400
      %v403 = vadd.f32 %v364, %v401
      %v404 = vadd.f32 %v365, %v401
      %v405 = vadd.f32 %v366, %v401
      %v406 = vadd.f32 %v367, %v401
      %v407 = vadd.f32 %v368, %v401
      %v408 = vadd.f32 %v369, %v401
      %v409 = vadd.f32 %v370, %v401
      %v410 = vadd.f32 %v371, %v401
      %v411 = vadd.f32 %v372, %v401
      %v412 = vadd.f32 %v373, %v401
      %v413 = vadd.f32 %v374, %v401
      %v414 = vadd.f32 %v375, %v401
      %v415 = vadd.f32 %v376, %v401
      %v416 = vadd.f32 %v377, %v401
      %v417 = vadd.f32 %v378, %v401
      %v418 = vadd.f32 %v379, %v401
      %v419 = vadd.f32 %v380, %v401
      %v420 = vadd.f32 %v381, %v401
      %v421 = vadd.f32 %v382, %v401
      %v422 = vadd.f32 %v383, %v401
      %v423 = vadd.f32 %v384, %v401
      %v424 = vadd.f32 %v385, %v401
      %v425 = vadd.f32 %v386, %v401
      %v426 = vadd.f32 %v387, %v401
      %v427 = vadd.f32 %v388, %v401
      %v428 = vadd.f32 %v389, %v401
      %v429 = vadd.f32 %v390, %v401
      %v430 = vadd.f32 %v391, %v401
      %v431 = vadd.f32 %v392, %v401
      %v432 = vadd.f32 %v393, %v401
      %v433 = vadd.f32 %v394, %v401
      %v434 = vadd.f32 %v395, %v401
      %v435 = vmul.f32 %v403, 0.1
      %v436 = vmul.f32 %v404, 0.1
      %v437 = vmul.f32 %v405, 0.1
      %v438 = vmul.f32 %v406, 0.1
      %v439 = vmul.f32 %v407, 0.1
      %v440 = vmul.f32 %v408, 0.1
      %v441 = vmul.f32 %v409, 0.1
      %v442 = vmul.f32 %v410, 0.1
      %v443 = vmul.f32 %v411, 0.1
      %v444 = vmul.f32 %v412, 0.1
      %v445 = vmul.f32 %v413, 0.1
      %v446 = vmul.f32 %v414, 0.1
      %v447 = vmul.f32 %v415, 0.1
      %v448 = vmul.f32 %v416, 0.1
      %v449 = vmul.f32 %v417, 0.1
      %v450 = vmul.f32 %v418, 0.1
      %v451 = vmul.f32 %v419, 0.1
      %v452 = vmul.f32 %v420, 0.1
      %v453 = vmul.f32 %v421, 0.1
      %v454 = vmul.f32 %v422, 0.1
      %v455 = vmul.f32 %v423, 0.1
      %v456 = vmul.f32 %v424, 0.1
      %v457 = vmul.f32 %v425, 0.1
      %v458 = vmul.f32 %v426, 0.1
      %v459 = vmul.f32 %v427, 0.1
      %v460 = vmul.f32 %v428, 0.1
      %v461 = vmul.f32 %v429, 0.1
      %v462 = vmul.f32 %v430, 0.1
      %v463 = vmul.f32 %v431, 0.1
      %v464 = vmul.f32 %v432, 0.1
      %v465 = vmul.f32 %v433, 0.1
      %v466 = vmul.f32 %v434, 0.1
      %v467 = vmax.f32 %v403, %v435
      %v468 = vmax.f32 %v404, %v436
      %v469 = vmax.f32 %v405, %v437
      %v470 = vmax.f32 %v406, %v438
      %v471 = vmax.f32 %v407, %v439
      %v472 = vmax.f32 %v408, %v440
      %v473 = vmax.f32 %v409, %v441
      %v474 = vmax.f32 %v410, %v442
      %v475 = vmax.f32 %v411, %v443
      %v476 = vmax.f32 %v412, %v444
      %v477 = vmax.f32 %v413, %v445
      %v478 = vmax.f32 %v414, %v446
      %v479 = vmax.f32 %v415, %v447
      %v480 = vmax.f32 %v416, %v448
      %v481 = vmax.f32 %v417, %v449
      %v482 = vmax.f32 %v418, %v450
      %v483 = vmax.f32 %v419, %v451
      %v484 = vmax.f32 %v420, %v452
      %v485 = vmax.f32 %v421, %v453
      %v486 = vmax.f32 %v422, %v454
      %v487 = vmax.f32 %v423, %v455
      %v488 = vmax.f32 %v424, %v456
      %v489 = vmax.f32 %v425, %v457
      %v490 = vmax.f32 %v426, %v458
      %v491 = vmax.f32 %v427, %v459
      %v492 = vmax.f32 %v428, %v460
      %v493 = vmax.f32 %v429, %v461
      %v494 = vmax.f32 %v430, %v462
      %v495 = vmax.f32 %v431, %v463
      %v496 = vmax.f32 %v432, %v464
      %v497 = vmax.f32 %v433, %v465
      %v498 = vmax.f32 %v434, %v466
      %v499 = vld [vmem:[%s282] sm:$0xf]
      %v500 = vld [vmem:[%s282 + $0x4] sm:$0xf]
      %v501 = vld [vmem:[%s282 + $0x8] sm:$0xf]
      %v502 = vld [vmem:[%s282 + $0xc] sm:$0xf]
      %v503 = vld [vmem:[%s282 + $0x10] sm:$0xf]
      %v504 = vld [vmem:[%s282 + $0x14] sm:$0xf]
      %v505 = vld [vmem:[%s282 + $0x18] sm:$0xf]
      %v506 = vld [vmem:[%s282 + $0x1c] sm:$0xf]
      %v507 = vld [vmem:[%s282 + $0x20] sm:$0xf]
      %v508 = vld [vmem:[%s282 + $0x24] sm:$0xf]
      %v509 = vld [vmem:[%s282 + $0x28] sm:$0xf]
      %v510 = vld [vmem:[%s282 + $0x2c] sm:$0xf]
      %v511 = vld [vmem:[%s282 + $0x30] sm:$0xf]
      %v512 = vld [vmem:[%s282 + $0x34] sm:$0xf]
      %v513 = vld [vmem:[%s282 + $0x38] sm:$0xf]
      %v514 = vld [vmem:[%s282 + $0x3c] sm:$0xf]
      %v515 = vld [vmem:[%s282 + $0x40] sm:$0xf]
      %v516 = vld [vmem:[%s282 + $0x44] sm:$0xf]
      %v517 = vld [vmem:[%s282 + $0x48] sm:$0xf]
      %v518 = vld [vmem:[%s282 + $0x4c] sm:$0xf]
      %v519 = vld [vmem:[%s282 + $0x50] sm:$0xf]
      %v520 = vld [vmem:[%s282 + $0x54] sm:$0xf]
      %v521 = vld [vmem:[%s282 + $0x58] sm:$0xf]
      %v522 = vld [vmem:[%s282 + $0x5c] sm:$0xf]
      %v523 = vld [vmem:[%s282 + $0x60] sm:$0xf]
      %v524 = vld [vmem:[%s282 + $0x64] sm:$0xf]
      %v525 = vld [vmem:[%s282 + $0x68] sm:$0xf]
      %v526 = vld [vmem:[%s282 + $0x6c] sm:$0xf]
      %v527 = vld [vmem:[%s282 + $0x70] sm:$0xf]
      %v528 = vld [vmem:[%s282 + $0x74] sm:$0xf]
      %v529 = vld [vmem:[%s282 + $0x78] sm:$0xf]
      %v530 = vld [vmem:[%s282 + $0x7c] sm:$0xf]
      %v531 = vunpack.c.l.bf16 %v499
      %v532 = vunpack.c.l.bf16 %v500
      %v533 = vunpack.c.l.bf16 %v501
      %v534 = vunpack.c.l.bf16 %v502
      %v535 = vunpack.c.l.bf16 %v503
      %v536 = vunpack.c.l.bf16 %v504
      %v537 = vunpack.c.l.bf16 %v505
      %v538 = vunpack.c.l.bf16 %v506
      %v539 = vunpack.c.l.bf16 %v507
      %v540 = vunpack.c.l.bf16 %v508
      %v541 = vunpack.c.l.bf16 %v509
      %v542 = vunpack.c.l.bf16 %v510
      %v543 = vunpack.c.l.bf16 %v511
      %v544 = vunpack.c.l.bf16 %v512
      %v545 = vunpack.c.l.bf16 %v513
      %v546 = vunpack.c.l.bf16 %v514
      %v547 = vunpack.c.l.bf16 %v515
      %v548 = vunpack.c.l.bf16 %v516
      %v549 = vunpack.c.l.bf16 %v517
      %v550 = vunpack.c.l.bf16 %v518
      %v551 = vunpack.c.l.bf16 %v519
      %v552 = vunpack.c.l.bf16 %v520
      %v553 = vunpack.c.l.bf16 %v521
      %v554 = vunpack.c.l.bf16 %v522
      %v555 = vunpack.c.l.bf16 %v523
      %v556 = vunpack.c.l.bf16 %v524
      %v557 = vunpack.c.l.bf16 %v525
      %v558 = vunpack.c.l.bf16 %v526
      %v559 = vunpack.c.l.bf16 %v527
      %v560 = vunpack.c.l.bf16 %v528
      %v561 = vunpack.c.l.bf16 %v529
      %v562 = vunpack.c.l.bf16 %v530
      %v563 = vadd.f32 %v467, %v531
      %v564 = vadd.f32 %v468, %v532
      %v565 = vadd.f32 %v469, %v533
      %v566 = vadd.f32 %v470, %v534
      %v567 = vadd.f32 %v471, %v535
      %v568 = vadd.f32 %v472, %v536
      %v569 = vadd.f32 %v473, %v537
      %v570 = vadd.f32 %v474, %v538
      %v571 = vadd.f32 %v475, %v539
      %v572 = vadd.f32 %v476, %v540
      %v573 = vadd.f32 %v477, %v541
      %v574 = vadd.f32 %v478, %v542
      %v575 = vadd.f32 %v479, %v543
      %v576 = vadd.f32 %v480, %v544
      %v577 = vadd.f32 %v481, %v545
      %v578 = vadd.f32 %v482, %v546
      %v579 = vadd.f32 %v483, %v547
      %v580 = vadd.f32 %v484, %v548
      %v581 = vadd.f32 %v485, %v549
      %v582 = vadd.f32 %v486, %v550
      %v583 = vadd.f32 %v487, %v551
      %v584 = vadd.f32 %v488, %v552
      %v585 = vadd.f32 %v489, %v553
      %v586 = vadd.f32 %v490, %v554
      %v587 = vadd.f32 %v491, %v555
      %v588 = vadd.f32 %v492, %v556
      %v589 = vadd.f32 %v493, %v557
      %v590 = vadd.f32 %v494, %v558
      %v591 = vadd.f32 %v495, %v559
      %v592 = vadd.f32 %v496, %v560
      %v593 = vadd.f32 %v497, %v561
      %v594 = vadd.f32 %v498, %v562
      %v595 = vpack.c.bf16 %v564, %v563
      %v596 = vpack.c.bf16 %v566, %v565
      %v597 = vpack.c.bf16 %v568, %v567
      %v598 = vpack.c.bf16 %v570, %v569
      %v599 = vpack.c.bf16 %v572, %v571
      %v600 = vpack.c.bf16 %v574, %v573
      %v601 = vpack.c.bf16 %v576, %v575
      %v602 = vpack.c.bf16 %v578, %v577
      %v603 = vpack.c.bf16 %v580, %v579
      %v604 = vpack.c.bf16 %v582, %v581
      %v605 = vpack.c.bf16 %v584, %v583
      %v606 = vpack.c.bf16 %v586, %v585
      %v607 = vpack.c.bf16 %v588, %v587
      %v608 = vpack.c.bf16 %v590, %v589
      %v609 = vpack.c.bf16 %v592, %v591
      %v610 = vpack.c.bf16 %v594, %v593
      %v627 = vunpack.c.l.b16 %v595
      %v628 = vunpack.c.h.b16 %v595
      %v629 = vunpack.c.l.b16 %v596
      %v630 = vunpack.c.h.b16 %v596
      %v631 = vunpack.c.l.b16 %v597
      %v632 = vunpack.c.h.b16 %v597
      %v633 = vunpack.c.l.b16 %v598
      %v634 = vunpack.c.h.b16 %v598
      %v635 = vunpack.c.l.b16 %v599
      %v636 = vunpack.c.h.b16 %v599
      %v637 = vunpack.c.l.b16 %v600
      %v638 = vunpack.c.h.b16 %v600
      %v639 = vunpack.c.l.b16 %v601
      %v640 = vunpack.c.h.b16 %v601
      %v641 = vunpack.c.l.b16 %v602
      %v642 = vunpack.c.h.b16 %v602
      %v643 = vunpack.c.l.b16 %v603
      %v644 = vunpack.c.h.b16 %v603
      %v645 = vunpack.c.l.b16 %v604
      %v646 = vunpack.c.h.b16 %v604
      %v647 = vunpack.c.l.b16 %v605
      %v648 = vunpack.c.h.b16 %v605
      %v649 = vunpack.c.l.b16 %v606
      %v650 = vunpack.c.h.b16 %v606
      %v651 = vunpack.c.l.b16 %v607
      %v652 = vunpack.c.h.b16 %v607
      %v653 = vunpack.c.l.b16 %v608
      %v654 = vunpack.c.h.b16 %v608
      %v655 = vunpack.c.l.b16 %v609
      %v656 = vunpack.c.h.b16 %v609
      %v657 = vunpack.c.l.b16 %v610
      %v658 = vunpack.c.h.b16 %v610
      %v659 = vpack.c.b16 %v627, %v627
      %v660 = vpack.c.b16 %v628, %v628
      %v661 = vpack.c.b16 %v629, %v629
      %v662 = vpack.c.b16 %v630, %v630
      %v663 = vpack.c.b16 %v631, %v631
      %v664 = vpack.c.b16 %v632, %v632
      %v665 = vpack.c.b16 %v633, %v633
      %v666 = vpack.c.b16 %v634, %v634
      %v667 = vpack.c.b16 %v635, %v635
      %v668 = vpack.c.b16 %v636, %v636
      %v669 = vpack.c.b16 %v637, %v637
      %v670 = vpack.c.b16 %v638, %v638
      %v671 = vpack.c.b16 %v639, %v639
      %v672 = vpack.c.b16 %v640, %v640
      %v673 = vpack.c.b16 %v641, %v641
      %v674 = vpack.c.b16 %v642, %v642
      %v675 = vpack.c.b16 %v643, %v643
      %v676 = vpack.c.b16 %v644, %v644
      %v677 = vpack.c.b16 %v645, %v645
      %v678 = vpack.c.b16 %v646, %v646
      %v679 = vpack.c.b16 %v647, %v647
      %v680 = vpack.c.b16 %v648, %v648
      %v681 = vpack.c.b16 %v649, %v649
      %v682 = vpack.c.b16 %v650, %v650
      %v683 = vpack.c.b16 %v651, %v651
      %v684 = vpack.c.b16 %v652, %v652
      %v685 = vpack.c.b16 %v653, %v653
      %v686 = vpack.c.b16 %v654, %v654
      %v687 = vpack.c.b16 %v655, %v655
      %v688 = vpack.c.b16 %v656, %v656
      %v689 = vpack.c.b16 %v657, %v657
      %v690 = vpack.c.b16 %v658, %v658
      %723 = vst [vmem:[%s291] sm:$0xf] %v659
      %724 = vst [vmem:[%s291 + $0x4] sm:$0xf] %v660
      %725 = vst [vmem:[%s291 + $0x8] sm:$0xf] %v661
      %726 = vst [vmem:[%s291 + $0xc] sm:$0xf] %v662
      %727 = vst [vmem:[%s291 + $0x10] sm:$0xf] %v663
      %728 = vst [vmem:[%s291 + $0x14] sm:$0xf] %v664
      %729 = vst [vmem:[%s291 + $0x18] sm:$0xf] %v665
      %730 = vst [vmem:[%s291 + $0x1c] sm:$0xf] %v666
      %731 = vst [vmem:[%s291 + $0x20] sm:$0xf] %v667
      %732 = vst [vmem:[%s291 + $0x24] sm:$0xf] %v668
      %733 = vst [vmem:[%s291 + $0x28] sm:$0xf] %v669
      %734 = vst [vmem:[%s291 + $0x2c] sm:$0xf] %v670
      %735 = vst [vmem:[%s291 + $0x30] sm:$0xf] %v671
      %736 = vst [vmem:[%s291 + $0x34] sm:$0xf] %v672
      %737 = vst [vmem:[%s291 + $0x38] sm:$0xf] %v673
      %738 = vst [vmem:[%s291 + $0x3c] sm:$0xf] %v674
      %739 = vst [vmem:[%s291 + $0x40] sm:$0xf] %v675
      %740 = vst [vmem:[%s291 + $0x44] sm:$0xf] %v676
      %741 = vst [vmem:[%s291 + $0x48] sm:$0xf] %v677
      %742 = vst [vmem:[%s291 + $0x4c] sm:$0xf] %v678
      %743 = vst [vmem:[%s291 + $0x50] sm:$0xf] %v679
      %744 = vst [vmem:[%s291 + $0x54] sm:$0xf] %v680
      %745 = vst [vmem:[%s291 + $0x58] sm:$0xf] %v681
      %746 = vst [vmem:[%s291 + $0x5c] sm:$0xf] %v682
      %747 = vst [vmem:[%s291 + $0x60] sm:$0xf] %v683
      %748 = vst [vmem:[%s291 + $0x64] sm:$0xf] %v684
      %749 = vst [vmem:[%s291 + $0x68] sm:$0xf] %v685
      %750 = vst [vmem:[%s291 + $0x6c] sm:$0xf] %v686
      %751 = vst [vmem:[%s291 + $0x70] sm:$0xf] %v687
      %752 = vst [vmem:[%s291 + $0x74] sm:$0xf] %v688
      %753 = vst [vmem:[%s291 + $0x78] sm:$0xf] %v689
      %754 = vst [vmem:[%s291 + $0x7c] sm:$0xf] %v690
      %s755 = smul.u32 32, %s20
      %p756 = scmp.lt.s32.totalorder %s755, 63
      %s757 = scalar_select %p756, %s755, 63
      %p758 = scmp.lt.s32.totalorder %s19, 0
      %s759 = scalar_select %p758, %s19, 0
      %s760 = sadd.s32 %s759, %s757
      %s761 = smul.addr %s760, 4
      %s762 = scalar_lea.vmem %s4, %s761
      // Predicated region
      $region37: #{_lambda_.11} parent=35 // pred_check
        %p763 = pneg %p155
      $region38: #{_lambda_.11} parent=35 // pred_check_branch
        %765 = sbr.rel (%p763) target = $region40
      $region39: #{_lambda_.11} parent=35 // pred_region
        %s766 = smul.u32 32, %s20
      $region40: #{_lambda_.11} parent=35 // pred_fallthru
        _
    $region36: #{_lambda_.11} parent=5 // pred_fallthru
      _
    %p767 = scmp.le.s32.totalorder 2, %s10
    // Predicated region
    $region41: #{_lambda_.11} parent=5 // pred_check
      %p768 = pneg %p767
    $region42: #{_lambda_.11} parent=5 // pred_check_branch
      %770 = sbr.rel (%p768) target = $region44
    $region43: #{_lambda_.11} parent=5 // pred_region
      %s771 = ssub.s32 %s10, 2
      // Predicated region
      $region45: #{_lambda_.11} parent=43 // pred_check
        %p772 = pneg %p161
      $region46: #{_lambda_.11} parent=43 // pred_check_branch
        %774 = sbr.rel (%p772) target = $region48
      $region47: #{_lambda_.11} parent=43 // pred_region
        %s775 = smul.u32 32, %s22
        %p776 = scmp.lt.s32.totalorder %s775, 63
        %s777 = scalar_select %p776, %s775, 63
        %p778 = scmp.lt.s32.totalorder %s21, 0
        %s779 = scalar_select %p778, %s21, 0
        %s780 = sadd.s32 %s779, %s777
        %s781 = smul.addr %s780, 4
        %s782 = scalar_lea.vmem %s4, %s781
      $region48: #{_lambda_.11} parent=43 // pred_fallthru
        _
    $region44: #{_lambda_.11} parent=5 // pred_fallthru
      _
  $region6: #{_lambda_.11} parent=0 // loop_footer
    %s14 = sadd.s32 1, %s10
  $region7: #{_lambda_.11} parent=0 // loop_footer_branch
    %9 = sbr.rel target = $region3
  $region8: #{_lambda_.11} parent=0 // loop_exit
    _

// kernel: _lambda_.10
$region0: #{_lambda_.10}
  #allocation0 [shape = 'u32[]', space=smem, size = 0x4, offset = 0x4, fixed_abs, tag = 'smem constant byte address 0x4 - core index']
  #allocation1 [shape = 'u32[144,128]{1,0:T(1,128)}', space=vmem, size = 0x12000, scoped, tag = 'internal scratch']
  %s0 = inlined_call_operand.vmem [shape: bf16[576,128], index: 0, kind: input, shape index: {}]
  %s1 = inlined_call_operand.vmem [shape: bf16[3,128,128], index: 1, kind: input, shape index: {}]
  %s2 = inlined_call_operand.vmem [shape: bf16[512,128], index: 2, kind: output, shape index: {0}]
  %s3 = inlined_call_operand.vmem [shape: f32[1,128], index: 3, kind: output, shape index: {1}]
  %s4 = inlined_call_operand.vmem [shape: f32[1,128], index: 4, kind: output, shape index: {2}]
  %5 = xla_tuple %s2, %s3, %s4
  %s6 = sld [smem:[#allocation0]]
  $region61: #{_lambda_.10} parent=0
    _
  %s8 = ssub.s32 1, %s6
  %s9 = scalar_select 0, %s8, %s6
  loop: start=0, step=1, limit=4
  $region2: #{_lambda_.10} parent=0 // loop_pre_header
    _
  $region3: #{_lambda_.10} parent=0 // loop_header
    %s11 = sphi 0, %s15
    %p12 = scmp.ge.s32.totalorder %s11, 4
    %s18 = sphi 0, %s30
    %s19 = sphi 0, %s26
    %s20 = sphi 0, %s18
    %s21 = sphi 0, %s19
    %s22 = sphi 0, %s20
    %s23 = sphi 0, %s21
    %s33 = sphi 0, %s35
    %s36 = sphi 0, %s33
    %s37 = sphi 0, %s36
    %s53 = sphi 0, %s37
    %s59 = sphi 0, %s61
    %s62 = sphi 0, %s59
    %s63 = sphi 0, %s62
    %s79 = sphi 0, %s63
    %s87 = sphi 0, %s89
    %s90 = sphi 0, %s87
    %s91 = sphi 0, %s90
    %s107 = sphi 0, %s91
    %s113 = sphi 0, %s115
    %s116 = sphi 0, %s113
    %s117 = sphi 0, %s116
    %s133 = sphi 0, %s117
    %s139 = sphi 0, %s141
    %s142 = sphi 0, %s139
    %s143 = sphi 0, %s142
    %s159 = sphi 0, %s143
  $region4: #{_lambda_.10} parent=0 // loop_header_branch
    %14 = sbr.rel (%p12) target = $region8
  $region5: #{_lambda_.10} parent=0 // loop_body
    %s16 = ssub.s32 %s11, 1
    %s17 = ssub.s32 %s11, 2
    %s24 = sadd.s32 1, %s19
    %p25 = scmp.ge.s32.totalorder %s24, 2
    %s26 = scalar_select %p25, 0, %s24
    %s27 = sadd.s32 1, %s18
    %s28 = scalar_select %p25, %s27, %s18
    %p29 = scmp.ge.s32.totalorder %s28, 1
    %s30 = scalar_select %p29, 0, %s28
    %s31 = ssub.s32 %s19, %s26
    %p32 = scmp.eq.s32.totalorder %s31, 0
    %s34 = sadd.s32 %s33, 1
    %s35 = scalar_select %p32, %s33, %s34
    %p38 = pneg %p32
    %p39 = scmp.eq.s32.totalorder %s11, 1
    %p40 = por %p38, %p39
    %p41 = scmp.ne.s32.totalorder %s33, %s36
    %p42 = scmp.eq.s32.totalorder %s11, 0
    %p43 = por %p41, %p42
    %p44 = scmp.ne.s32.totalorder %s33, %s36
    %p45 = scmp.eq.s32.totalorder %s16, 1
    %p46 = por %p44, %p45
    %p47 = scmp.ne.s32.totalorder %s36, %s37
    %p48 = scmp.eq.s32.totalorder %s16, 0
    %p49 = por %p47, %p48
    %p50 = scmp.ne.s32.totalorder %s36, %s37
    %p51 = scmp.eq.s32.totalorder %s17, 1
    %p52 = por %p50, %p51
    %p54 = scmp.ne.s32.totalorder %s37, %s53
    %p55 = scmp.eq.s32.totalorder %s17, 0
    %p56 = por %p54, %p55
    %s57 = ssub.s32 %s18, %s30
    %p58 = scmp.eq.s32.totalorder %s57, 0
    %s60 = sadd.s32 %s59, 1
    %s61 = scalar_select %p58, %s59, %s60
    %p64 = pneg %p58
    %p65 = scmp.eq.s32.totalorder %s11, 1
    %p66 = por %p64, %p65
    %p67 = scmp.ne.s32.totalorder %s59, %s62
    %p68 = scmp.eq.s32.totalorder %s11, 0
    %p69 = por %p67, %p68
    %p70 = scmp.ne.s32.totalorder %s59, %s62
    %p71 = scmp.eq.s32.totalorder %s16, 1
    %p72 = por %p70, %p71
    %p73 = scmp.ne.s32.totalorder %s62, %s63
    %p74 = scmp.eq.s32.totalorder %s16, 0
    %p75 = por %p73, %p74
    %p76 = scmp.ne.s32.totalorder %s62, %s63
    %p77 = scmp.eq.s32.totalorder %s17, 1
    %p78 = por %p76, %p77
    %p80 = scmp.ne.s32.totalorder %s63, %s79
    %p81 = scmp.eq.s32.totalorder %s17, 0
    %p82 = por %p80, %p81
    %s83 = ssub.s32 %s19, %s26
    %s84 = ssub.s32 %s18, %s30
    %s85 = sor.u32 %s83, %s84
    %p86 = scmp.eq.s32.totalorder %s85, 0
    %s88 = sadd.s32 %s87, 1
    %s89 = scalar_select %p86, %s87, %s88
    %p92 = pneg %p86
    %p93 = scmp.eq.s32.totalorder %s11, 1
    %p94 = por %p92, %p93
    %p95 = scmp.ne.s32.totalorder %s87, %s90
    %p96 = scmp.eq.s32.totalorder %s11, 0
    %p97 = por %p95, %p96
    %p98 = scmp.ne.s32.totalorder %s87, %s90
    %p99 = scmp.eq.s32.totalorder %s16, 1
    %p100 = por %p98, %p99
    %p101 = scmp.ne.s32.totalorder %s90, %s91
    %p102 = scmp.eq.s32.totalorder %s16, 0
    %p103 = por %p101, %p102
    %p104 = scmp.ne.s32.totalorder %s90, %s91
    %p105 = scmp.eq.s32.totalorder %s17, 1
    %p106 = por %p104, %p105
    %p108 = scmp.ne.s32.totalorder %s91, %s107
    %p109 = scmp.eq.s32.totalorder %s17, 0
    %p110 = por %p108, %p109
    %s111 = ssub.s32 %s18, %s30
    %p112 = scmp.eq.s32.totalorder %s111, 0
    %s114 = sadd.s32 %s113, 1
    %s115 = scalar_select %p112, %s113, %s114
    %p118 = pneg %p112
    %p119 = scmp.eq.s32.totalorder %s11, 1
    %p120 = por %p118, %p119
    %p121 = scmp.ne.s32.totalorder %s113, %s116
    %p122 = scmp.eq.s32.totalorder %s11, 0
    %p123 = por %p121, %p122
    %p124 = scmp.ne.s32.totalorder %s113, %s116
    %p125 = scmp.eq.s32.totalorder %s16, 1
    %p126 = por %p124, %p125
    %p127 = scmp.ne.s32.totalorder %s116, %s117
    %p128 = scmp.eq.s32.totalorder %s16, 0
    %p129 = por %p127, %p128
    %p130 = scmp.ne.s32.totalorder %s116, %s117
    %p131 = scmp.eq.s32.totalorder %s17, 1
    %p132 = por %p130, %p131
    %p134 = scmp.ne.s32.totalorder %s117, %s133
    %p135 = scmp.eq.s32.totalorder %s17, 0
    %p136 = por %p134, %p135
    %s137 = ssub.s32 %s18, %s30
    %p138 = scmp.eq.s32.totalorder %s137, 0
    %s140 = sadd.s32 %s139, 1
    %s141 = scalar_select %p138, %s139, %s140
    %p144 = pneg %p138
    %p145 = scmp.eq.s32.totalorder %s11, 1
    %p146 = por %p144, %p145
    %p147 = scmp.ne.s32.totalorder %s139, %s142
    %p148 = scmp.eq.s32.totalorder %s11, 0
    %p149 = por %p147, %p148
    %p150 = scmp.ne.s32.totalorder %s139, %s142
    %p151 = scmp.eq.s32.totalorder %s16, 1
    %p152 = por %p150, %p151
    %p153 = scmp.ne.s32.totalorder %s142, %s143
    %p154 = scmp.eq.s32.totalorder %s16, 0
    %p155 = por %p153, %p154
    %p156 = scmp.ne.s32.totalorder %s142, %s143
    %p157 = scmp.eq.s32.totalorder %s17, 1
    %p158 = por %p156, %p157
    %p160 = scmp.ne.s32.totalorder %s143, %s159
    %p161 = scmp.eq.s32.totalorder %s17, 0
    %p162 = por %p160, %p161
    %p163 = scmp.le.s32.totalorder 1, %s11
    %p164 = scmp.lt.s32.totalorder %s11, 3
    %p165 = pnand %p163, %p164
    %p166 = pneg %p165
    // Predicated region
    $region9: #{_lambda_.10} parent=5 // pred_check
      _
    $region10: #{_lambda_.10} parent=5 // pred_check_branch
      %168 = sbr.rel (%p165) target = $region12
    $region11: #{_lambda_.10} parent=5 // pred_region
      %s169 = ssub.s32 %s11, 1
      // Predicated region
      $region13: #{_lambda_.10} parent=11 // pred_check
        %p170 = pneg %p75
      $region14: #{_lambda_.10} parent=11 // pred_check_branch
        %172 = sbr.rel (%p170) target = $region16
      $region15: #{_lambda_.10} parent=11 // pred_region
        %p173 = scmp.lt.s32.totalorder %s20, 0
        %s174 = scalar_select %p173, %s20, 0
        %s175 = smul.addr %s174, 4
        %s176 = scalar_lea.vmem %s1, %s175
      $region16: #{_lambda_.10} parent=11 // pred_fallthru
        _
    $region12: #{_lambda_.10} parent=5 // pred_fallthru
      _
    %p177 = scmp.lt.s32.totalorder %s11, 2
    // Predicated region
    $region17: #{_lambda_.10} parent=5 // pred_check
      %p178 = pneg %p177
    $region18: #{_lambda_.10} parent=5 // pred_check_branch
      %180 = sbr.rel (%p178) target = $region20
    $region19: #{_lambda_.10} parent=5 // pred_region
      // Predicated region
      $region21: #{_lambda_.10} parent=19 // pred_check
        %p181 = pneg %p43
      $region22: #{_lambda_.10} parent=19 // pred_check_branch
        %183 = sbr.rel (%p181) target = $region24
      $region23: #{_lambda_.10} parent=19 // pred_region
        %s184 = smul.u32 36, %s19
        %p185 = scmp.lt.s32.totalorder %s184, 71
        %s186 = scalar_select %p185, %s184, 71
        %s187 = smul.addr %s186, 4
        %s188 = scalar_lea.vmem %s0, %s187
        %s189 = smul.u32 36, %s19
      $region24: #{_lambda_.10} parent=19 // pred_fallthru
        _
    $region20: #{_lambda_.10} parent=5 // pred_fallthru
      _
    %p190 = scmp.le.s32.totalorder 1, %s11
    %p191 = scmp.lt.s32.totalorder %s11, 3
    %p192 = pnand %p190, %p191
    %p193 = pneg %p192
    // Predicated region
    $region25: #{_lambda_.10} parent=5 // pred_check
      _
    $region26: #{_lambda_.10} parent=5 // pred_check_branch
      %195 = sbr.rel (%p192) target = $region28
    $region27: #{_lambda_.10} parent=5 // pred_region
      %s196 = ssub.s32 %s11, 1
      %s197 = smul.u32 36, %s21
      %p198 = scmp.lt.s32.totalorder %s197, 71
      %s199 = scalar_select %p198, %s197, 71
      %s200 = smul.addr %s199, 4
      %s201 = scalar_lea.vmem %s0, %s200
      %p202 = pneg %p49
      %p203 = pneg %p46
      %p204 = scmp.lt.s32.totalorder %s20, 0
      %s205 = scalar_select %p204, %s20, 0
      %s206 = smul.addr %s205, 4
      %s207 = scalar_lea.vmem %s1, %s206
      %p208 = pneg %p75
      %p209 = pneg %p72
      %p210 = pneg %p103
      %p211 = pneg %p100
      %s212 = smul.u32 32, %s21
      %p213 = scmp.lt.s32.totalorder %s212, 63
      %s214 = scalar_select %p213, %s212, 63
      %p215 = scmp.lt.s32.totalorder %s20, 0
      %s216 = scalar_select %p215, %s20, 0
      %s217 = sadd.s32 %s216, %s214
      %s218 = smul.addr %s217, 4
      %s219 = scalar_lea.vmem %s2, %s218
      %p220 = pneg %p129
      %p221 = pneg %p126
      %p222 = scmp.lt.s32.totalorder %s20, 0
      %s223 = scalar_select %p222, %s20, 0
      %s224 = scalar_lea.vmem %s3, %s223
      %p225 = pneg %p155
      %p226 = pneg %p152
      %p227 = scmp.lt.s32.totalorder %s20, 0
      %s228 = scalar_select %p227, %s20, 0
      %s229 = scalar_lea.vmem %s4, %s228
      %s230 = smul.u32 36, %s21
      %p231 = scmp.lt.s32.totalorder %s230, 71
      %s232 = scalar_select %p231, %s230, 71
      %s233 = smul.addr %s232, 4
      %s234 = scalar_lea.vmem %s0, %s233
      %s235 = smul.u32 36, %s21
      %p236 = scmp.lt.s32.totalorder %s20, 0
      %s237 = scalar_select %p236, %s20, 0
      %s238 = smul.addr %s237, 4
      %s239 = scalar_lea.vmem %s1, %s238
      %s240 = smul.u32 32, %s21
      %p241 = scmp.lt.s32.totalorder %s240, 63
      %s242 = scalar_select %p241, %s240, 63
      %p243 = scmp.lt.s32.totalorder %s20, 0
      %s244 = scalar_select %p243, %s20, 0
      %s245 = sadd.s32 %s244, %s242
      %s246 = smul.addr %s245, 4
      %s247 = scalar_lea.vmem %s2, %s246
      %s248 = smul.u32 32, %s21
      %p249 = scmp.lt.s32.totalorder %s20, 0
      %s250 = scalar_select %p249, %s20, 0
      %s251 = scalar_lea.vmem %s3, %s250
      %p252 = scmp.lt.s32.totalorder %s20, 0
      %s253 = scalar_select %p252, %s20, 0
      %s254 = scalar_lea.vmem %s4, %s253
      %v256 = vld [vmem:[%s234] sm:$0xf]
      %v257 = vld [vmem:[%s234 + $0x4] sm:$0xf]
      %v258 = vld [vmem:[%s234 + $0x8] sm:$0xf]
      %v259 = vld [vmem:[%s234 + $0xc] sm:$0xf]
      %v260 = vld [vmem:[%s234 + $0x10] sm:$0xf]
      %v261 = vld [vmem:[%s234 + $0x14] sm:$0xf]
      %v262 = vld [vmem:[%s234 + $0x18] sm:$0xf]
      %v263 = vld [vmem:[%s234 + $0x1c] sm:$0xf]
      %v264 = vld [vmem:[%s234 + $0x20] sm:$0xf]
      %v265 = vld [vmem:[%s234 + $0x24] sm:$0xf]
      %v266 = vld [vmem:[%s234 + $0x28] sm:$0xf]
      %v267 = vld [vmem:[%s234 + $0x2c] sm:$0xf]
      %v268 = vld [vmem:[%s234 + $0x30] sm:$0xf]
      %v269 = vld [vmem:[%s234 + $0x34] sm:$0xf]
      %v270 = vld [vmem:[%s234 + $0x38] sm:$0xf]
      %v271 = vld [vmem:[%s234 + $0x3c] sm:$0xf]
      %v272 = vld [vmem:[%s234 + $0x40] sm:$0xf]
      %v273 = vld [vmem:[%s234 + $0x44] sm:$0xf]
      %v274 = vld [vmem:[%s234 + $0x48] sm:$0xf]
      %v275 = vld [vmem:[%s234 + $0x4c] sm:$0xf]
      %v276 = vld [vmem:[%s234 + $0x50] sm:$0xf]
      %v277 = vld [vmem:[%s234 + $0x54] sm:$0xf]
      %v278 = vld [vmem:[%s234 + $0x58] sm:$0xf]
      %v279 = vld [vmem:[%s234 + $0x5c] sm:$0xf]
      %v280 = vld [vmem:[%s234 + $0x60] sm:$0xf]
      %v281 = vld [vmem:[%s234 + $0x64] sm:$0xf]
      %v282 = vld [vmem:[%s234 + $0x68] sm:$0xf]
      %v283 = vld [vmem:[%s234 + $0x6c] sm:$0xf]
      %v284 = vld [vmem:[%s234 + $0x70] sm:$0xf]
      %v285 = vld [vmem:[%s234 + $0x74] sm:$0xf]
      %v286 = vld [vmem:[%s234 + $0x78] sm:$0xf]
      %v287 = vld [vmem:[%s234 + $0x7c] sm:$0xf]
      %v288 = vld [vmem:[%s239] sm:$0xf]
      %v289 = vld [vmem:[%s239 + $0x4] sm:$0xf]
      %v290 = vld [vmem:[%s239 + $0x8] sm:$0xf]
      %v291 = vld [vmem:[%s239 + $0xc] sm:$0xf]
      %v292 = vld [vmem:[%s239 + $0x10] sm:$0xf]
      %v293 = vld [vmem:[%s239 + $0x14] sm:$0xf]
      %v294 = vld [vmem:[%s239 + $0x18] sm:$0xf]
      %v295 = vld [vmem:[%s239 + $0x1c] sm:$0xf]
      %v296 = vld [vmem:[%s239 + $0x20] sm:$0xf]
      %v297 = vld [vmem:[%s239 + $0x24] sm:$0xf]
      %v298 = vld [vmem:[%s239 + $0x28] sm:$0xf]
      %v299 = vld [vmem:[%s239 + $0x2c] sm:$0xf]
      %v300 = vld [vmem:[%s239 + $0x30] sm:$0xf]
      %v301 = vld [vmem:[%s239 + $0x34] sm:$0xf]
      %v302 = vld [vmem:[%s239 + $0x38] sm:$0xf]
      %v303 = vld [vmem:[%s239 + $0x3c] sm:$0xf]
      %v304 = vld [vmem:[%s234 + $0x80] sm:$0xf]
      %v305 = vld [vmem:[%s234 + $0x84] sm:$0xf]
      %s306 = scalar_lea.vmem %s239, 64
      %v307 = vld [vmem:[%s306] sm:$0xf]
      %v308 = vld [vmem:[%s306 + $0x4] sm:$0xf]
      %v309 = vld [vmem:[%s306 + $0x8] sm:$0xf]
      %v310 = vld [vmem:[%s306 + $0xc] sm:$0xf]
      %v311 = vld [vmem:[%s306 + $0x10] sm:$0xf]
      %v312 = vld [vmem:[%s306 + $0x14] sm:$0xf]
      %v313 = vld [vmem:[%s306 + $0x18] sm:$0xf]
      %v314 = vld [vmem:[%s306 + $0x1c] sm:$0xf]
      %v315 = vld [vmem:[%s306 + $0x20] sm:$0xf]
      %v316 = vld [vmem:[%s306 + $0x24] sm:$0xf]
      %v317 = vld [vmem:[%s306 + $0x28] sm:$0xf]
      %v318 = vld [vmem:[%s306 + $0x2c] sm:$0xf]
      %v319 = vld [vmem:[%s306 + $0x30] sm:$0xf]
      %v320 = vld [vmem:[%s306 + $0x34] sm:$0xf]
      %v321 = vld [vmem:[%s306 + $0x38] sm:$0xf]
      %v322 = vld [vmem:[%s306 + $0x3c] sm:$0xf]
      %v355 = vunpack.c.l.b16 %v258
      %v356 = vunpack.c.l.b16 %v259
      %v357 = vunpack.c.l.b16 %v260
      %v358 = vunpack.c.l.b16 %v261
      %v359 = vunpack.c.l.b16 %v262
      %v360 = vunpack.c.l.b16 %v263
      %v361 = vunpack.c.l.b16 %v264
      %v362 = vunpack.c.l.b16 %v265
      %v363 = vunpack.c.l.b16 %v266
      %v364 = vunpack.c.l.b16 %v267
      %v365 = vunpack.c.l.b16 %v268
      %v366 = vunpack.c.l.b16 %v269
      %v367 = vunpack.c.l.b16 %v270
      %v368 = vunpack.c.l.b16 %v271
      %v369 = vunpack.c.l.b16 %v272
      %v370 = vunpack.c.l.b16 %v273
      %v371 = vunpack.c.l.b16 %v274
      %v372 = vunpack.c.l.b16 %v275
      %v373 = vunpack.c.l.b16 %v276
      %v374 = vunpack.c.l.b16 %v277
      %v375 = vunpack.c.l.b16 %v278
      %v376 = vunpack.c.l.b16 %v279
      %v377 = vunpack.c.l.b16 %v280
      %v378 = vunpack.c.l.b16 %v281
      %v379 = vunpack.c.l.b16 %v282
      %v380 = vunpack.c.l.b16 %v283
      %v381 = vunpack.c.l.b16 %v284
      %v382 = vunpack.c.l.b16 %v285
      %v383 = vunpack.c.l.b16 %v286
      %v384 = vunpack.c.l.b16 %v287
      %v385 = vunpack.c.l.b16 %v304
      %v386 = vunpack.c.l.b16 %v305
      %v387 = vpack.c.b16 %v356, %v355
      %v388 = vpack.c.b16 %v358, %v357
      %v389 = vpack.c.b16 %v360, %v359
      %v390 = vpack.c.b16 %v362, %v361
      %v391 = vpack.c.b16 %v364, %v363
      %v392 = vpack.c.b16 %v366, %v365
      %v393 = vpack.c.b16 %v368, %v367
      %v394 = vpack.c.b16 %v370, %v369
      %v395 = vpack.c.b16 %v372, %v371
      %v396 = vpack.c.b16 %v374, %v373
      %v397 = vpack.c.b16 %v376, %v375
      %v398 = vpack.c.b16 %v378, %v377
      %v399 = vpack.c.b16 %v380, %v379
      %v400 = vpack.c.b16 %v382, %v381
      %v401 = vpack.c.b16 %v384, %v383
      %v402 = vpack.c.b16 %v386, %v385
      %v435 = vunpack.c.l.b16 %v307
      %v436 = vunpack.c.l.b16 %v308
      %v437 = vunpack.c.l.b16 %v309
      %v438 = vunpack.c.l.b16 %v310
      %v439 = vunpack.c.l.b16 %v311
      %v440 = vunpack.c.l.b16 %v312
      %v441 = vunpack.c.l.b16 %v313
      %v442 = vunpack.c.l.b16 %v314
      %v443 = vunpack.c.l.b16 %v315
      %v444 = vunpack.c.l.b16 %v316
      %v445 = vunpack.c.l.b16 %v317
      %v446 = vunpack.c.l.b16 %v318
      %v447 = vunpack.c.l.b16 %v319
      %v448 = vunpack.c.l.b16 %v320
      %v449 = vunpack.c.l.b16 %v321
      %v450 = vunpack.c.l.b16 %v322
      %v451 = vpack.c.b16 %v436, %v435
      %v452 = vpack.c.b16 %v438, %v437
      %v453 = vpack.c.b16 %v440, %v439
      %v454 = vpack.c.b16 %v442, %v441
      %v455 = vpack.c.b16 %v444, %v443
      %v456 = vpack.c.b16 %v446, %v445
      %v457 = vpack.c.b16 %v448, %v447
      %v458 = vpack.c.b16 %v450, %v449
      %467 = vmatprep.subr.bf16.mxu0 0
      %468 = vmatpush1.bf16.msra.mxu0 %v451
      %469 = vmatprep.subr.bf16.mxu0 0
      %470 = vmatpush1.bf16.msra.mxu0 %v452
      %471 = vmatprep.subr.bf16.mxu0 0
      %472 = vmatpush1.bf16.msra.mxu0 %v453
      %473 = vmatprep.subr.bf16.mxu0 0
      %474 = vmatpush1.bf16.msra.mxu0 %v454
      %475 = vmatprep.subr.bf16.mxu0 0
      %476 = vmatpush1.bf16.msra.mxu0 %v455
      %477 = vmatprep.subr.bf16.mxu0 0
      %478 = vmatpush1.bf16.msra.mxu0 %v456
      %479 = vmatprep.subr.bf16.mxu0 0
      %480 = vmatpush1.bf16.msra.mxu0 %v457
      %481 = vmatprep.subr.bf16.mxu0 0
      %482 = vmatpush1.bf16.msra.mxu0 %v458
      %483 = vmatprep.subr.bf16.mxu0 0
      %484 = vmatpush1.bf16.msra.mxu0 0
      %485 = vmatprep.subr.bf16.mxu0 0
      %486 = vmatpush1.bf16.msra.mxu0 0
      %487 = vmatprep.subr.bf16.mxu0 0
      %488 = vmatpush1.bf16.msra.mxu0 0
      %489 = vmatprep.subr.bf16.mxu0 0
      %490 = vmatpush1.bf16.msra.mxu0 0
      %491 = vmatprep.subr.bf16.mxu0 0
      %492 = vmatpush1.bf16.msra.mxu0 0
      %493 = vmatprep.subr.bf16.mxu0 0
      %494 = vmatpush1.bf16.msra.mxu0 0
      %495 = vmatprep.subr.bf16.mxu0 0
      %496 = vmatpush1.bf16.msra.mxu0 0
      %497 = vmatprep.subr.bf16.mxu0 0
      %498 = vmatpush1.bf16.msra.mxu0 0
      %499 = vmatprep.mubr.bf16.mxu0 0
      %500 = vmatmul.mubr.bf16.gmra.mrb[0].mxu0 %v387
      %v501 = vpop.f32.mrb[0].mxu0
      %v502 = vadd.f32 0.0, %v501
      %v503 = vpop.f32.mrb[0].mxu0
      %v504 = vpop.f32.mrb[0].mxu0
      %v505 = vadd.f32 0.0, %v504
      %v506 = vpop.f32.mrb[0].mxu0
      %507 = vmatprep.mubr.bf16.mxu0 0
      %508 = vmatmul.mubr.bf16.gmra.mrb[0].mxu0 %v388
      %v509 = vpop.f32.mrb[0].mxu0
      %v510 = vadd.f32 0.0, %v509
      %v511 = vpop.f32.mrb[0].mxu0
      %v512 = vpop.f32.mrb[0].mxu0
      %v513 = vadd.f32 0.0, %v512
      %v514 = vpop.f32.mrb[0].mxu0
      %515 = vmatprep.mubr.bf16.mxu0 0
      %516 = vmatmul.mubr.bf16.gmra.mrb[0].mxu0 %v389
      %v517 = vpop.f32.mrb[0].mxu0
      %v518 = vadd.f32 0.0, %v517
      %v519 = vpop.f32.mrb[0].mxu0
      %v520 = vpop.f32.mrb[0].mxu0
      %v521 = vadd.f32 0.0, %v520
      %v522 = vpop.f32.mrb[0].mxu0
      %523 = vmatprep.mubr.bf16.mxu0 0
      %524 = vmatmul.mubr.bf16.gmra.mrb[0].mxu0 %v390
      %v525 = vpop.f32.mrb[0].mxu0
      %v526 = vadd.f32 0.0, %v525
      %v527 = vpop.f32.mrb[0].mxu0
      %v528 = vpop.f32.mrb[0].mxu0
      %v529 = vadd.f32 0.0, %v528
      %v530 = vpop.f32.mrb[0].mxu0
      %531 = vmatprep.mubr.bf16.mxu0 0
      %532 = vmatmul.mubr.bf16.gmra.mrb[0].mxu0 %v391
      %v533 = vpop.f32.mrb[0].mxu0
      %v534 = vadd.f32 0.0, %v533
      %v535 = vpop.f32.mrb[0].mxu0
      %v536 = vpop.f32.mrb[0].mxu0
      %v537 = vadd.f32 0.0, %v536
      %v538 = vpop.f32.mrb[0].mxu0
      %539 = vmatprep.mubr.bf16.mxu0 0
      %540 = vmatmul.mubr.bf16.gmra.mrb[0].mxu0 %v392
      %v541 = vpop.f32.mrb[0].mxu0
      %v542 = vadd.f32 0.0, %v541
      %v543 = vpop.f32.mrb[0].mxu0
      %v544 = vpop.f32.mrb[0].mxu0
      %v545 = vadd.f32 0.0, %v544
      %v546 = vpop.f32.mrb[0].mxu0
      %547 = vmatprep.mubr.bf16.mxu0 0
      %548 = vmatmul.mubr.bf16.gmra.mrb[0].mxu0 %v393
      %v549 = vpop.f32.mrb[0].mxu0
      %v550 = vadd.f32 0.0, %v549
      %v551 = vpop.f32.mrb[0].mxu0
      %v552 = vpop.f32.mrb[0].mxu0
      %v553 = vadd.f32 0.0, %v552
      %v554 = vpop.f32.mrb[0].mxu0
      %555 = vmatprep.mubr.bf16.mxu0 0
      %556 = vmatmul.mubr.bf16.gmra.mrb[0].mxu0 %v394
      %v557 = vpop.f32.mrb[0].mxu0
      %v558 = vadd.f32 0.0, %v557
      %v559 = vpop.f32.mrb[0].mxu0
      %v560 = vpop.f32.mrb[0].mxu0
      %v561 = vadd.f32 0.0, %v560
      %v562 = vpop.f32.mrb[0].mxu0
      %563 = vmatprep.mubr.bf16.mxu0 0
      %564 = vmatmul.mubr.bf16.gmra.mrb[0].mxu0 %v395
      %v565 = vpop.f32.mrb[0].mxu0
      %v566 = vadd.f32 0.0, %v565
      %v567 = vpop.f32.mrb[0].mxu0
      %v568 = vpop.f32.mrb[0].mxu0
      %v569 = vadd.f32 0.0, %v568
      %v570 = vpop.f32.mrb[0].mxu0
      %571 = vmatprep.mubr.bf16.mxu0 0
      %572 = vmatmul.mubr.bf16.gmra.mrb[0].mxu0 %v396
      %v573 = vpop.f32.mrb[0].mxu0
      %v574 = vadd.f32 0.0, %v573
      %v575 = vpop.f32.mrb[0].mxu0
      %v576 = vpop.f32.mrb[0].mxu0
      %v577 = vadd.f32 0.0, %v576
      %v578 = vpop.f32.mrb[0].mxu0
      %579 = vmatprep.mubr.bf16.mxu0 0
      %580 = vmatmul.mubr.bf16.gmra.mrb[0].mxu0 %v397
      %v581 = vpop.f32.mrb[0].mxu0
      %v582 = vadd.f32 0.0, %v581
      %v583 = vpop.f32.mrb[0].mxu0
      %v584 = vpop.f32.mrb[0].mxu0
      %v585 = vadd.f32 0.0, %v584
      %v586 = vpop.f32.mrb[0].mxu0
      %587 = vmatprep.mubr.bf16.mxu0 0
      %588 = vmatmul.mubr.bf16.gmra.mrb[0].mxu0 %v398
      %v589 = vpop.f32.mrb[0].mxu0
      %v590 = vadd.f32 0.0, %v589
      %v591 = vpop.f32.mrb[0].mxu0
      %v592 = vpop.f32.mrb[0].mxu0
      %v593 = vadd.f32 0.0, %v592
      %v594 = vpop.f32.mrb[0].mxu0
      %595 = vmatprep.mubr.bf16.mxu0 0
      %596 = vmatmul.mubr.bf16.gmra.mrb[0].mxu0 %v399
      %v597 = vpop.f32.mrb[0].mxu0
      %v598 = vadd.f32 0.0, %v597
      %v599 = vpop.f32.mrb[0].mxu0
      %v600 = vpop.f32.mrb[0].mxu0
      %v601 = vadd.f32 0.0, %v600
      %v602 = vpop.f32.mrb[0].mxu0
      %603 = vmatprep.mubr.bf16.mxu0 0
      %604 = vmatmul.mubr.bf16.gmra.mrb[0].mxu0 %v400
      %v605 = vpop.f32.mrb[0].mxu0
      %v606 = vadd.f32 0.0, %v605
      %v607 = vpop.f32.mrb[0].mxu0
      %v608 = vpop.f32.mrb[0].mxu0
      %v609 = vadd.f32 0.0, %v608
      %v610 = vpop.f32.mrb[0].mxu0
      %611 = vmatprep.mubr.bf16.mxu0 0
      %612 = vmatmul.mubr.bf16.gmra.mrb[0].mxu0 %v401
      %v613 = vpop.f32.mrb[0].mxu0
      %v614 = vadd.f32 0.0, %v613
      %v615 = vpop.f32.mrb[0].mxu0
      %v616 = vpop.f32.mrb[0].mxu0
      %v617 = vadd.f32 0.0, %v616
      %v618 = vpop.f32.mrb[0].mxu0
      %619 = vmatprep.mubr.bf16.mxu0 0
      %620 = vmatmul.mubr.bf16.gmra.mrb[0].mxu0 %v402
      %v621 = vpop.f32.mrb[0].mxu0
      %v622 = vadd.f32 0.0, %v621
      %v623 = vpop.f32.mrb[0].mxu0
      %v624 = vpop.f32.mrb[0].mxu0
      %v625 = vadd.f32 0.0, %v624
      %v626 = vpop.f32.mrb[0].mxu0
      %627 = vdwg.mxu0
      %v630 = vunpack.c.l.b16 %v256
      %v631 = vunpack.c.l.b16 %v257
      %v632 = vpack.c.b16 %v631, %v630
      %v650 = vunpack.c.l.b16 %v288
      %v651 = vunpack.c.l.b16 %v289
      %v652 = vunpack.c.l.b16 %v290
      %v653 = vunpack.c.l.b16 %v291
      %v654 = vunpack.c.l.b16 %v292
      %v655 = vunpack.c.l.b16 %v293
      %v656 = vunpack.c.l.b16 %v294
      %v657 = vunpack.c.l.b16 %v295
      %v658 = vunpack.c.l.b16 %v296
      %v659 = vunpack.c.l.b16 %v297
      %v660 = vunpack.c.l.b16 %v298
      %v661 = vunpack.c.l.b16 %v299
      %v662 = vunpack.c.l.b16 %v300
      %v663 = vunpack.c.l.b16 %v301
      %v664 = vunpack.c.l.b16 %v302
      %v665 = vunpack.c.l.b16 %v303
      %v666 = vpack.c.b16 %v651, %v650
      %v667 = vpack.c.b16 %v653, %v652
      %v668 = vpack.c.b16 %v655, %v654
      %v669 = vpack.c.b16 %v657, %v656
      %v670 = vpack.c.b16 %v659, %v658
      %v671 = vpack.c.b16 %v661, %v660
      %v672 = vpack.c.b16 %v663, %v662
      %v673 = vpack.c.b16 %v665, %v664
      %682 = vmatprep.subr.bf16.mxu0 0
      %683 = vmatpush1.bf16.msra.mxu0 %v666
      %684 = vmatprep.subr.bf16.mxu0 0
      %685 = vmatpush1.bf16.msra.mxu0 %v667
      %686 = vmatprep.subr.bf16.mxu0 0
      %687 = vmatpush1.bf16.msra.mxu0 %v668
      %688 = vmatprep.subr.bf16.mxu0 0
      %689 = vmatpush1.bf16.msra.mxu0 %v669
      %690 = vmatprep.subr.bf16.mxu0 0
      %691 = vmatpush1.bf16.msra.mxu0 %v670
      %692 = vmatprep.subr.bf16.mxu0 0
      %693 = vmatpush1.bf16.msra.mxu0 %v671
      %694 = vmatprep.subr.bf16.mxu0 0
      %695 = vmatpush1.bf16.msra.mxu0 %v672
      %696 = vmatprep.subr.bf16.mxu0 0
      %697 = vmatpush1.bf16.msra.mxu0 %v673
      %698 = vmatprep.subr.bf16.mxu0 0
      %699 = vmatpush1.bf16.msra.mxu0 0
      %700 = vmatprep.subr.bf16.mxu0 0
      %701 = vmatpush1.bf16.msra.mxu0 0
      %702 = vmatprep.subr.bf16.mxu0 0
      %703 = vmatpush1.bf16.msra.mxu0 0
      %704 = vmatprep.subr.bf16.mxu0 0
      %705 = vmatpush1.bf16.msra.mxu0 0
      %706 = vmatprep.subr.bf16.mxu0 0
      %707 = vmatpush1.bf16.msra.mxu0 0
      %708 = vmatprep.subr.bf16.mxu0 0
      %709 = vmatpush1.bf16.msra.mxu0 0
      %710 = vmatprep.subr.bf16.mxu0 0
      %711 = vmatpush1.bf16.msra.mxu0 0
      %712 = vmatprep.subr.bf16.mxu0 0
      %713 = vmatpush1.bf16.msra.mxu0 0
      %714 = vmatprep.mubr.bf16.mxu0 0
      %715 = vmatmul.mubr.bf16.gmra.mrb[0].mxu0 %v632
      %v716 = vpop.f32.mrb[0].mxu0
      %v717 = vadd.f32 %v502, %v716
      %v718 = vpop.f32.mrb[0].mxu0
      %v719 = vpop.f32.mrb[0].mxu0
      %v720 = vadd.f32 %v505, %v719
      %v721 = vpop.f32.mrb[0].mxu0
      %722 = vmatprep.mubr.bf16.mxu0 0
      %723 = vmatmul.mubr.bf16.gmra.mrb[0].mxu0 %v387
      %v724 = vpop.f32.mrb[0].mxu0
      %v725 = vadd.f32 %v510, %v724
      %v726 = vpop.f32.mrb[0].mxu0
      %v727 = vpop.f32.mrb[0].mxu0
      %v728 = vadd.f32 %v513, %v727
      %v729 = vpop.f32.mrb[0].mxu0
      %730 = vmatprep.mubr.bf16.mxu0 0
      %731 = vmatmul.mubr.bf16.gmra.mrb[0].mxu0 %v388
      %v732 = vpop.f32.mrb[0].mxu0
      %v733 = vadd.f32 %v518, %v732
      %v734 = vpop.f32.mrb[0].mxu0
      %v735 = vpop.f32.mrb[0].mxu0
      %v736 = vadd.f32 %v521, %v735
      %v737 = vpop.f32.mrb[0].mxu0
      %738 = vmatprep.mubr.bf16.mxu0 0
      %739 = vmatmul.mubr.bf16.gmra.mrb[0].mxu0 %v389
      %v740 = vpop.f32.mrb[0].mxu0
      %v741 = vadd.f32 %v526, %v740
      %v742 = vpop.f32.mrb[0].mxu0
      %v743 = vpop.f32.mrb[0].mxu0
      %v744 = vadd.f32 %v529, %v743
      %v745 = vpop.f32.mrb[0].mxu0
      %746 = vmatprep.mubr.bf16.mxu0 0
      %747 = vmatmul.mubr.bf16.gmra.mrb[0].mxu0 %v390
      %v748 = vpop.f32.mrb[0].mxu0
      %v749 = vadd.f32 %v534, %v748
      %v750 = vpop.f32.mrb[0].mxu0
      %v751 = vpop.f32.mrb[0].mxu0
      %v752 = vadd.f32 %v537, %v751
      %v753 = vpop.f32.mrb[0].mxu0
      %754 = vmatprep.mubr.bf16.mxu0 0
      %755 = vmatmul.mubr.bf16.gmra.mrb[0].mxu0 %v391
      %v756 = vpop.f32.mrb[0].mxu0
      %v757 = vadd.f32 %v542, %v756
      %v758 = vpop.f32.mrb[0].mxu0
      %v759 = vpop.f32.mrb[0].mxu0
      %v760 = vadd.f32 %v545, %v759
      %v761 = vpop.f32.mrb[0].mxu0
      %762 = vmatprep.mubr.bf16.mxu0 0
      %763 = vmatmul.mubr.bf16.gmra.mrb[0].mxu0 %v392
      %v764 = vpop.f32.mrb[0].mxu0
      %v765 = vadd.f32 %v550, %v764
      %v766 = vpop.f32.mrb[0].mxu0
      %v767 = vpop.f32.mrb[0].mxu0
      %v768 = vadd.f32 %v553, %v767
      %v769 = vpop.f32.mrb[0].mxu0
      %770 = vmatprep.mubr.bf16.mxu0 0
      %771 = vmatmul.mubr.bf16.gmra.mrb[0].mxu0 %v393
      %v772 = vpop.f32.mrb[0].mxu0
      %v773 = vadd.f32 %v558, %v772
      %v774 = vpop.f32.mrb[0].mxu0
      %v775 = vpop.f32.mrb[0].mxu0
      %v776 = vadd.f32 %v561, %v775
      %v777 = vpop.f32.mrb[0].mxu0
      %778 = vmatprep.mubr.bf16.mxu0 0
      %779 = vmatmul.mubr.bf16.gmra.mrb[0].mxu0 %v394
      %v780 = vpop.f32.mrb[0].mxu0
      %v781 = vadd.f32 %v566, %v780
      %v782 = vpop.f32.mrb[0].mxu0
      %v783 = vpop.f32.mrb[0].mxu0
      %v784 = vadd.f32 %v569, %v783
      %v785 = vpop.f32.mrb[0].mxu0
      %786 = vmatprep.mubr.bf16.mxu0 0
      %787 = vmatmul.mubr.bf16.gmra.mrb[0].mxu0 %v395
      %v788 = vpop.f32.mrb[0].mxu0
      %v789 = vadd.f32 %v574, %v788
      %v790 = vpop.f32.mrb[0].mxu0
      %v791 = vpop.f32.mrb[0].mxu0
      %v792 = vadd.f32 %v577, %v791
      %v793 = vpop.f32.mrb[0].mxu0
      %794 = vmatprep.mubr.bf16.mxu0 0
      %795 = vmatmul.mubr.bf16.gmra.mrb[0].mxu0 %v396
      %v796 = vpop.f32.mrb[0].mxu0
      %v797 = vadd.f32 %v582, %v796
      %v798 = vpop.f32.mrb[0].mxu0
      %v799 = vpop.f32.mrb[0].mxu0
      %v800 = vadd.f32 %v585, %v799
      %v801 = vpop.f32.mrb[0].mxu0
      %802 = vmatprep.mubr.bf16.mxu0 0
      %803 = vmatmul.mubr.bf16.gmra.mrb[0].mxu0 %v397
      %v804 = vpop.f32.mrb[0].mxu0
      %v805 = vadd.f32 %v590, %v804
      %v806 = vpop.f32.mrb[0].mxu0
      %v807 = vpop.f32.mrb[0].mxu0
      %v808 = vadd.f32 %v593, %v807
      %v809 = vpop.f32.mrb[0].mxu0
      %810 = vmatprep.mubr.bf16.mxu0 0
      %811 = vmatmul.mubr.bf16.gmra.mrb[0].mxu0 %v398
      %v812 = vpop.f32.mrb[0].mxu0
      %v813 = vadd.f32 %v598, %v812
      %v814 = vpop.f32.mrb[0].mxu0
      %v815 = vpop.f32.mrb[0].mxu0
      %v816 = vadd.f32 %v601, %v815
      %v817 = vpop.f32.mrb[0].mxu0
      %818 = vmatprep.mubr.bf16.mxu0 0
      %819 = vmatmul.mubr.bf16.gmra.mrb[0].mxu0 %v399
      %v820 = vpop.f32.mrb[0].mxu0
      %v821 = vadd.f32 %v606, %v820
      %v822 = vpop.f32.mrb[0].mxu0
      %v823 = vpop.f32.mrb[0].mxu0
      %v824 = vadd.f32 %v609, %v823
      %v825 = vpop.f32.mrb[0].mxu0
      %826 = vmatprep.mubr.bf16.mxu0 0
      %827 = vmatmul.mubr.bf16.gmra.mrb[0].mxu0 %v400
      %v828 = vpop.f32.mrb[0].mxu0
      %v829 = vadd.f32 %v614, %v828
      %v830 = vpop.f32.mrb[0].mxu0
      %v831 = vpop.f32.mrb[0].mxu0
      %v832 = vadd.f32 %v617, %v831
      %v833 = vpop.f32.mrb[0].mxu0
      %834 = vmatprep.mubr.bf16.mxu0 0
      %835 = vmatmul.mubr.bf16.gmra.mrb[0].mxu0 %v401
      %v836 = vpop.f32.mrb[0].mxu0
      %v837 = vadd.f32 %v622, %v836
      %v838 = vpop.f32.mrb[0].mxu0
      %v839 = vpop.f32.mrb[0].mxu0
      %v840 = vadd.f32 %v625, %v839
      %v841 = vpop.f32.mrb[0].mxu0
      %842 = vdwg.mxu0
      %v843 = vld [vmem:[%s234 + $0x10] sm:$0xf]
      %v844 = vld [vmem:[%s234 + $0x14] sm:$0xf]
      %v845 = vld [vmem:[%s234 + $0x18] sm:$0xf]
      %v846 = vld [vmem:[%s234 + $0x1c] sm:$0xf]
      %v847 = vld [vmem:[%s234 + $0x20] sm:$0xf]
      %v848 = vld [vmem:[%s234 + $0x24] sm:$0xf]
      %v849 = vld [vmem:[%s234 + $0x28] sm:$0xf]
      %v850 = vld [vmem:[%s234 + $0x2c] sm:$0xf]
      %v851 = vld [vmem:[%s234 + $0x30] sm:$0xf]
      %v852 = vld [vmem:[%s234 + $0x34] sm:$0xf]
      %v853 = vld [vmem:[%s234 + $0x38] sm:$0xf]
      %v854 = vld [vmem:[%s234 + $0x3c] sm:$0xf]
      %v855 = vld [vmem:[%s234 + $0x40] sm:$0xf]
      %v856 = vld [vmem:[%s234 + $0x44] sm:$0xf]
      %v857 = vld [vmem:[%s234 + $0x48] sm:$0xf]
      %v858 = vld [vmem:[%s234 + $0x4c] sm:$0xf]
      %v859 = vld [vmem:[%s234 + $0x50] sm:$0xf]
      %v860 = vld [vmem:[%s234 + $0x54] sm:$0xf]
      %v861 = vld [vmem:[%s234 + $0x58] sm:$0xf]
      %v862 = vld [vmem:[%s234 + $0x5c] sm:$0xf]
      %v863 = vld [vmem:[%s234 + $0x60] sm:$0xf]
      %v864 = vld [vmem:[%s234 + $0x64] sm:$0xf]
      %v865 = vld [vmem:[%s234 + $0x68] sm:$0xf]
      %v866 = vld [vmem:[%s234 + $0x6c] sm:$0xf]
      %v867 = vld [vmem:[%s234 + $0x70] sm:$0xf]
      %v868 = vld [vmem:[%s234 + $0x74] sm:$0xf]
      %v869 = vld [vmem:[%s234 + $0x78] sm:$0xf]
      %v870 = vld [vmem:[%s234 + $0x7c] sm:$0xf]
      %v871 = vld [vmem:[%s234 + $0x80] sm:$0xf]
      %v872 = vld [vmem:[%s234 + $0x84] sm:$0xf]
      %v873 = vld [vmem:[%s234 + $0x88] sm:$0xf]
      %v874 = vld [vmem:[%s234 + $0x8c] sm:$0xf]
      %s875 = scalar_lea.vmem %s239, 128
      %v876 = vld [vmem:[%s875] sm:$0xf]
      %v877 = vld [vmem:[%s875 + $0x4] sm:$0xf]
      %v878 = vld [vmem:[%s875 + $0x8] sm:$0xf]
      %v879 = vld [vmem:[%s875 + $0xc] sm:$0xf]
      %v880 = vld [vmem:[%s875 + $0x10] sm:$0xf]
      %v881 = vld [vmem:[%s875 + $0x14] sm:$0xf]
      %v882 = vld [vmem:[%s875 + $0x18] sm:$0xf]
      %v883 = vld [vmem:[%s875 + $0x1c] sm:$0xf]
      %v884 = vld [vmem:[%s875 + $0x20] sm:$0xf]
      %v885 = vld [vmem:[%s875 + $0x24] sm:$0xf]
      %v886 = vld [vmem:[%s875 + $0x28] sm:$0xf]
      %v887 = vld [vmem:[%s875 + $0x2c] sm:$0xf]
      %v888 = vld [vmem:[%s875 + $0x30] sm:$0xf]
      %v889 = vld [vmem:[%s875 + $0x34] sm:$0xf]
      %v890 = vld [vmem:[%s875 + $0x38] sm:$0xf]
      %v891 = vld [vmem:[%s875 + $0x3c] sm:$0xf]
      %v924 = vunpack.c.l.b16 %v843
      %v925 = vunpack.c.l.b16 %v844
      %v926 = vunpack.c.l.b16 %v845
      %v927 = vunpack.c.l.b16 %v846
      %v928 = vunpack.c.l.b16 %v847
      %v929 = vunpack.c.l.b16 %v848
      %v930 = vunpack.c.l.b16 %v849
      %v931 = vunpack.c.l.b16 %v850
      %v932 = vunpack.c.l.b16 %v851
      %v933 = vunpack.c.l.b16 %v852
      %v934 = vunpack.c.l.b16 %v853
      %v935 = vunpack.c.l.b16 %v854
      %v936 = vunpack.c.l.b16 %v855
      %v937 = vunpack.c.l.b16 %v856
      %v938 = vunpack.c.l.b16 %v857
      %v939 = vunpack.c.l.b16 %v858
      %v940 = vunpack.c.l.b16 %v859
      %v941 = vunpack.c.l.b16 %v860
      %v942 = vunpack.c.l.b16 %v861
      %v943 = vunpack.c.l.b16 %v862
      %v944 = vunpack.c.l.b16 %v863
      %v945 = vunpack.c.l.b16 %v864
      %v946 = vunpack.c.l.b16 %v865
      %v947 = vunpack.c.l.b16 %v866
      %v948 = vunpack.c.l.b16 %v867
      %v949 = vunpack.c.l.b16 %v868
      %v950 = vunpack.c.l.b16 %v869
      %v951 = vunpack.c.l.b16 %v870
      %v952 = vunpack.c.l.b16 %v871
      %v953 = vunpack.c.l.b16 %v872
      %v954 = vunpack.c.l.b16 %v873
      %v955 = vunpack.c.l.b16 %v874
      %v956 = vpack.c.b16 %v925, %v924
      %v957 = vpack.c.b16 %v927, %v926
      %v958 = vpack.c.b16 %v929, %v928
      %v959 = vpack.c.b16 %v931, %v930
      %v960 = vpack.c.b16 %v933, %v932
      %v961 = vpack.c.b16 %v935, %v934
      %v962 = vpack.c.b16 %v937, %v936
      %v963 = vpack.c.b16 %v939, %v938
      %v964 = vpack.c.b16 %v941, %v940
      %v965 = vpack.c.b16 %v943, %v942
      %v966 = vpack.c.b16 %v945, %v944
      %v967 = vpack.c.b16 %v947, %v946
      %v968 = vpack.c.b16 %v949, %v948
      %v969 = vpack.c.b16 %v951, %v950
      %v970 = vpack.c.b16 %v953, %v952
      %v971 = vpack.c.b16 %v955, %v954
      %v1004 = vunpack.c.l.b16 %v876
      %v1005 = vunpack.c.l.b16 %v877
      %v1006 = vunpack.c.l.b16 %v878
      %v1007 = vunpack.c.l.b16 %v879
      %v1008 = vunpack.c.l.b16 %v880
      %v1009 = vunpack.c.l.b16 %v881
      %v1010 = vunpack.c.l.b16 %v882
      %v1011 = vunpack.c.l.b16 %v883
      %v1012 = vunpack.c.l.b16 %v884
      %v1013 = vunpack.c.l.b16 %v885
      %v1014 = vunpack.c.l.b16 %v886
      %v1015 = vunpack.c.l.b16 %v887
      %v1016 = vunpack.c.l.b16 %v888
      %v1017 = vunpack.c.l.b16 %v889
      %v1018 = vunpack.c.l.b16 %v890
      %v1019 = vunpack.c.l.b16 %v891
      %v1020 = vpack.c.b16 %v1005, %v1004
      %v1021 = vpack.c.b16 %v1007, %v1006
      %v1022 = vpack.c.b16 %v1009, %v1008
      %v1023 = vpack.c.b16 %v1011, %v1010
      %v1024 = vpack.c.b16 %v1013, %v1012
      %v1025 = vpack.c.b16 %v1015, %v1014
      %v1026 = vpack.c.b16 %v1017, %v1016
      %v1027 = vpack.c.b16 %v1019, %v1018
      %1036 = vmatprep.subr.bf16.mxu0 0
      %1037 = vmatpush1.bf16.msra.mxu0 %v1020
      %1038 = vmatprep.subr.bf16.mxu0 0
      %1039 = vmatpush1.bf16.msra.mxu0 %v1021
      %1040 = vmatprep.subr.bf16.mxu0 0
      %1041 = vmatpush1.bf16.msra.mxu0 %v1022
      %1042 = vmatprep.subr.bf16.mxu0 0
      %1043 = vmatpush1.bf16.msra.mxu0 %v1023
      %1044 = vmatprep.subr.bf16.mxu0 0
      %1045 = vmatpush1.bf16.msra.mxu0 %v1024
      %1046 = vmatprep.subr.bf16.mxu0 0
      %1047 = vmatpush1.bf16.msra.mxu0 %v1025
      %1048 = vmatprep.subr.bf16.mxu0 0
      %1049 = vmatpush1.bf16.msra.mxu0 %v1026
      %1050 = vmatprep.subr.bf16.mxu0 0
      %1051 = vmatpush1.bf16.msra.mxu0 %v1027
      %1052 = vmatprep.subr.bf16.mxu0 0
      %1053 = vmatpush1.bf16.msra.mxu0 0
      %1054 = vmatprep.subr.bf16.mxu0 0
      %1055 = vmatpush1.bf16.msra.mxu0 0
      %1056 = vmatprep.subr.bf16.mxu0 0
      %1057 = vmatpush1.bf16.msra.mxu0 0
      %1058 = vmatprep.subr.bf16.mxu0 0
      %1059 = vmatpush1.bf16.msra.mxu0 0
      %1060 = vmatprep.subr.bf16.mxu0 0
      %1061 = vmatpush1.bf16.msra.mxu0 0
      %1062 = vmatprep.subr.bf16.mxu0 0
      %1063 = vmatpush1.bf16.msra.mxu0 0
      %1064 = vmatprep.subr.bf16.mxu0 0
      %1065 = vmatpush1.bf16.msra.mxu0 0
      %1066 = vmatprep.subr.bf16.mxu0 0
      %1067 = vmatpush1.bf16.msra.mxu0 0
      %1068 = vmatprep.mubr.bf16.mxu0 0
      %1069 = vmatmul.mubr.bf16.gmra.mrb[0].mxu0 %v956
      %v1070 = vpop.f32.mrb[0].mxu0
      %v1071 = vadd.f32 0.0, %v1070
      %v1072 = vpop.f32.mrb[0].mxu0
      %v1073 = vpop.f32.mrb[0].mxu0
      %v1074 = vadd.f32 0.0, %v1073
      %v1075 = vpop.f32.mrb[0].mxu0
      %1076 = vmatprep.mubr.bf16.mxu0 0
      %1077 = vmatmul.mubr.bf16.gmra.mrb[0].mxu0 %v957
      %v1078 = vpop.f32.mrb[0].mxu0
      %v1079 = vadd.f32 0.0, %v1078
      %v1080 = vpop.f32.mrb[0].mxu0
      %v1081 = vpop.f32.mrb[0].mxu0
      %v1082 = vadd.f32 0.0, %v1081
      %v1083 = vpop.f32.mrb[0].mxu0
      %1084 = vmatprep.mubr.bf16.mxu0 0
      %1085 = vmatmul.mubr.bf16.gmra.mrb[0].mxu0 %v958
      %v1086 = vpop.f32.mrb[0].mxu0
      %v1087 = vadd.f32 0.0, %v1086
      %v1088 = vpop.f32.mrb[0].mxu0
      %v1089 = vpop.f32.mrb[0].mxu0
      %v1090 = vadd.f32 0.0, %v1089
      %v1091 = vpop.f32.mrb[0].mxu0
      %1092 = vmatprep.mubr.bf16.mxu0 0
      %1093 = vmatmul.mubr.bf16.gmra.mrb[0].mxu0 %v959
      %v1094 = vpop.f32.mrb[0].mxu0
      %v1095 = vadd.f32 0.0, %v1094
      %v1096 = vpop.f32.mrb[0].mxu0
      %v1097 = vpop.f32.mrb[0].mxu0
      %v1098 = vadd.f32 0.0, %v1097
      %v1099 = vpop.f32.mrb[0].mxu0
      %1100 = vmatprep.mubr.bf16.mxu0 0
      %1101 = vmatmul.mubr.bf16.gmra.mrb[0].mxu0 %v960
      %v1102 = vpop.f32.mrb[0].mxu0
      %v1103 = vadd.f32 0.0, %v1102
      %v1104 = vpop.f32.mrb[0].mxu0
      %v1105 = vpop.f32.mrb[0].mxu0
      %v1106 = vadd.f32 0.0, %v1105
      %v1107 = vpop.f32.mrb[0].mxu0
      %1108 = vmatprep.mubr.bf16.mxu0 0
      %1109 = vmatmul.mubr.bf16.gmra.mrb[0].mxu0 %v961
      %v1110 = vpop.f32.mrb[0].mxu0
      %v1111 = vadd.f32 0.0, %v1110
      %v1112 = vpop.f32.mrb[0].mxu0
      %v1113 = vpop.f32.mrb[0].mxu0
      %v1114 = vadd.f32 0.0, %v1113
      %v1115 = vpop.f32.mrb[0].mxu0
      %1116 = vmatprep.mubr.bf16.mxu0 0
      %1117 = vmatmul.mubr.bf16.gmra.mrb[0].mxu0 %v962
      %v1118 = vpop.f32.mrb[0].mxu0
      %v1119 = vadd.f32 0.0, %v1118
      %v1120 = vpop.f32.mrb[0].mxu0
      %v1121 = vpop.f32.mrb[0].mxu0
      %v1122 = vadd.f32 0.0, %v1121
      %v1123 = vpop.f32.mrb[0].mxu0
      %1124 = vmatprep.mubr.bf16.mxu0 0
      %1125 = vmatmul.mubr.bf16.gmra.mrb[0].mxu0 %v963
      %v1126 = vpop.f32.mrb[0].mxu0
      %v1127 = vadd.f32 0.0, %v1126
      %v1128 = vpop.f32.mrb[0].mxu0
      %v1129 = vpop.f32.mrb[0].mxu0
      %v1130 = vadd.f32 0.0, %v1129
      %v1131 = vpop.f32.mrb[0].mxu0
      %1132 = vmatprep.mubr.bf16.mxu0 0
      %1133 = vmatmul.mubr.bf16.gmra.mrb[0].mxu0 %v964
      %v1134 = vpop.f32.mrb[0].mxu0
      %v1135 = vadd.f32 0.0, %v1134
      %v1136 = vpop.f32.mrb[0].mxu0
      %v1137 = vpop.f32.mrb[0].mxu0
      %v1138 = vadd.f32 0.0, %v1137
      %v1139 = vpop.f32.mrb[0].mxu0
      %1140 = vmatprep.mubr.bf16.mxu0 0
      %1141 = vmatmul.mubr.bf16.gmra.mrb[0].mxu0 %v965
      %v1142 = vpop.f32.mrb[0].mxu0
      %v1143 = vadd.f32 0.0, %v1142
      %v1144 = vpop.f32.mrb[0].mxu0
      %v1145 = vpop.f32.mrb[0].mxu0
      %v1146 = vadd.f32 0.0, %v1145
      %v1147 = vpop.f32.mrb[0].mxu0
      %1148 = vmatprep.mubr.bf16.mxu0 0
      %1149 = vmatmul.mubr.bf16.gmra.mrb[0].mxu0 %v966
      %v1150 = vpop.f32.mrb[0].mxu0
      %v1151 = vadd.f32 0.0, %v1150
      %v1152 = vpop.f32.mrb[0].mxu0
      %v1153 = vpop.f32.mrb[0].mxu0
      %v1154 = vadd.f32 0.0, %v1153
      %v1155 = vpop.f32.mrb[0].mxu0
      %1156 = vmatprep.mubr.bf16.mxu0 0
      %1157 = vmatmul.mubr.bf16.gmra.mrb[0].mxu0 %v967
      %v1158 = vpop.f32.mrb[0].mxu0
      %v1159 = vadd.f32 0.0, %v1158
      %v1160 = vpop.f32.mrb[0].mxu0
      %v1161 = vpop.f32.mrb[0].mxu0
      %v1162 = vadd.f32 0.0, %v1161
      %v1163 = vpop.f32.mrb[0].mxu0
      %1164 = vmatprep.mubr.bf16.mxu0 0
      %1165 = vmatmul.mubr.bf16.gmra.mrb[0].mxu0 %v968
      %v1166 = vpop.f32.mrb[0].mxu0
      %v1167 = vadd.f32 0.0, %v1166
      %v1168 = vpop.f32.mrb[0].mxu0
      %v1169 = vpop.f32.mrb[0].mxu0
      %v1170 = vadd.f32 0.0, %v1169
      %v1171 = vpop.f32.mrb[0].mxu0
      %1172 = vmatprep.mubr.bf16.mxu0 0
      %1173 = vmatmul.mubr.bf16.gmra.mrb[0].mxu0 %v969
      %v1174 = vpop.f32.mrb[0].mxu0
      %v1175 = vadd.f32 0.0, %v1174
      %v1176 = vpop.f32.mrb[0].mxu0
      %v1177 = vpop.f32.mrb[0].mxu0
      %v1178 = vadd.f32 0.0, %v1177
      %v1179 = vpop.f32.mrb[0].mxu0
      %1180 = vmatprep.mubr.bf16.mxu0 0
      %1181 = vmatmul.mubr.bf16.gmra.mrb[0].mxu0 %v970
      %v1182 = vpop.f32.mrb[0].mxu0
      %v1183 = vadd.f32 0.0, %v1182
      %v1184 = vpop.f32.mrb[0].mxu0
      %v1185 = vpop.f32.mrb[0].mxu0
      %v1186 = vadd.f32 0.0, %v1185
      %v1187 = vpop.f32.mrb[0].mxu0
      %1188 = vmatprep.mubr.bf16.mxu0 0
      %1189 = vmatmul.mubr.bf16.gmra.mrb[0].mxu0 %v971
      %v1190 = vpop.f32.mrb[0].mxu0
      %v1191 = vadd.f32 0.0, %v1190
      %v1192 = vpop.f32.mrb[0].mxu0
      %v1193 = vpop.f32.mrb[0].mxu0
      %v1194 = vadd.f32 0.0, %v1193
      %v1195 = vpop.f32.mrb[0].mxu0
      %1196 = vdwg.mxu0
      %v1197 = vadd.f32 %v717, %v1071
      %v1198 = vadd.f32 %v720, %v1074
      %v1199 = vadd.f32 %v725, %v1079
      %v1200 = vadd.f32 %v728, %v1082
      %v1201 = vadd.f32 %v733, %v1087
      %v1202 = vadd.f32 %v736, %v1090
      %v1203 = vadd.f32 %v741, %v1095
      %v1204 = vadd.f32 %v744, %v1098
      %v1205 = vadd.f32 %v749, %v1103
      %v1206 = vadd.f32 %v752, %v1106
      %v1207 = vadd.f32 %v757, %v1111
      %v1208 = vadd.f32 %v760, %v1114
      %v1209 = vadd.f32 %v765, %v1119
      %v1210 = vadd.f32 %v768, %v1122
      %v1211 = vadd.f32 %v773, %v1127
      %v1212 = vadd.f32 %v776, %v1130
      %v1213 = vadd.f32 %v781, %v1135
      %v1214 = vadd.f32 %v784, %v1138
      %v1215 = vadd.f32 %v789, %v1143
      %v1216 = vadd.f32 %v792, %v1146
      %v1217 = vadd.f32 %v797, %v1151
      %v1218 = vadd.f32 %v800, %v1154
      %v1219 = vadd.f32 %v805, %v1159
      %v1220 = vadd.f32 %v808, %v1162
      %v1221 = vadd.f32 %v813, %v1167
      %v1222 = vadd.f32 %v816, %v1170
      %v1223 = vadd.f32 %v821, %v1175
      %v1224 = vadd.f32 %v824, %v1178
      %v1225 = vadd.f32 %v829, %v1183
      %v1226 = vadd.f32 %v832, %v1186
      %v1227 = vadd.f32 %v837, %v1191
      %v1228 = vadd.f32 %v840, %v1194
      %p1229 = scmp.eq.s32.totalorder %s21, 0
      // Predicated region
      $region29: #{_lambda_.10} parent=27 // pred_check
        %p1230 = pneg %p1229
      $region30: #{_lambda_.10} parent=27 // pred_check_branch
        %1232 = sbr.rel (%p1230) target = $region32
      $region31: #{_lambda_.10} parent=27 // pred_region
        %1233 = vst [vmem:[%s251] sm:$0x1] 0.0
        %1234 = vst [vmem:[%s254] sm:$0x1] 0.0
      $region32: #{_lambda_.10} parent=27 // pred_fallthru
        _
      %v1235 = vld [vmem:[%s251] sm:$0x1]
      %v1236 = vadd.f32 %v1197, %v1198
      %v1237 = vadd.f32 %v1236, %v1199
      %v1238 = vadd.f32 %v1237, %v1200
      %v1239 = vadd.f32 %v1238, %v1201
      %v1240 = vadd.f32 %v1239, %v1202
      %v1241 = vadd.f32 %v1240, %v1203
      %v1242 = vadd.f32 %v1241, %v1204
      %v1243 = vadd.f32 %v1242, %v1205
      %v1244 = vadd.f32 %v1243, %v1206
      %v1245 = vadd.f32 %v1244, %v1207
      %v1246 = vadd.f32 %v1245, %v1208
      %v1247 = vadd.f32 %v1246, %v1209
      %v1248 = vadd.f32 %v1247, %v1210
      %v1249 = vadd.f32 %v1248, %v1211
      %v1250 = vadd.f32 %v1249, %v1212
      %v1251 = vadd.f32 %v1250, %v1213
      %v1252 = vadd.f32 %v1251, %v1214
      %v1253 = vadd.f32 %v1252, %v1215
      %v1254 = vadd.f32 %v1253, %v1216
      %v1255 = vadd.f32 %v1254, %v1217
      %v1256 = vadd.f32 %v1255, %v1218
      %v1257 = vadd.f32 %v1256, %v1219
      %v1258 = vadd.f32 %v1257, %v1220
      %v1259 = vadd.f32 %v1258, %v1221
      %v1260 = vadd.f32 %v1259, %v1222
      %v1261 = vadd.f32 %v1260, %v1223
      %v1262 = vadd.f32 %v1261, %v1224
      %v1263 = vadd.f32 %v1262, %v1225
      %v1264 = vadd.f32 %v1263, %v1226
      %v1265 = vadd.f32 %v1264, %v1227
      %v1266 = vadd.f32 %v1265, %v1228
      %v1267 = vrot.slane %v1266, 4
      %v1268 = vadd.f32 %v1266, %v1267
      %v1269 = vrot.slane %v1268, 2
      %v1270 = vadd.f32 %v1268, %v1269
      %v1271 = vrot.slane %v1270, 1
      %v1272 = vadd.f32 %v1270, %v1271
      %v1273 = vadd.f32 %v1235, %v1272
      %1274 = vst [vmem:[%s251] sm:$0x1] %v1273
      %v1275 = vld [vmem:[%s254] sm:$0x1]
      %v1276 = vmul.f32 %v1197, %v1197
      %v1277 = vmul.f32 %v1198, %v1198
      %v1278 = vmul.f32 %v1199, %v1199
      %v1279 = vmul.f32 %v1200, %v1200
      %v1280 = vmul.f32 %v1201, %v1201
      %v1281 = vmul.f32 %v1202, %v1202
      %v1282 = vmul.f32 %v1203, %v1203
      %v1283 = vmul.f32 %v1204, %v1204
      %v1284 = vmul.f32 %v1205, %v1205
      %v1285 = vmul.f32 %v1206, %v1206
      %v1286 = vmul.f32 %v1207, %v1207
      %v1287 = vmul.f32 %v1208, %v1208
      %v1288 = vmul.f32 %v1209, %v1209
      %v1289 = vmul.f32 %v1210, %v1210
      %v1290 = vmul.f32 %v1211, %v1211
      %v1291 = vmul.f32 %v1212, %v1212
      %v1292 = vmul.f32 %v1213, %v1213
      %v1293 = vmul.f32 %v1214, %v1214
      %v1294 = vmul.f32 %v1215, %v1215
      %v1295 = vmul.f32 %v1216, %v1216
      %v1296 = vmul.f32 %v1217, %v1217
      %v1297 = vmul.f32 %v1218, %v1218
      %v1298 = vmul.f32 %v1219, %v1219
      %v1299 = vmul.f32 %v1220, %v1220
      %v1300 = vmul.f32 %v1221, %v1221
      %v1301 = vmul.f32 %v1222, %v1222
      %v1302 = vmul.f32 %v1223, %v1223
      %v1303 = vmul.f32 %v1224, %v1224
      %v1304 = vmul.f32 %v1225, %v1225
      %v1305 = vmul.f32 %v1226, %v1226
      %v1306 = vmul.f32 %v1227, %v1227
      %v1307 = vmul.f32 %v1228, %v1228
      %v1308 = vadd.f32 %v1276, %v1277
      %v1309 = vadd.f32 %v1308, %v1278
      %v1310 = vadd.f32 %v1309, %v1279
      %v1311 = vadd.f32 %v1310, %v1280
      %v1312 = vadd.f32 %v1311, %v1281
      %v1313 = vadd.f32 %v1312, %v1282
      %v1314 = vadd.f32 %v1313, %v1283
      %v1315 = vadd.f32 %v1314, %v1284
      %v1316 = vadd.f32 %v1315, %v1285
      %v1317 = vadd.f32 %v1316, %v1286
      %v1318 = vadd.f32 %v1317, %v1287
      %v1319 = vadd.f32 %v1318, %v1288
      %v1320 = vadd.f32 %v1319, %v1289
      %v1321 = vadd.f32 %v1320, %v1290
      %v1322 = vadd.f32 %v1321, %v1291
      %v1323 = vadd.f32 %v1322, %v1292
      %v1324 = vadd.f32 %v1323, %v1293
      %v1325 = vadd.f32 %v1324, %v1294
      %v1326 = vadd.f32 %v1325, %v1295
      %v1327 = vadd.f32 %v1326, %v1296
      %v1328 = vadd.f32 %v1327, %v1297
      %v1329 = vadd.f32 %v1328, %v1298
      %v1330 = vadd.f32 %v1329, %v1299
      %v1331 = vadd.f32 %v1330, %v1300
      %v1332 = vadd.f32 %v1331, %v1301
      %v1333 = vadd.f32 %v1332, %v1302
      %v1334 = vadd.f32 %v1333, %v1303
      %v1335 = vadd.f32 %v1334, %v1304
      %v1336 = vadd.f32 %v1335, %v1305
      %v1337 = vadd.f32 %v1336, %v1306
      %v1338 = vadd.f32 %v1337, %v1307
      %v1339 = vrot.slane %v1338, 4
      %v1340 = vadd.f32 %v1338, %v1339
      %v1341 = vrot.slane %v1340, 2
      %v1342 = vadd.f32 %v1340, %v1341
      %v1343 = vrot.slane %v1342, 1
      %v1344 = vadd.f32 %v1342, %v1343
      %v1345 = vadd.f32 %v1275, %v1344
      %1346 = vst [vmem:[%s254] sm:$0x1] %v1345
      %v1347 = vpack.c.bf16 %v1198, %v1197
      %v1348 = vpack.c.bf16 %v1200, %v1199
      %v1349 = vpack.c.bf16 %v1202, %v1201
      %v1350 = vpack.c.bf16 %v1204, %v1203
      %v1351 = vpack.c.bf16 %v1206, %v1205
      %v1352 = vpack.c.bf16 %v1208, %v1207
      %v1353 = vpack.c.bf16 %v1210, %v1209
      %v1354 = vpack.c.bf16 %v1212, %v1211
      %v1355 = vpack.c.bf16 %v1214, %v1213
      %v1356 = vpack.c.bf16 %v1216, %v1215
      %v1357 = vpack.c.bf16 %v1218, %v1217
      %v1358 = vpack.c.bf16 %v1220, %v1219
      %v1359 = vpack.c.bf16 %v1222, %v1221
      %v1360 = vpack.c.bf16 %v1224, %v1223
      %v1361 = vpack.c.bf16 %v1226, %v1225
      %v1362 = vpack.c.bf16 %v1228, %v1227
      %v1379 = vunpack.c.l.b16 %v1347
      %v1380 = vunpack.c.h.b16 %v1347
      %v1381 = vunpack.c.l.b16 %v1348
      %v1382 = vunpack.c.h.b16 %v1348
      %v1383 = vunpack.c.l.b16 %v1349
      %v1384 = vunpack.c.h.b16 %v1349
      %v1385 = vunpack.c.l.b16 %v1350
      %v1386 = vunpack.c.h.b16 %v1350
      %v1387 = vunpack.c.l.b16 %v1351
      %v1388 = vunpack.c.h.b16 %v1351
      %v1389 = vunpack.c.l.b16 %v1352
      %v1390 = vunpack.c.h.b16 %v1352
      %v1391 = vunpack.c.l.b16 %v1353
      %v1392 = vunpack.c.h.b16 %v1353
      %v1393 = vunpack.c.l.b16 %v1354
      %v1394 = vunpack.c.h.b16 %v1354
      %v1395 = vunpack.c.l.b16 %v1355
      %v1396 = vunpack.c.h.b16 %v1355
      %v1397 = vunpack.c.l.b16 %v1356
      %v1398 = vunpack.c.h.b16 %v1356
      %v1399 = vunpack.c.l.b16 %v1357
      %v1400 = vunpack.c.h.b16 %v1357
      %v1401 = vunpack.c.l.b16 %v1358
      %v1402 = vunpack.c.h.b16 %v1358
      %v1403 = vunpack.c.l.b16 %v1359
      %v1404 = vunpack.c.h.b16 %v1359
      %v1405 = vunpack.c.l.b16 %v1360
      %v1406 = vunpack.c.h.b16 %v1360
      %v1407 = vunpack.c.l.b16 %v1361
      %v1408 = vunpack.c.h.b16 %v1361
      %v1409 = vunpack.c.l.b16 %v1362
      %v1410 = vunpack.c.h.b16 %v1362
      %v1411 = vpack.c.b16 %v1379, %v1379
      %v1412 = vpack.c.b16 %v1380, %v1380
      %v1413 = vpack.c.b16 %v1381, %v1381
      %v1414 = vpack.c.b16 %v1382, %v1382
      %v1415 = vpack.c.b16 %v1383, %v1383
      %v1416 = vpack.c.b16 %v1384, %v1384
      %v1417 = vpack.c.b16 %v1385, %v1385
      %v1418 = vpack.c.b16 %v1386, %v1386
      %v1419 = vpack.c.b16 %v1387, %v1387
      %v1420 = vpack.c.b16 %v1388, %v1388
      %v1421 = vpack.c.b16 %v1389, %v1389
      %v1422 = vpack.c.b16 %v1390, %v1390
      %v1423 = vpack.c.b16 %v1391, %v1391
      %v1424 = vpack.c.b16 %v1392, %v1392
      %v1425 = vpack.c.b16 %v1393, %v1393
      %v1426 = vpack.c.b16 %v1394, %v1394
      %v1427 = vpack.c.b16 %v1395, %v1395
      %v1428 = vpack.c.b16 %v1396, %v1396
      %v1429 = vpack.c.b16 %v1397, %v1397
      %v1430 = vpack.c.b16 %v1398, %v1398
      %v1431 = vpack.c.b16 %v1399, %v1399
      %v1432 = vpack.c.b16 %v1400, %v1400
      %v1433 = vpack.c.b16 %v1401, %v1401
      %v1434 = vpack.c.b16 %v1402, %v1402
      %v1435 = vpack.c.b16 %v1403, %v1403
      %v1436 = vpack.c.b16 %v1404, %v1404
      %v1437 = vpack.c.b16 %v1405, %v1405
      %v1438 = vpack.c.b16 %v1406, %v1406
      %v1439 = vpack.c.b16 %v1407, %v1407
      %v1440 = vpack.c.b16 %v1408, %v1408
      %v1441 = vpack.c.b16 %v1409, %v1409
      %v1442 = vpack.c.b16 %v1410, %v1410
      %1475 = vst [vmem:[%s247] sm:$0xf] %v1411
      %1476 = vst [vmem:[%s247 + $0x4] sm:$0xf] %v1412
      %1477 = vst [vmem:[%s247 + $0x8] sm:$0xf] %v1413
      %1478 = vst [vmem:[%s247 + $0xc] sm:$0xf] %v1414
      %1479 = vst [vmem:[%s247 + $0x10] sm:$0xf] %v1415
      %1480 = vst [vmem:[%s247 + $0x14] sm:$0xf] %v1416
      %1481 = vst [vmem:[%s247 + $0x18] sm:$0xf] %v1417
      %1482 = vst [vmem:[%s247 + $0x1c] sm:$0xf] %v1418
      %1483 = vst [vmem:[%s247 + $0x20] sm:$0xf] %v1419
      %1484 = vst [vmem:[%s247 + $0x24] sm:$0xf] %v1420
      %1485 = vst [vmem:[%s247 + $0x28] sm:$0xf] %v1421
      %1486 = vst [vmem:[%s247 + $0x2c] sm:$0xf] %v1422
      %1487 = vst [vmem:[%s247 + $0x30] sm:$0xf] %v1423
      %1488 = vst [vmem:[%s247 + $0x34] sm:$0xf] %v1424
      %1489 = vst [vmem:[%s247 + $0x38] sm:$0xf] %v1425
      %1490 = vst [vmem:[%s247 + $0x3c] sm:$0xf] %v1426
      %1491 = vst [vmem:[%s247 + $0x40] sm:$0xf] %v1427
      %1492 = vst [vmem:[%s247 + $0x44] sm:$0xf] %v1428
      %1493 = vst [vmem:[%s247 + $0x48] sm:$0xf] %v1429
      %1494 = vst [vmem:[%s247 + $0x4c] sm:$0xf] %v1430
      %1495 = vst [vmem:[%s247 + $0x50] sm:$0xf] %v1431
      %1496 = vst [vmem:[%s247 + $0x54] sm:$0xf] %v1432
      %1497 = vst [vmem:[%s247 + $0x58] sm:$0xf] %v1433
      %1498 = vst [vmem:[%s247 + $0x5c] sm:$0xf] %v1434
      %1499 = vst [vmem:[%s247 + $0x60] sm:$0xf] %v1435
      %1500 = vst [vmem:[%s247 + $0x64] sm:$0xf] %v1436
      %1501 = vst [vmem:[%s247 + $0x68] sm:$0xf] %v1437
      %1502 = vst [vmem:[%s247 + $0x6c] sm:$0xf] %v1438
      %1503 = vst [vmem:[%s247 + $0x70] sm:$0xf] %v1439
      %1504 = vst [vmem:[%s247 + $0x74] sm:$0xf] %v1440
      %1505 = vst [vmem:[%s247 + $0x78] sm:$0xf] %v1441
      %1506 = vst [vmem:[%s247 + $0x7c] sm:$0xf] %v1442
      %s1507 = smul.u32 32, %s21
      %p1508 = scmp.lt.s32.totalorder %s1507, 63
      %s1509 = scalar_select %p1508, %s1507, 63
      %p1510 = scmp.lt.s32.totalorder %s20, 0
      %s1511 = scalar_select %p1510, %s20, 0
      %s1512 = sadd.s32 %s1511, %s1509
      %s1513 = smul.addr %s1512, 4
      %s1514 = scalar_lea.vmem %s2, %s1513
      %p1515 = scmp.lt.s32.totalorder %s20, 0
      %s1516 = scalar_select %p1515, %s20, 0
      %s1517 = scalar_lea.vmem %s3, %s1516
      %p1518 = scmp.lt.s32.totalorder %s20, 0
      %s1519 = scalar_select %p1518, %s20, 0
      %s1520 = scalar_lea.vmem %s4, %s1519
      // Predicated region
      $region33: #{_lambda_.10} parent=27 // pred_check
        %p1521 = pneg %p100
      $region34: #{_lambda_.10} parent=27 // pred_check_branch
        %1523 = sbr.rel (%p1521) target = $region36
      $region35: #{_lambda_.10} parent=27 // pred_region
        %s1524 = smul.u32 32, %s21
      $region36: #{_lambda_.10} parent=27 // pred_fallthru
        _
      // Predicated region
      $region37: #{_lambda_.10} parent=27 // pred_check
        %p1525 = pneg %p126
      $region38: #{_lambda_.10} parent=27 // pred_check_branch
        %1527 = sbr.rel (%p1525) target = $region40
      $region39: #{_lambda_.10} parent=27 // pred_region
        _
      $region40: #{_lambda_.10} parent=27 // pred_fallthru
        _
      // Predicated region
      $region41: #{_lambda_.10} parent=27 // pred_check
        %p1528 = pneg %p152
      $region42: #{_lambda_.10} parent=27 // pred_check_branch
        %1530 = sbr.rel (%p1528) target = $region44
      $region43: #{_lambda_.10} parent=27 // pred_region
        _
      $region44: #{_lambda_.10} parent=27 // pred_fallthru
        _
      // Predicated region
      $region45: #{_lambda_.10} parent=27 // pred_check
        %p1531 = pneg %p126
      $region46: #{_lambda_.10} parent=27 // pred_check_branch
        %1533 = sbr.rel (%p1531) target = $region48
      $region47: #{_lambda_.10} parent=27 // pred_region
        %p1534 = scmp.lt.s32.totalorder %s20, 0
        %s1535 = scalar_select %p1534, %s20, 0
        %s1536 = scalar_lea.vmem %s3, %s1535
      $region48: #{_lambda_.10} parent=27 // pred_fallthru
        _
      // Predicated region
      $region49: #{_lambda_.10} parent=27 // pred_check
        %p1537 = pneg %p152
      $region50: #{_lambda_.10} parent=27 // pred_check_branch
        %1539 = sbr.rel (%p1537) target = $region52
      $region51: #{_lambda_.10} parent=27 // pred_region
        %p1540 = scmp.lt.s32.totalorder %s20, 0
        %s1541 = scalar_select %p1540, %s20, 0
        %s1542 = scalar_lea.vmem %s4, %s1541
      $region52: #{_lambda_.10} parent=27 // pred_fallthru
        _
    $region28: #{_lambda_.10} parent=5 // pred_fallthru
      _
    %p1543 = scmp.le.s32.totalorder 2, %s11
    // Predicated region
    $region53: #{_lambda_.10} parent=5 // pred_check
      %p1544 = pneg %p1543
    $region54: #{_lambda_.10} parent=5 // pred_check_branch
      %1546 = sbr.rel (%p1544) target = $region56
    $region55: #{_lambda_.10} parent=5 // pred_region
      %s1547 = ssub.s32 %s11, 2
      // Predicated region
      $region57: #{_lambda_.10} parent=55 // pred_check
        %p1548 = pneg %p106
      $region58: #{_lambda_.10} parent=55 // pred_check_branch
        %1550 = sbr.rel (%p1548) target = $region60
      $region59: #{_lambda_.10} parent=55 // pred_region
        %s1551 = smul.u32 32, %s23
        %p1552 = scmp.lt.s32.totalorder %s1551, 63
        %s1553 = scalar_select %p1552, %s1551, 63
        %p1554 = scmp.lt.s32.totalorder %s22, 0
        %s1555 = scalar_select %p1554, %s22, 0
        %s1556 = sadd.s32 %s1555, %s1553
        %s1557 = smul.addr %s1556, 4
        %s1558 = scalar_lea.vmem %s2, %s1557
      $region60: #{_lambda_.10} parent=55 // pred_fallthru
        _
    $region56: #{_lambda_.10} parent=5 // pred_fallthru
      _
  $region6: #{_lambda_.10} parent=0 // loop_footer
    %s15 = sadd.s32 1, %s11
  $region7: #{_lambda_.10} parent=0 // loop_footer_branch
    %10 = sbr.rel target = $region3
  $region8: #{_lambda_.10} parent=0 // loop_exit
    _

</llo_original>
